<compile_context>
chip_gen: v7x
topology: tpu7x:2x2x1
jax: 0.10.0
libtpu: 0.0.40
codegen_flags: <defaults>
</compile_context>

<pallas_src>
import numpy as np
import jax
import jax.numpy as jnp
from jax.experimental import pallas as pl
from jax.experimental.pallas import tpu as pltpu

# ----------------------------- configuration (mirrors cfg.*) -----------------------------
BEV_RANGE_M = (16.0, 16.0)          # cfg.data.bev_range_m
IMG_GRID_SIZE = (16, 16)            # cfg.data.img_grid_size
Z_PILLAR_CUTOFF = 5.0               # cfg.data.z_pillar_cutoff_value
USE_LIDAR_INTENSITY = True          # cfg.data.use_lidar_intensity
CHANNEL_REDUCTION_FACTOR = 1        # cfg.network.centerpoint.channel_reduction_factor
MAX_PTS_PER_PILLAR = 20
FEAT = 64 // CHANNEL_REDUCTION_FACTOR               # 64 feature channels
FEAT_CHANNELS = FEAT
NUM_RAW_CH = 4 if USE_LIDAR_INTENSITY else 3        # x, y, z, intensity
BN_EPS = 1e-3

PC_RANGE = np.array(
    [-BEV_RANGE_M[0] / 2, -BEV_RANGE_M[1] / 2, -Z_PILLAR_CUTOFF,
     BEV_RANGE_M[0] / 2, BEV_RANGE_M[1] / 2, Z_PILLAR_CUTOFF], np.float32)
VOXEL_SIZE = np.array(
    [BEV_RANGE_M[0] / IMG_GRID_SIZE[0], BEV_RANGE_M[1] / IMG_GRID_SIZE[1],
     2.0 * Z_PILLAR_CUTOFF], np.float32)

# ----------------------------- kernel layout constants -----------------------------------
N_PTS = MAX_PTS_PER_PILLAR          # 20 point slots per pillar
PT_CH = 8                           # [x, y, z, i, invalid_flag, 0, 0, 0] -> one sublane tile
NEG_BIG = -1.0e9                    # weight of the invalid-point flag channel
TILE_PILLARS = 512                  # pillars per grid step (lane dim, multiple of 128)


# ----------------------------- Pallas kernel: PillarFeatureNet hot path ------------------
def _pfn_kernel(pts_ref, aux_ref, par_ref, out_ref):
    """Folded Linear(10->64) + BN1d(eval) + ReLU + max-over-points for one pillar tile.

    pts_ref : (PT_CH, N_PTS*TILE)  channel-major point data, point-major columns
    aux_ref : (PT_CH, TILE)        rows 0:3 pillar center, row 3 npts, row 4 const 1.0
    par_ref : (3*FEAT, 128)        packed [w_pt^T | w_base^T | bias]
    out_ref : (FEAT, TILE)         feature-major pillar features
    """
    tile = out_ref.shape[1]

    w_pt = par_ref[0:FEAT, 0:PT_CH]                  # (64, 8)  per-point term weights
    w_base = par_ref[FEAT:2 * FEAT, 0:2 * PT_CH]     # (64, 16) center/mean/bias term weights
    bias = par_ref[2 * FEAT:3 * FEAT, 0:1]           # (64, 1)  BN bias (padded-slot candidate)

    # One tall MXU matmul over all points of all pillars in the tile (batched per-point dots).
    d = jnp.dot(w_pt, pts_ref[...], preferred_element_type=jnp.float32)  # (64, N_PTS*tile)

    # Fused single pass: max over points of the per-point term + per-pillar xyz sum.
    # All slices are static and lane-tile aligned -> free views, full-width vector ops.
    run = d[:, 0:tile]                               # (64, tile)
    psum = pts_ref[:, 0:tile]                        # (8, tile)
    for n in range(1, N_PTS):
        lo = n * tile
        run = jnp.maximum(run, d[:, lo:lo + tile])
        psum = psum + pts_ref[:, lo:lo + tile]

    aux = aux_ref[...]                                           # (8, tile)
    npts = aux[3:4, :]                                           # (1, tile)
    inv = pl.reciprocal(jnp.maximum(npts, 1.0), approx=True)     # EUP, (1, tile)
    mean = psum * inv                                            # rows 0:3 = cluster mean

    # base = bias - center.Wa.s - mean.Wb.s  in one K=16 dot (bias folded via aux row 4 == 1).
    op = jnp.concatenate([aux, mean], axis=0)                    # (16, tile)
    base = jnp.dot(w_base, op, preferred_element_type=jnp.float32)  # (64, tile)

    x = run + base
    # Pillars with padded point slots also get a bias-only candidate (reference semantics:
    # masked points contribute relu(bn_bias) to the max).
    x = jnp.where(npts < float(N_PTS), jnp.maximum(x, bias), x)
    out_ref[...] = jnp.maximum(x, 0.0)


@jax.jit
def pfn_pallas(pts, aux, par):
    n_tiles, n_ch, pts_cols = pts.shape
    tile = aux.shape[2]
    feat = par.shape[0] // 3
    return pl.pallas_call(
        _pfn_kernel,
        out_shape=jax.ShapeDtypeStruct((feat, n_tiles * tile), jnp.float32),
        grid_spec=pltpu.PrefetchScalarGridSpec(
            num_scalar_prefetch=0,
            grid=(n_tiles,),
            in_specs=[
                pl.BlockSpec((None, n_ch, pts_cols), lambda i: (i, 0, 0)),
                pl.BlockSpec((None, n_ch, tile), lambda i: (i, 0, 0)),
                pl.BlockSpec((par.shape[0], par.shape[1]), lambda i: (0, 0)),
            ],
            out_specs=pl.BlockSpec((feat, tile), lambda i: (0, i)),
        ),
        compiler_params=pltpu.CompilerParams(dimension_semantics=("parallel",)),
    )(pts, aux, par)


# ----------------------------- parameter folding / packing -------------------------------
def fold_and_pack_params(w, bn_scale, bn_bias):
    """Fold the legacy duplicated-f_center feature order and BN(eval) into the Linear weight
    and pack [w_pt^T | w_base^T | bias] into one (3*FEAT, 128) slab (all slices aligned)."""
    w = np.asarray(w, np.float32)                        # (10, 64)
    s = np.asarray(bn_scale, np.float32).reshape(1, -1)  # (1, 64)
    b = np.asarray(bn_bias, np.float32).reshape(-1)      # (64,)

    wa = (w[0:3] + w[7:10]) * s        # f_center coefficient (f_center appears twice, legacy)
    wb = w[4:7] * s                    # f_cluster coefficient
    wi = (w[3:4] * s)[0]               # intensity coefficient

    par = np.zeros((3 * FEAT, 128), np.float32)
    # per-point term: rows = features, cols = point channels [x, y, z, i, flag, 0, 0, 0]
    par[0:FEAT, 0:3] = (wa + wb).T
    par[0:FEAT, 3] = wi
    par[0:FEAT, 4] = NEG_BIG           # invalid-point flag -> candidate can never win the max
    # base term: cols = [cx, cy, cz, npts, 1, ., ., . | mx, my, mz, ...]; bias via const-1 channel
    par[FEAT:2 * FEAT, 0:3] = -wa.T
    par[FEAT:2 * FEAT, 4] = b
    par[FEAT:2 * FEAT, 8:11] = -wb.T
    # bias column for the padded-slot candidate
    par[2 * FEAT:3 * FEAT, 0] = b
    return par


def pack_pillars(voxels, num_points, centers, n_tiles, tile):
    """Host-side packing into the channel-major, lane-dense layout consumed by the kernel."""
    p_real = voxels.shape[0]
    p_pad = n_tiles * tile

    pts = np.zeros((p_pad, N_PTS, PT_CH), np.float32)
    pts[:p_real, :, :NUM_RAW_CH] = voxels
    slot = np.arange(N_PTS)[None, :]
    pts[:p_real, :, 4] = (slot >= num_points[:, None]).astype(np.float32)   # invalid flag
    # (pillar, point, ch) -> (tile, ch, point, pillar_in_tile) -> (tile, ch, point*TILE + pillar)
    pts = pts.reshape(n_tiles, tile, N_PTS, PT_CH).transpose(0, 3, 2, 1)
    pts = np.ascontiguousarray(pts).reshape(n_tiles, PT_CH, N_PTS * tile)

    aux = np.zeros((p_pad, PT_CH), np.float32)
    aux[:p_real, 0:3] = centers
    aux[:p_real, 3] = num_points
    aux[:p_real, 4] = 1.0
    aux = np.ascontiguousarray(aux.reshape(n_tiles, tile, PT_CH).transpose(0, 2, 1))
    return pts, aux


# ----------------------------- glue: voxelization (host, vectorized numpy) ---------------
# TODO(synk): dynamic-shape hard voxelization (point -> pillar grouping) has no clean Pallas
# equivalent; implemented as deterministic, vectorized host-side preprocessing.
def voxelize_points(points_list, max_pts=MAX_PTS_PER_PILLAR):
    """Mirrors mmcv Voxelization(hard) + the wrapper's coordinate re-ordering & batch pad."""
    grid = np.round((PC_RANGE[3:] - PC_RANGE[:3]) / VOXEL_SIZE).astype(np.int64)  # (gx, gy, gz)
    gx, gy = int(grid[0]), int(grid[1])
    all_voxels, all_coors, all_npts = [], [], []
    for b, pts in enumerate(points_list):
        pts = np.asarray(pts, np.float32)
        c = np.floor((pts[:, :3] - PC_RANGE[:3]) / VOXEL_SIZE).astype(np.int64)   # (ix, iy, iz)
        valid = np.all((c >= 0) & (c < grid[None, :]), axis=1)
        pts, c = pts[valid], c[valid]
        key = (c[:, 2] * gy + c[:, 1]) * gx + c[:, 0]        # flat (z, y, x) key
        uniq, inv = np.unique(key, return_inverse=True)
        n_vox = uniq.shape[0]
        order = np.argsort(inv, kind="stable")
        inv_sorted = inv[order]
        counts = np.bincount(inv_sorted, minlength=n_vox)
        starts = np.concatenate([[0], np.cumsum(counts)[:-1]]).astype(np.int64)
        slot = np.arange(inv_sorted.shape[0], dtype=np.int64) - starts[inv_sorted]
        keep = slot < max_pts
        voxels = np.zeros((n_vox, max_pts, pts.shape[1]), np.float32)
        voxels[inv_sorted[keep], slot[keep]] = pts[order][keep]
        npts = np.minimum(counts, max_pts).astype(np.int64)
        zz = uniq // (gy * gx)
        rem = uniq % (gy * gx)
        yy, xx = rem // gx, rem % gx
        coors = np.stack([zz, yy, xx], axis=1)[:, [0, 2, 1]]  # (z, y, x) -> wrapper's (z, x, y)
        coors = np.concatenate(
            [np.full((n_vox, 1), b, np.int64), coors], axis=1)  # (batch, z, x, y)
        all_voxels.append(voxels)
        all_coors.append(coors)
        all_npts.append(npts)
    return (np.concatenate(all_voxels, 0),
            np.concatenate(all_npts, 0),
            np.concatenate(all_coors, 0))


def pillar_centers(coors):
    """Pillar center per pillar. Reproduces the legacy PillarFeatureNet indexing, which
    (after the wrapper's (batch, z, x, y) coord re-ordering) pairs coord slot 3 with vx."""
    vx, vy, vz = VOXEL_SIZE
    x_off = vx / 2.0 + PC_RANGE[0]
    y_off = vy / 2.0 + PC_RANGE[1]
    z_off = vz / 2.0 + PC_RANGE[2]
    c0 = coors[:, 3].astype(np.float32) * vx + x_off
    c1 = coors[:, 2].astype(np.float32) * vy + y_off
    c2 = coors[:, 1].astype(np.float32) * vz + z_off
    return np.stack([c0, c1, c2], axis=1).astype(np.float32)


# ----------------------------- glue: PointPillarsScatter ---------------------------------
def pointpillars_scatter(voxel_features, coors, batch_size, in_channels):
    # TODO(synk): this dense BEV scatter could be fused into the Pallas call via scalar-
    # prefetched canvas indices; kept as an XLA scatter (pillar cells are unique -> .set()).
    ny, nx = IMG_GRID_SIZE
    flat = coors[:, 0] * (ny * nx) + coors[:, 2] * nx + coors[:, 3]
    canvas = jnp.zeros((batch_size * ny * nx, in_channels), jnp.float32)
    canvas = canvas.at[jnp.asarray(flat)].set(voxel_features)
    canvas = canvas.reshape(batch_size, ny, nx, in_channels)
    return jnp.transpose(canvas, (0, 3, 1, 2))   # NCHW: (B, C, ny, nx)


# ----------------------------- full forward ----------------------------------------------
def _tensorcores_per_chip():
    try:
        kind = jax.devices()[0].device_kind.lower()
    except Exception:
        return 1
    return 2 if "v7" in kind else 1


def points_pillar_feature_net_forward(points_list, params):
    voxels, num_points, coors = voxelize_points(points_list)
    p_real = voxels.shape[0]
    centers = pillar_centers(coors)

    # Generation-aware grid sizing: exact tile count on single-TC chips (v5e/v6e, no forced
    # padding tile), even >=2 step count on two-TC chips (v7x) so both cores get equal work.
    n_tiles = max(1, -(-p_real // TILE_PILLARS))
    if _tensorcores_per_chip() >= 2:
        n_tiles = n_tiles + (n_tiles % 2)

    pts, aux = pack_pillars(voxels, num_points, centers, n_tiles, TILE_PILLARS)
    feats_fm = pfn_pallas(jnp.asarray(pts), jnp.asarray(aux), params["packed"])  # (64, p_pad)
    voxel_features = feats_fm[:, :p_real].T                                      # (p_real, 64)

    batch_size = len(points_list)
    x = pointpillars_scatter(voxel_features, coors, batch_size, FEAT_CHANNELS)
    occ = pointpillars_scatter(jnp.ones((p_real, 1), jnp.float32), coors, batch_size, 1)
    return (x, occ), (voxels, num_points, coors, centers, voxel_features)


# ----------------------------- deterministic parameter init ------------------------------
def init_params(key):
    # nn.Linear(10, 64, bias=False): weight shape (64, 10) in PyTorch; we keep its transpose.
    lin_w = jax.random.normal(key, (FEAT_CHANNELS, 10), jnp.float32) * 0.1
    idx = jnp.arange(FEAT_CHANNELS, dtype=jnp.float32)
    gamma = 1.0 + 0.1 * jnp.sin(idx)
    beta = 0.05 * jnp.cos(idx)
    running_mean = 0.02 * jnp.sin(0.5 * idx)
    running_var = 1.0 + 0.1 * jnp.cos(idx) ** 2
    # BatchNorm1d(eps=1e-3) in eval mode, folded into per-channel scale/bias.
    scale = gamma / jnp.sqrt(running_var + BN_EPS)
    bias = beta - running_mean * scale

    w = np.asarray(lin_w.T, np.float32)                       # (10, 64)
    bn_scale = np.asarray(scale, np.float32).reshape(1, -1)   # (1, 64)
    bn_bias = np.asarray(bias, np.float32).reshape(1, -1)     # (1, 64)
    packed = fold_and_pack_params(w, bn_scale, bn_bias)
    return {"w": w, "bn_scale": bn_scale, "bn_bias": bn_bias,
            "packed": jnp.asarray(packed)}


# ----------------------------- numpy reference for the hot path --------------------------
def pfn_reference_np(voxels, num_points, centers, w, bn_scale, bn_bias):
    xyz = voxels[:, :, :3]
    mean = xyz.sum(1, keepdims=True) / np.maximum(num_points, 1).reshape(-1, 1, 1)
    f_cluster = xyz - mean
    f_center = xyz - centers[:, None, :]
    feats = np.concatenate([f_center, voxels[:, :, 3:4], f_cluster, f_center], axis=-1)
    mask = (np.arange(voxels.shape[1])[None, :, None]
            < num_points.reshape(-1, 1, 1)).astype(np.float32)
    feats = feats * mask
    x = feats.astype(np.float32) @ w
    x = x * bn_scale[None] + bn_bias[None]
    x = np.maximum(x, 0.0)
    return x.max(axis=1).astype(np.float32)


if __name__ == "__main__":
    key = jax.random.PRNGKey(0)
    k_param, k_p0, k_p1 = jax.random.split(key, 3)
    params = init_params(k_param)

    def make_points(k, n):
        kxy, kz, ki = jax.random.split(k, 3)
        xy = jax.random.uniform(kxy, (n, 2), minval=-7.9, maxval=7.9)
        z = jax.random.uniform(kz, (n, 1), minval=-4.0, maxval=4.0)
        inten = jax.random.uniform(ki, (n, 1))
        return np.asarray(jnp.concatenate([xy, z, inten], axis=1), np.float32)

    pcl_t0 = [make_points(k_p0, 300), make_points(k_p1, 280)]   # batch of 2 point clouds

    (bev, occ), (voxels, num_points, coors, centers, vf) = \
        points_pillar_feature_net_forward(pcl_t0, params)
    bev = jax.block_until_ready(bev)
    occ = jax.block_until_ready(occ)

    assert bev.shape == (2, FEAT_CHANNELS, IMG_GRID_SIZE[0], IMG_GRID_SIZE[1]), bev.shape
    assert occ.shape == (2, 1, IMG_GRID_SIZE[0], IMG_GRID_SIZE[1]), occ.shape

    ref = pfn_reference_np(voxels, num_points, centers,
                           params["w"], params["bn_scale"], params["bn_bias"])
    # approx reciprocal for 1/npts -> ~2^-12 relative error on the cluster-mean term.
    np.testing.assert_allclose(np.asarray(vf), ref, rtol=2e-3, atol=2e-3)

    print("KERNEL_OK")
</pallas_src>

<mosaic_0001>
module attributes {stable_mosaic.version = 11 : i64} {
  func.func @_pfn_kernel(%arg0: i32, %arg1: memref<1x8x10240xf32, #tpu.memory_space<vmem>>, %arg2: memref<1x8x512xf32, #tpu.memory_space<vmem>>, %arg3: memref<192x128xf32, #tpu.memory_space<vmem>>, %arg4: memref<64x512xf32, #tpu.memory_space<vmem>>) attributes {dimension_semantics = [#tpu.dimension_semantics<parallel>], iteration_bounds = array<i64: 1>, scalar_prefetch = 0 : i64, scratch_operands = 0 : i64, tpu.core_type = #tpu.core_type<tc>, window_params = [{transform_indices = @transform_0, window_bounds = array<i64: 1, 8, 10240>}, {transform_indices = @transform_1, window_bounds = array<i64: 1, 8, 512>}, {pipeline_mode = #tpu.pipeline_mode<synchronous>, transform_indices = @transform_2, window_bounds = array<i64: 192, 128>}, {transform_indices = @transform_3, window_bounds = array<i64: 64, 512>}]} {
    %c0 = arith.constant 0 : index
    %c0_0 = arith.constant 0 : index
    %0 = vector.load %arg3[%c0, %c0_0] : memref<192x128xf32, #tpu.memory_space<vmem>>, vector<64x8xf32>
    %c64 = arith.constant 64 : index
    %c0_1 = arith.constant 0 : index
    %1 = vector.load %arg3[%c64, %c0_1] : memref<192x128xf32, #tpu.memory_space<vmem>>, vector<64x16xf32>
    %c128 = arith.constant 128 : index
    %c0_2 = arith.constant 0 : index
    %2 = vector.load %arg3[%c128, %c0_2] : memref<192x128xf32, #tpu.memory_space<vmem>>, vector<64x1xf32>
    %c0_3 = arith.constant 0 : index
    %c0_4 = arith.constant 0 : index
    %c0_5 = arith.constant 0 : index
    %3 = vector.load %arg1[%c0_3, %c0_4, %c0_5] : memref<1x8x10240xf32, #tpu.memory_space<vmem>>, vector<1x8x10240xf32>
    %4 = vector.shape_cast %3 : vector<1x8x10240xf32> to vector<8x10240xf32>
    %cst = arith.constant dense<0.000000e+00> : vector<64x10240xf32>
    %5 = tpu.matmul %0, %4, %cst {dimension_numbers = #tpu.dot_dimension_numbers<[1], [0], [0], [1], [0, 0, 1, 1], [], []>} : vector<64x8xf32>, vector<8x10240xf32>, vector<64x10240xf32> -> vector<64x10240xf32>
    %6 = vector.extract_strided_slice %5 {offsets = [0, 0], sizes = [64, 512], strides = [1, 1]} : vector<64x10240xf32> to vector<64x512xf32>
    %c0_6 = arith.constant 0 : index
    %c0_7 = arith.constant 0 : index
    %c0_8 = arith.constant 0 : index
    %7 = vector.load %arg1[%c0_6, %c0_7, %c0_8] : memref<1x8x10240xf32, #tpu.memory_space<vmem>>, vector<1x8x512xf32>
    %8 = vector.shape_cast %7 : vector<1x8x512xf32> to vector<8x512xf32>
    %9 = vector.extract_strided_slice %5 {offsets = [0, 512], sizes = [64, 512], strides = [1, 1]} : vector<64x10240xf32> to vector<64x512xf32>
    %10 = arith.maximumf %6, %9 : vector<64x512xf32>
    %c0_9 = arith.constant 0 : index
    %c0_10 = arith.constant 0 : index
    %c512 = arith.constant 512 : index
    %11 = vector.load %arg1[%c0_9, %c0_10, %c512] : memref<1x8x10240xf32, #tpu.memory_space<vmem>>, vector<1x8x512xf32>
    %12 = vector.shape_cast %11 : vector<1x8x512xf32> to vector<8x512xf32>
    %13 = arith.addf %8, %12 : vector<8x512xf32>
    %14 = vector.extract_strided_slice %5 {offsets = [0, 1024], sizes = [64, 512], strides = [1, 1]} : vector<64x10240xf32> to vector<64x512xf32>
    %15 = arith.maximumf %10, %14 : vector<64x512xf32>
    %c0_11 = arith.constant 0 : index
    %c0_12 = arith.constant 0 : index
    %c1024 = arith.constant 1024 : index
    %16 = vector.load %arg1[%c0_11, %c0_12, %c1024] : memref<1x8x10240xf32, #tpu.memory_space<vmem>>, vector<1x8x512xf32>
    %17 = vector.shape_cast %16 : vector<1x8x512xf32> to vector<8x512xf32>
    %18 = arith.addf %13, %17 : vector<8x512xf32>
    %19 = vector.extract_strided_slice %5 {offsets = [0, 1536], sizes = [64, 512], strides = [1, 1]} : vector<64x10240xf32> to vector<64x512xf32>
    %20 = arith.maximumf %15, %19 : vector<64x512xf32>
    %c0_13 = arith.constant 0 : index
    %c0_14 = arith.constant 0 : index
    %c1536 = arith.constant 1536 : index
    %21 = vector.load %arg1[%c0_13, %c0_14, %c1536] : memref<1x8x10240xf32, #tpu.memory_space<vmem>>, vector<1x8x512xf32>
    %22 = vector.shape_cast %21 : vector<1x8x512xf32> to vector<8x512xf32>
    %23 = arith.addf %18, %22 : vector<8x512xf32>
    %24 = vector.extract_strided_slice %5 {offsets = [0, 2048], sizes = [64, 512], strides = [1, 1]} : vector<64x10240xf32> to vector<64x512xf32>
    %25 = arith.maximumf %20, %24 : vector<64x512xf32>
    %c0_15 = arith.constant 0 : index
    %c0_16 = arith.constant 0 : index
    %c2048 = arith.constant 2048 : index
    %26 = vector.load %arg1[%c0_15, %c0_16, %c2048] : memref<1x8x10240xf32, #tpu.memory_space<vmem>>, vector<1x8x512xf32>
    %27 = vector.shape_cast %26 : vector<1x8x512xf32> to vector<8x512xf32>
    %28 = arith.addf %23, %27 : vector<8x512xf32>
    %29 = vector.extract_strided_slice %5 {offsets = [0, 2560], sizes = [64, 512], strides = [1, 1]} : vector<64x10240xf32> to vector<64x512xf32>
    %30 = arith.maximumf %25, %29 : vector<64x512xf32>
    %c0_17 = arith.constant 0 : index
    %c0_18 = arith.constant 0 : index
    %c2560 = arith.constant 2560 : index
    %31 = vector.load %arg1[%c0_17, %c0_18, %c2560] : memref<1x8x10240xf32, #tpu.memory_space<vmem>>, vector<1x8x512xf32>
    %32 = vector.shape_cast %31 : vector<1x8x512xf32> to vector<8x512xf32>
    %33 = arith.addf %28, %32 : vector<8x512xf32>
    %34 = vector.extract_strided_slice %5 {offsets = [0, 3072], sizes = [64, 512], strides = [1, 1]} : vector<64x10240xf32> to vector<64x512xf32>
    %35 = arith.maximumf %30, %34 : vector<64x512xf32>
    %c0_19 = arith.constant 0 : index
    %c0_20 = arith.constant 0 : index
    %c3072 = arith.constant 3072 : index
    %36 = vector.load %arg1[%c0_19, %c0_20, %c3072] : memref<1x8x10240xf32, #tpu.memory_space<vmem>>, vector<1x8x512xf32>
    %37 = vector.shape_cast %36 : vector<1x8x512xf32> to vector<8x512xf32>
    %38 = arith.addf %33, %37 : vector<8x512xf32>
    %39 = vector.extract_strided_slice %5 {offsets = [0, 3584], sizes = [64, 512], strides = [1, 1]} : vector<64x10240xf32> to vector<64x512xf32>
    %40 = arith.maximumf %35, %39 : vector<64x512xf32>
    %c0_21 = arith.constant 0 : index
    %c0_22 = arith.constant 0 : index
    %c3584 = arith.constant 3584 : index
    %41 = vector.load %arg1[%c0_21, %c0_22, %c3584] : memref<1x8x10240xf32, #tpu.memory_space<vmem>>, vector<1x8x512xf32>
    %42 = vector.shape_cast %41 : vector<1x8x512xf32> to vector<8x512xf32>
    %43 = arith.addf %38, %42 : vector<8x512xf32>
    %44 = vector.extract_strided_slice %5 {offsets = [0, 4096], sizes = [64, 512], strides = [1, 1]} : vector<64x10240xf32> to vector<64x512xf32>
    %45 = arith.maximumf %40, %44 : vector<64x512xf32>
    %c0_23 = arith.constant 0 : index
    %c0_24 = arith.constant 0 : index
    %c4096 = arith.constant 4096 : index
    %46 = vector.load %arg1[%c0_23, %c0_24, %c4096] : memref<1x8x10240xf32, #tpu.memory_space<vmem>>, vector<1x8x512xf32>
    %47 = vector.shape_cast %46 : vector<1x8x512xf32> to vector<8x512xf32>
    %48 = arith.addf %43, %47 : vector<8x512xf32>
    %49 = vector.extract_strided_slice %5 {offsets = [0, 4608], sizes = [64, 512], strides = [1, 1]} : vector<64x10240xf32> to vector<64x512xf32>
    %50 = arith.maximumf %45, %49 : vector<64x512xf32>
    %c0_25 = arith.constant 0 : index
    %c0_26 = arith.constant 0 : index
    %c4608 = arith.constant 4608 : index
    %51 = vector.load %arg1[%c0_25, %c0_26, %c4608] : memref<1x8x10240xf32, #tpu.memory_space<vmem>>, vector<1x8x512xf32>
    %52 = vector.shape_cast %51 : vector<1x8x512xf32> to vector<8x512xf32>
    %53 = arith.addf %48, %52 : vector<8x512xf32>
    %54 = vector.extract_strided_slice %5 {offsets = [0, 5120], sizes = [64, 512], strides = [1, 1]} : vector<64x10240xf32> to vector<64x512xf32>
    %55 = arith.maximumf %50, %54 : vector<64x512xf32>
    %c0_27 = arith.constant 0 : index
    %c0_28 = arith.constant 0 : index
    %c5120 = arith.constant 5120 : index
    %56 = vector.load %arg1[%c0_27, %c0_28, %c5120] : memref<1x8x10240xf32, #tpu.memory_space<vmem>>, vector<1x8x512xf32>
    %57 = vector.shape_cast %56 : vector<1x8x512xf32> to vector<8x512xf32>
    %58 = arith.addf %53, %57 : vector<8x512xf32>
    %59 = vector.extract_strided_slice %5 {offsets = [0, 5632], sizes = [64, 512], strides = [1, 1]} : vector<64x10240xf32> to vector<64x512xf32>
    %60 = arith.maximumf %55, %59 : vector<64x512xf32>
    %c0_29 = arith.constant 0 : index
    %c0_30 = arith.constant 0 : index
    %c5632 = arith.constant 5632 : index
    %61 = vector.load %arg1[%c0_29, %c0_30, %c5632] : memref<1x8x10240xf32, #tpu.memory_space<vmem>>, vector<1x8x512xf32>
    %62 = vector.shape_cast %61 : vector<1x8x512xf32> to vector<8x512xf32>
    %63 = arith.addf %58, %62 : vector<8x512xf32>
    %64 = vector.extract_strided_slice %5 {offsets = [0, 6144], sizes = [64, 512], strides = [1, 1]} : vector<64x10240xf32> to vector<64x512xf32>
    %65 = arith.maximumf %60, %64 : vector<64x512xf32>
    %c0_31 = arith.constant 0 : index
    %c0_32 = arith.constant 0 : index
    %c6144 = arith.constant 6144 : index
    %66 = vector.load %arg1[%c0_31, %c0_32, %c6144] : memref<1x8x10240xf32, #tpu.memory_space<vmem>>, vector<1x8x512xf32>
    %67 = vector.shape_cast %66 : vector<1x8x512xf32> to vector<8x512xf32>
    %68 = arith.addf %63, %67 : vector<8x512xf32>
    %69 = vector.extract_strided_slice %5 {offsets = [0, 6656], sizes = [64, 512], strides = [1, 1]} : vector<64x10240xf32> to vector<64x512xf32>
    %70 = arith.maximumf %65, %69 : vector<64x512xf32>
    %c0_33 = arith.constant 0 : index
    %c0_34 = arith.constant 0 : index
    %c6656 = arith.constant 6656 : index
    %71 = vector.load %arg1[%c0_33, %c0_34, %c6656] : memref<1x8x10240xf32, #tpu.memory_space<vmem>>, vector<1x8x512xf32>
    %72 = vector.shape_cast %71 : vector<1x8x512xf32> to vector<8x512xf32>
    %73 = arith.addf %68, %72 : vector<8x512xf32>
    %74 = vector.extract_strided_slice %5 {offsets = [0, 7168], sizes = [64, 512], strides = [1, 1]} : vector<64x10240xf32> to vector<64x512xf32>
    %75 = arith.maximumf %70, %74 : vector<64x512xf32>
    %c0_35 = arith.constant 0 : index
    %c0_36 = arith.constant 0 : index
    %c7168 = arith.constant 7168 : index
    %76 = vector.load %arg1[%c0_35, %c0_36, %c7168] : memref<1x8x10240xf32, #tpu.memory_space<vmem>>, vector<1x8x512xf32>
    %77 = vector.shape_cast %76 : vector<1x8x512xf32> to vector<8x512xf32>
    %78 = arith.addf %73, %77 : vector<8x512xf32>
    %79 = vector.extract_strided_slice %5 {offsets = [0, 7680], sizes = [64, 512], strides = [1, 1]} : vector<64x10240xf32> to vector<64x512xf32>
    %80 = arith.maximumf %75, %79 : vector<64x512xf32>
    %c0_37 = arith.constant 0 : index
    %c0_38 = arith.constant 0 : index
    %c7680 = arith.constant 7680 : index
    %81 = vector.load %arg1[%c0_37, %c0_38, %c7680] : memref<1x8x10240xf32, #tpu.memory_space<vmem>>, vector<1x8x512xf32>
    %82 = vector.shape_cast %81 : vector<1x8x512xf32> to vector<8x512xf32>
    %83 = arith.addf %78, %82 : vector<8x512xf32>
    %84 = vector.extract_strided_slice %5 {offsets = [0, 8192], sizes = [64, 512], strides = [1, 1]} : vector<64x10240xf32> to vector<64x512xf32>
    %85 = arith.maximumf %80, %84 : vector<64x512xf32>
    %c0_39 = arith.constant 0 : index
    %c0_40 = arith.constant 0 : index
    %c8192 = arith.constant 8192 : index
    %86 = vector.load %arg1[%c0_39, %c0_40, %c8192] : memref<1x8x10240xf32, #tpu.memory_space<vmem>>, vector<1x8x512xf32>
    %87 = vector.shape_cast %86 : vector<1x8x512xf32> to vector<8x512xf32>
    %88 = arith.addf %83, %87 : vector<8x512xf32>
    %89 = vector.extract_strided_slice %5 {offsets = [0, 8704], sizes = [64, 512], strides = [1, 1]} : vector<64x10240xf32> to vector<64x512xf32>
    %90 = arith.maximumf %85, %89 : vector<64x512xf32>
    %c0_41 = arith.constant 0 : index
    %c0_42 = arith.constant 0 : index
    %c8704 = arith.constant 8704 : index
    %91 = vector.load %arg1[%c0_41, %c0_42, %c8704] : memref<1x8x10240xf32, #tpu.memory_space<vmem>>, vector<1x8x512xf32>
    %92 = vector.shape_cast %91 : vector<1x8x512xf32> to vector<8x512xf32>
    %93 = arith.addf %88, %92 : vector<8x512xf32>
    %94 = vector.extract_strided_slice %5 {offsets = [0, 9216], sizes = [64, 512], strides = [1, 1]} : vector<64x10240xf32> to vector<64x512xf32>
    %95 = arith.maximumf %90, %94 : vector<64x512xf32>
    %c0_43 = arith.constant 0 : index
    %c0_44 = arith.constant 0 : index
    %c9216 = arith.constant 9216 : index
    %96 = vector.load %arg1[%c0_43, %c0_44, %c9216] : memref<1x8x10240xf32, #tpu.memory_space<vmem>>, vector<1x8x512xf32>
    %97 = vector.shape_cast %96 : vector<1x8x512xf32> to vector<8x512xf32>
    %98 = arith.addf %93, %97 : vector<8x512xf32>
    %99 = vector.extract_strided_slice %5 {offsets = [0, 9728], sizes = [64, 512], strides = [1, 1]} : vector<64x10240xf32> to vector<64x512xf32>
    %100 = arith.maximumf %95, %99 : vector<64x512xf32>
    %c0_45 = arith.constant 0 : index
    %c0_46 = arith.constant 0 : index
    %c9728 = arith.constant 9728 : index
    %101 = vector.load %arg1[%c0_45, %c0_46, %c9728] : memref<1x8x10240xf32, #tpu.memory_space<vmem>>, vector<1x8x512xf32>
    %102 = vector.shape_cast %101 : vector<1x8x512xf32> to vector<8x512xf32>
    %103 = arith.addf %98, %102 : vector<8x512xf32>
    %c0_47 = arith.constant 0 : index
    %c0_48 = arith.constant 0 : index
    %c0_49 = arith.constant 0 : index
    %104 = vector.load %arg2[%c0_47, %c0_48, %c0_49] : memref<1x8x512xf32, #tpu.memory_space<vmem>>, vector<1x8x512xf32>
    %105 = vector.shape_cast %104 : vector<1x8x512xf32> to vector<8x512xf32>
    %106 = vector.extract_strided_slice %105 {offsets = [3, 0], sizes = [1, 512], strides = [1, 1]} : vector<8x512xf32> to vector<1x512xf32>
    %cst_50 = arith.constant 1.000000e+00 : f32
    %107 = vector.broadcast %cst_50 : f32 to vector<1x512xf32>
    %108 = arith.maximumf %106, %107 : vector<1x512xf32>
    %109 = tpu.reciprocal %108 {approx = true} : vector<1x512xf32> -> vector<1x512xf32>
    %110 = vector.broadcast %109 : vector<1x512xf32> to vector<8x512xf32>
    %111 = arith.mulf %103, %110 : vector<8x512xf32>
    %112 = tpu.concatenate %105, %111 in 0 : vector<8x512xf32>, vector<8x512xf32> -> vector<16x512xf32>
    %cst_51 = arith.constant dense<0.000000e+00> : vector<64x512xf32>
    %113 = tpu.matmul %1, %112, %cst_51 {dimension_numbers = #tpu.dot_dimension_numbers<[1], [0], [0], [1], [0, 0, 1, 1], [], []>} : vector<64x16xf32>, vector<16x512xf32>, vector<64x512xf32> -> vector<64x512xf32>
    %114 = arith.addf %100, %113 : vector<64x512xf32>
    %cst_52 = arith.constant 2.000000e+01 : f32
    %115 = vector.broadcast %cst_52 : f32 to vector<1x512xf32>
    %116 = arith.cmpf olt, %106, %115 : vector<1x512xf32>
    %117 = vector.broadcast %2 : vector<64x1xf32> to vector<64x512xf32>
    %118 = arith.maximumf %114, %117 : vector<64x512xf32>
    %119 = vector.shape_cast %116 : vector<1x512xi1> to vector<1x512xi1>
    %120 = vector.broadcast %119 : vector<1x512xi1> to vector<64x512xi1>
    %121 = arith.select %120, %118, %114 : vector<64x512xi1>, vector<64x512xf32>
    %cst_53 = arith.constant 0.000000e+00 : f32
    %122 = vector.broadcast %cst_53 : f32 to vector<64x512xf32>
    %123 = arith.maximumf %121, %122 : vector<64x512xf32>
    %c0_54 = arith.constant 0 : index
    %c0_55 = arith.constant 0 : index
    %124 = vector.load %arg4[%c0_54, %c0_55] : memref<64x512xf32, #tpu.memory_space<vmem>>, vector<64x512xf32>
    tpu.vector_store %arg4[%c0_54, %c0_55], %123 {strides = array<i32>} : memref<64x512xf32, #tpu.memory_space<vmem>>, vector<64x512xf32>,
    return
  }
  func.func @transform_0(%arg0: i32) -> (i32, i32, i32) {
    %c0_i32 = arith.constant 0 : i32
    %c0_i32_0 = arith.constant 0 : i32
    %c0_i32_1 = arith.constant 0 : i32
    return %arg0, %c0_i32, %c0_i32_0 : i32, i32, i32
  }
  func.func @transform_1(%arg0: i32) -> (i32, i32, i32) {
    %c0_i32 = arith.constant 0 : i32
    %c0_i32_0 = arith.constant 0 : i32
    %c0_i32_1 = arith.constant 0 : i32
    return %arg0, %c0_i32, %c0_i32_0 : i32, i32, i32
  }
  func.func @transform_2(%arg0: i32) -> (i32, i32) {
    %c0_i32 = arith.constant 0 : i32
    %c0_i32_0 = arith.constant 0 : i32
    %c0_i32_1 = arith.constant 0 : i32
    return %c0_i32, %c0_i32_0 : i32, i32
  }
  func.func @transform_3(%arg0: i32) -> (i32, i32) {
    %c0_i32 = arith.constant 0 : i32
    %c0_i32_0 = arith.constant 0 : i32
    return %c0_i32, %arg0 : i32, i32
  }
}

</mosaic_0001>

<llo_original>
// kernel: pfn_pallas.1
$region0: #{pfn_pallas.1}
  #allocation0 [shape = 'u32[]', space=smem, size = 0x4, offset = 0x4, fixed_abs, tag = 'smem constant byte address 0x4 - core index']
  #allocation1 [shape = 'u32[144,128]{1,0:T(1,128)}', space=vmem, size = 0x12000, scoped, tag = 'internal scratch']
  %s0 = inlined_call_operand.hbm [shape: f32[1,8,10240], index: 0, kind: input, shape index: {}]
  %s1 = inlined_call_operand.hbm [shape: f32[1,8,512], index: 1, kind: input, shape index: {}]
  %s2 = inlined_call_operand.hbm [shape: f32[192,128], index: 2, kind: input, shape index: {}]
  %s3 = inlined_call_operand.hbm [shape: f32[64,512], index: 3, kind: output, shape index: {}]
  %s4 = sld [smem:[#allocation0]]
  $region34: #{pfn_pallas.1} parent=0
    _
  %s6 = ssub.s32 1, %s4
  %s7 = scalar_select 0, %s6, %s4
  $region1: #{pfn_pallas.1} parent=0
    #allocation2 [shape = 'u8[327680]{0}', space=vmem, size = 0x50000, scoped, tag = 'input window, operand 0, single buffered']
    #allocation3 [shape = 's32[1]{0}', space=sflag, size = 0x4, scoped, tag = 'scoped memory for pfn_pallas.1']
    #allocation4 [shape = 's32[1]{0}', space=sflag, size = 0x4, scoped, tag = 'scoped memory for pfn_pallas.1']
    #allocation5 [shape = 'u8[16384]{0}', space=vmem, size = 0x4000, scoped, tag = 'input window, operand 1, single buffered']
    #allocation6 [shape = 's32[1]{0}', space=sflag, size = 0x4, scoped, tag = 'scoped memory for pfn_pallas.1']
    #allocation7 [shape = 'u8[98304]{0}', space=vmem, size = 0x18000, scoped, tag = 'input window, operand 2, single buffered']
    #allocation8 [shape = 'u8[131072]{0}', space=vmem, size = 0x20000, scoped, tag = 'output window, operand 0, single buffered']
    %8 = vsyncpa [#allocation3], 0
    %9 = vsyncpa [#allocation6], 0
    %10 = vsyncpa [#allocation4], 0
    // Predicated region
    $region2: #{pfn_pallas.1} parent=1 // pred_check
      _
    $region3: #{pfn_pallas.1} parent=1 // pred_check_branch
      %12 = sbr.rel (0) target = $region5
    $region4: #{pfn_pallas.1} parent=1 // pred_region
      %s14 = ssub.s32 10240, 10240
      %15 = vsyncadd [#allocation3], %s14
      %s17 = sshll.u32 [#allocation2], 4
      %s18 = int_to_ptr.vmem [resolvable:$true] %s17
      %20 = dma.hbm_to_vmem [thread:$0]  %s0, 10240, %s18, [#allocation3]
    $region5: #{pfn_pallas.1} parent=1 // pred_fallthru
      _
    // Predicated region
    $region6: #{pfn_pallas.1} parent=1 // pred_check
      _
    $region7: #{pfn_pallas.1} parent=1 // pred_check_branch
      %22 = sbr.rel (0) target = $region9
    $region8: #{pfn_pallas.1} parent=1 // pred_region
      %s24 = ssub.s32 512, 512
      %25 = vsyncadd [#allocation6], %s24
      %s27 = sshll.u32 [#allocation5], 4
      %s28 = int_to_ptr.vmem [resolvable:$true] %s27
      %30 = dma.hbm_to_vmem [thread:$0]  %s1, 512, %s28, [#allocation6]
    $region9: #{pfn_pallas.1} parent=1 // pred_fallthru
      _
    // Predicated region
    $region10: #{pfn_pallas.1} parent=1 // pred_check
      _
    $region11: #{pfn_pallas.1} parent=1 // pred_check_branch
      %32 = sbr.rel (0) target = $region13
    $region12: #{pfn_pallas.1} parent=1 // pred_region
      %s34 = ssub.s32 3072, 3072
      %35 = vsyncadd [#allocation6], %s34
      %s36 = sshll.u32 [#allocation7], 4
      %s37 = int_to_ptr.vmem [resolvable:$true] %s36
      %42 = dma.hbm_to_vmem [thread:$0]  %s2, 3072, %s37, [#allocation6], 128, 128, 8
    $region13: #{pfn_pallas.1} parent=1 // pred_fallthru
      _
    // Predicated region
    $region14: #{pfn_pallas.1} parent=1 // pred_check
      _
    $region15: #{pfn_pallas.1} parent=1 // pred_check_branch
      %44 = sbr.rel (0) target = $region17
    $region16: #{pfn_pallas.1} parent=1 // pred_region
      %45 = dma.done [#allocation3], 10240
    $region17: #{pfn_pallas.1} parent=1 // pred_fallthru
      _
    // Predicated region
    $region18: #{pfn_pallas.1} parent=1 // pred_check
      _
    $region19: #{pfn_pallas.1} parent=1 // pred_check_branch
      %47 = sbr.rel (0) target = $region21
    $region20: #{pfn_pallas.1} parent=1 // pred_region
      %48 = dma.done [#allocation6], 512
    $region21: #{pfn_pallas.1} parent=1 // pred_fallthru
      _
    // Predicated region
    $region22: #{pfn_pallas.1} parent=1 // pred_check
      _
    $region23: #{pfn_pallas.1} parent=1 // pred_check_branch
      %50 = sbr.rel (0) target = $region25
    $region24: #{pfn_pallas.1} parent=1 // pred_region
      %51 = dma.done [#allocation6], 3072
    $region25: #{pfn_pallas.1} parent=1 // pred_fallthru
      _
    %v52 = vld [vmem:[#allocation7] sm:$0xff]
    %v53 = vld [vmem:[#allocation7 + $0x8] sm:$0xff]
    %v54 = vld [vmem:[#allocation7 + $0x10] sm:$0xff]
    %v55 = vld [vmem:[#allocation7 + $0x18] sm:$0xff]
    %v56 = vld [vmem:[#allocation7 + $0x20] sm:$0xff]
    %v57 = vld [vmem:[#allocation7 + $0x28] sm:$0xff]
    %v58 = vld [vmem:[#allocation7 + $0x30] sm:$0xff]
    %v59 = vld [vmem:[#allocation7 + $0x38] sm:$0xff]
    %v60 = vld [vmem:[#allocation7 + $0x40] sm:$0xff]
    %v61 = vld [vmem:[#allocation7 + $0x48] sm:$0xff]
    %v62 = vld [vmem:[#allocation7 + $0x50] sm:$0xff]
    %v63 = vld [vmem:[#allocation7 + $0x58] sm:$0xff]
    %v64 = vld [vmem:[#allocation7 + $0x60] sm:$0xff]
    %v65 = vld [vmem:[#allocation7 + $0x68] sm:$0xff]
    %v66 = vld [vmem:[#allocation7 + $0x70] sm:$0xff]
    %v67 = vld [vmem:[#allocation7 + $0x78] sm:$0xff]
    %v68 = vld [vmem:[#allocation7 + $0x80] sm:$0xff]
    %v69 = vld [vmem:[#allocation7 + $0x88] sm:$0xff]
    %v70 = vld [vmem:[#allocation7 + $0x90] sm:$0xff]
    %v71 = vld [vmem:[#allocation7 + $0x98] sm:$0xff]
    %v72 = vld [vmem:[#allocation7 + $0xa0] sm:$0xff]
    %v73 = vld [vmem:[#allocation7 + $0xa8] sm:$0xff]
    %v74 = vld [vmem:[#allocation7 + $0xb0] sm:$0xff]
    %v75 = vld [vmem:[#allocation7 + $0xb8] sm:$0xff]
    %v76 = vld [vmem:[#allocation2] sm:$0xff]
    %v77 = vld [vmem:[#allocation2 + $0x8] sm:$0xff]
    %v78 = vld [vmem:[#allocation2 + $0x10] sm:$0xff]
    %v79 = vld [vmem:[#allocation2 + $0x18] sm:$0xff]
    %v80 = vld [vmem:[#allocation2 + $0x20] sm:$0xff]
    %v81 = vld [vmem:[#allocation2 + $0x28] sm:$0xff]
    %v82 = vld [vmem:[#allocation2 + $0x30] sm:$0xff]
    %v83 = vld [vmem:[#allocation2 + $0x38] sm:$0xff]
    %v84 = vld [vmem:[#allocation2 + $0x40] sm:$0xff]
    %v85 = vld [vmem:[#allocation2 + $0x48] sm:$0xff]
    %v86 = vld [vmem:[#allocation2 + $0x50] sm:$0xff]
    %v87 = vld [vmem:[#allocation2 + $0x58] sm:$0xff]
    %v88 = vld [vmem:[#allocation2 + $0x60] sm:$0xff]
    %v89 = vld [vmem:[#allocation2 + $0x68] sm:$0xff]
    %v90 = vld [vmem:[#allocation2 + $0x70] sm:$0xff]
    %v91 = vld [vmem:[#allocation2 + $0x78] sm:$0xff]
    %v92 = vld [vmem:[#allocation2 + $0x80] sm:$0xff]
    %v93 = vld [vmem:[#allocation2 + $0x88] sm:$0xff]
    %v94 = vld [vmem:[#allocation2 + $0x90] sm:$0xff]
    %v95 = vld [vmem:[#allocation2 + $0x98] sm:$0xff]
    %v96 = vld [vmem:[#allocation2 + $0xa0] sm:$0xff]
    %v97 = vld [vmem:[#allocation2 + $0xa8] sm:$0xff]
    %v98 = vld [vmem:[#allocation2 + $0xb0] sm:$0xff]
    %v99 = vld [vmem:[#allocation2 + $0xb8] sm:$0xff]
    %v100 = vld [vmem:[#allocation2 + $0xc0] sm:$0xff]
    %v101 = vld [vmem:[#allocation2 + $0xc8] sm:$0xff]
    %v102 = vld [vmem:[#allocation2 + $0xd0] sm:$0xff]
    %v103 = vld [vmem:[#allocation2 + $0xd8] sm:$0xff]
    %v104 = vld [vmem:[#allocation2 + $0xe0] sm:$0xff]
    %v105 = vld [vmem:[#allocation2 + $0xe8] sm:$0xff]
    %v106 = vld [vmem:[#allocation2 + $0xf0] sm:$0xff]
    %v107 = vld [vmem:[#allocation2 + $0xf8] sm:$0xff]
    %v108 = vld [vmem:[#allocation2 + $0x100] sm:$0xff]
    %v109 = vld [vmem:[#allocation2 + $0x108] sm:$0xff]
    %v110 = vld [vmem:[#allocation2 + $0x110] sm:$0xff]
    %v111 = vld [vmem:[#allocation2 + $0x118] sm:$0xff]
    %v112 = vld [vmem:[#allocation2 + $0x120] sm:$0xff]
    %v113 = vld [vmem:[#allocation2 + $0x128] sm:$0xff]
    %v114 = vld [vmem:[#allocation2 + $0x130] sm:$0xff]
    %v115 = vld [vmem:[#allocation2 + $0x138] sm:$0xff]
    %v116 = vld [vmem:[#allocation2 + $0x140] sm:$0xff]
    %v117 = vld [vmem:[#allocation2 + $0x148] sm:$0xff]
    %v118 = vld [vmem:[#allocation2 + $0x150] sm:$0xff]
    %v119 = vld [vmem:[#allocation2 + $0x158] sm:$0xff]
    %v120 = vld [vmem:[#allocation2 + $0x160] sm:$0xff]
    %v121 = vld [vmem:[#allocation2 + $0x168] sm:$0xff]
    %v122 = vld [vmem:[#allocation2 + $0x170] sm:$0xff]
    %v123 = vld [vmem:[#allocation2 + $0x178] sm:$0xff]
    %v124 = vld [vmem:[#allocation2 + $0x180] sm:$0xff]
    %v125 = vld [vmem:[#allocation2 + $0x188] sm:$0xff]
    %v126 = vld [vmem:[#allocation2 + $0x190] sm:$0xff]
    %v127 = vld [vmem:[#allocation2 + $0x198] sm:$0xff]
    %v128 = vld [vmem:[#allocation2 + $0x1a0] sm:$0xff]
    %v129 = vld [vmem:[#allocation2 + $0x1a8] sm:$0xff]
    %v130 = vld [vmem:[#allocation2 + $0x1b0] sm:$0xff]
    %v131 = vld [vmem:[#allocation2 + $0x1b8] sm:$0xff]
    %v132 = vld [vmem:[#allocation2 + $0x1c0] sm:$0xff]
    %v133 = vld [vmem:[#allocation2 + $0x1c8] sm:$0xff]
    %v134 = vld [vmem:[#allocation2 + $0x1d0] sm:$0xff]
    %v135 = vld [vmem:[#allocation2 + $0x1d8] sm:$0xff]
    %v136 = vld [vmem:[#allocation2 + $0x1e0] sm:$0xff]
    %v137 = vld [vmem:[#allocation2 + $0x1e8] sm:$0xff]
    %v138 = vld [vmem:[#allocation2 + $0x1f0] sm:$0xff]
    %v139 = vld [vmem:[#allocation2 + $0x1f8] sm:$0xff]
    %v140 = vld [vmem:[#allocation2 + $0x200] sm:$0xff]
    %v141 = vld [vmem:[#allocation2 + $0x208] sm:$0xff]
    %v142 = vld [vmem:[#allocation2 + $0x210] sm:$0xff]
    %v143 = vld [vmem:[#allocation2 + $0x218] sm:$0xff]
    %v144 = vld [vmem:[#allocation2 + $0x220] sm:$0xff]
    %v145 = vld [vmem:[#allocation2 + $0x228] sm:$0xff]
    %v146 = vld [vmem:[#allocation2 + $0x230] sm:$0xff]
    %v147 = vld [vmem:[#allocation2 + $0x238] sm:$0xff]
    %v148 = vld [vmem:[#allocation2 + $0x240] sm:$0xff]
    %v149 = vld [vmem:[#allocation2 + $0x248] sm:$0xff]
    %v150 = vld [vmem:[#allocation2 + $0x250] sm:$0xff]
    %v151 = vld [vmem:[#allocation2 + $0x258] sm:$0xff]
    %v152 = vld [vmem:[#allocation2 + $0x260] sm:$0xff]
    %v153 = vld [vmem:[#allocation2 + $0x268] sm:$0xff]
    %v154 = vld [vmem:[#allocation2 + $0x270] sm:$0xff]
    %v155 = vld [vmem:[#allocation2 + $0x278] sm:$0xff]
    %vm156 = vcmask 64512
    %v158 = vsel %vm156, %v52, 0
    %v161 = vsel %vm156, %v53, 0
    %v164 = vsel %vm156, %v54, 0
    %v167 = vsel %vm156, %v55, 0
    %v170 = vsel %vm156, %v56, 0
    %v173 = vsel %vm156, %v57, 0
    %v176 = vsel %vm156, %v58, 0
    %v179 = vsel %vm156, %v59, 0
    %181 = vmatprep.subr.mxu0 %v77
    %182 = vmatpush1.msra.mxu0 %v76
    %183 = vmatprep.subr.mxu0 0.0
    %184 = vmatpush1.msra.mxu0 0.0
    %185 = vmatprep.subr.mxu0 0.0
    %186 = vmatpush1.msra.mxu0 0.0
    %187 = vmatprep.subr.mxu0 0.0
    %188 = vmatpush1.msra.mxu0 0.0
    %189 = vmatprep.subr.mxu0 0.0
    %190 = vmatpush1.msra.mxu0 0.0
    %191 = vmatprep.subr.mxu0 0.0
    %192 = vmatpush1.msra.mxu0 0.0
    %193 = vmatprep.subr.mxu0 0.0
    %194 = vmatpush1.msra.mxu0 0.0
    %195 = vmatprep.subr.mxu0 0.0
    %196 = vmatpush1.msra.mxu0 0.0
    %197 = vmatprep.subr.mxu0 0.0
    %198 = vmatpush1.msra.mxu0 0.0
    %199 = vmatprep.subr.mxu0 0.0
    %200 = vmatpush1.msra.mxu0 0.0
    %201 = vmatprep.subr.mxu0 0.0
    %202 = vmatpush1.msra.mxu0 0.0
    %203 = vmatprep.subr.mxu0 0.0
    %204 = vmatpush1.msra.mxu0 0.0
    %205 = vmatprep.subr.mxu0 0.0
    %206 = vmatpush1.msra.mxu0 0.0
    %207 = vmatprep.subr.mxu0 0.0
    %208 = vmatpush1.msra.mxu0 0.0
    %209 = vmatprep.subr.mxu0 0.0
    %210 = vmatpush1.msra.mxu0 0.0
    %211 = vmatprep.subr.mxu0 0.0
    %212 = vmatpush1.msra.mxu0 0.0
    %213 = vmatprep.subr.mxu0 0.0
    %214 = vmatpush1.msra.mxu0 0.0
    %215 = vmatprep.subr.mxu0 0.0
    %216 = vmatpush1.msra.mxu0 0.0
    %217 = vmatprep.subr.mxu0 0.0
    %218 = vmatpush1.msra.mxu0 0.0
    %219 = vmatprep.subr.mxu0 0.0
    %220 = vmatpush1.msra.mxu0 0.0
    %221 = vmatprep.subr.mxu0 0.0
    %222 = vmatpush1.msra.mxu0 0.0
    %223 = vmatprep.subr.mxu0 0.0
    %224 = vmatpush1.msra.mxu0 0.0
    %225 = vmatprep.subr.mxu0 0.0
    %226 = vmatpush1.msra.mxu0 0.0
    %227 = vmatprep.subr.mxu0 0.0
    %228 = vmatpush1.msra.mxu0 0.0
    %229 = vmatprep.subr.mxu0 0.0
    %230 = vmatpush1.msra.mxu0 0.0
    %231 = vmatprep.subr.mxu0 0.0
    %232 = vmatpush1.msra.mxu0 0.0
    %233 = vmatprep.subr.mxu0 0.0
    %234 = vmatpush1.msra.mxu0 0.0
    %235 = vmatprep.subr.mxu0 0.0
    %236 = vmatpush1.msra.mxu0 0.0
    %237 = vmatprep.subr.mxu0 0.0
    %238 = vmatpush1.msra.mxu0 0.0
    %239 = vmatprep.subr.mxu0 0.0
    %240 = vmatpush1.msra.mxu0 0.0
    %241 = vmatprep.subr.mxu0 0.0
    %242 = vmatpush1.msra.mxu0 0.0
    %243 = vmatprep.subr.mxu0 0.0
    %244 = vmatpush1.msra.mxu0 0.0
    %245 = vmatprep.mubr.f32.mxu0 0.0
    %246 = vmatmul.mubr.f32.gmra.mrb[0].mxu0 %v158
    %v247 = vpop.f32.mrb[0].mxu0
    %v248 = vadd.f32 0.0, %v247
    %v249 = vpop.f32.mrb[0].mxu0
    %v250 = vadd.f32 0.0, %v249
    %251 = vmatprep.mubr.f32.mxu0 0.0
    %252 = vmatmul.mubr.f32.gmra.mrb[0].mxu0 %v161
    %v253 = vpop.f32.mrb[0].mxu0
    %v254 = vadd.f32 0.0, %v253
    %v255 = vpop.f32.mrb[0].mxu0
    %v256 = vadd.f32 0.0, %v255
    %257 = vmatprep.mubr.f32.mxu0 0.0
    %258 = vmatmul.mubr.f32.gmra.mrb[0].mxu0 %v164
    %v259 = vpop.f32.mrb[0].mxu0
    %v260 = vadd.f32 0.0, %v259
    %v261 = vpop.f32.mrb[0].mxu0
    %v262 = vadd.f32 0.0, %v261
    %263 = vmatprep.mubr.f32.mxu0 0.0
    %264 = vmatmul.mubr.f32.gmra.mrb[0].mxu0 %v167
    %v265 = vpop.f32.mrb[0].mxu0
    %v266 = vadd.f32 0.0, %v265
    %v267 = vpop.f32.mrb[0].mxu0
    %v268 = vadd.f32 0.0, %v267
    %269 = vmatprep.mubr.f32.mxu0 0.0
    %270 = vmatmul.mubr.f32.gmra.mrb[0].mxu0 %v170
    %v271 = vpop.f32.mrb[0].mxu0
    %v272 = vadd.f32 0.0, %v271
    %v273 = vpop.f32.mrb[0].mxu0
    %v274 = vadd.f32 0.0, %v273
    %275 = vmatprep.mubr.f32.mxu0 0.0
    %276 = vmatmul.mubr.f32.gmra.mrb[0].mxu0 %v173
    %v277 = vpop.f32.mrb[0].mxu0
    %v278 = vadd.f32 0.0, %v277
    %v279 = vpop.f32.mrb[0].mxu0
    %v280 = vadd.f32 0.0, %v279
    %281 = vmatprep.mubr.f32.mxu0 0.0
    %282 = vmatmul.mubr.f32.gmra.mrb[0].mxu0 %v176
    %v283 = vpop.f32.mrb[0].mxu0
    %v284 = vadd.f32 0.0, %v283
    %v285 = vpop.f32.mrb[0].mxu0
    %v286 = vadd.f32 0.0, %v285
    %287 = vmatprep.mubr.f32.mxu0 0.0
    %288 = vmatmul.mubr.f32.gmra.mrb[0].mxu0 %v179
    %v289 = vpop.f32.mrb[0].mxu0
    %v290 = vadd.f32 0.0, %v289
    %v291 = vpop.f32.mrb[0].mxu0
    %v292 = vadd.f32 0.0, %v291
    %293 = vdwg.mxu0
    %294 = vmatprep.subr.mxu0 %v79
    %295 = vmatpush1.msra.mxu0 %v78
    %296 = vmatprep.subr.mxu0 0.0
    %297 = vmatpush1.msra.mxu0 0.0
    %298 = vmatprep.subr.mxu0 0.0
    %299 = vmatpush1.msra.mxu0 0.0
    %300 = vmatprep.subr.mxu0 0.0
    %301 = vmatpush1.msra.mxu0 0.0
    %302 = vmatprep.subr.mxu0 0.0
    %303 = vmatpush1.msra.mxu0 0.0
    %304 = vmatprep.subr.mxu0 0.0
    %305 = vmatpush1.msra.mxu0 0.0
    %306 = vmatprep.subr.mxu0 0.0
    %307 = vmatpush1.msra.mxu0 0.0
    %308 = vmatprep.subr.mxu0 0.0
    %309 = vmatpush1.msra.mxu0 0.0
    %310 = vmatprep.subr.mxu0 0.0
    %311 = vmatpush1.msra.mxu0 0.0
    %312 = vmatprep.subr.mxu0 0.0
    %313 = vmatpush1.msra.mxu0 0.0
    %314 = vmatprep.subr.mxu0 0.0
    %315 = vmatpush1.msra.mxu0 0.0
    %316 = vmatprep.subr.mxu0 0.0
    %317 = vmatpush1.msra.mxu0 0.0
    %318 = vmatprep.subr.mxu0 0.0
    %319 = vmatpush1.msra.mxu0 0.0
    %320 = vmatprep.subr.mxu0 0.0
    %321 = vmatpush1.msra.mxu0 0.0
    %322 = vmatprep.subr.mxu0 0.0
    %323 = vmatpush1.msra.mxu0 0.0
    %324 = vmatprep.subr.mxu0 0.0
    %325 = vmatpush1.msra.mxu0 0.0
    %326 = vmatprep.subr.mxu0 0.0
    %327 = vmatpush1.msra.mxu0 0.0
    %328 = vmatprep.subr.mxu0 0.0
    %329 = vmatpush1.msra.mxu0 0.0
    %330 = vmatprep.subr.mxu0 0.0
    %331 = vmatpush1.msra.mxu0 0.0
    %332 = vmatprep.subr.mxu0 0.0
    %333 = vmatpush1.msra.mxu0 0.0
    %334 = vmatprep.subr.mxu0 0.0
    %335 = vmatpush1.msra.mxu0 0.0
    %336 = vmatprep.subr.mxu0 0.0
    %337 = vmatpush1.msra.mxu0 0.0
    %338 = vmatprep.subr.mxu0 0.0
    %339 = vmatpush1.msra.mxu0 0.0
    %340 = vmatprep.subr.mxu0 0.0
    %341 = vmatpush1.msra.mxu0 0.0
    %342 = vmatprep.subr.mxu0 0.0
    %343 = vmatpush1.msra.mxu0 0.0
    %344 = vmatprep.subr.mxu0 0.0
    %345 = vmatpush1.msra.mxu0 0.0
    %346 = vmatprep.subr.mxu0 0.0
    %347 = vmatpush1.msra.mxu0 0.0
    %348 = vmatprep.subr.mxu0 0.0
    %349 = vmatpush1.msra.mxu0 0.0
    %350 = vmatprep.subr.mxu0 0.0
    %351 = vmatpush1.msra.mxu0 0.0
    %352 = vmatprep.subr.mxu0 0.0
    %353 = vmatpush1.msra.mxu0 0.0
    %354 = vmatprep.subr.mxu0 0.0
    %355 = vmatpush1.msra.mxu0 0.0
    %356 = vmatprep.subr.mxu0 0.0
    %357 = vmatpush1.msra.mxu0 0.0
    %358 = vmatprep.mubr.f32.mxu0 0.0
    %359 = vmatmul.mubr.f32.gmra.mrb[0].mxu0 %v158
    %v360 = vpop.f32.mrb[0].mxu0
    %v361 = vadd.f32 0.0, %v360
    %v362 = vpop.f32.mrb[0].mxu0
    %v363 = vadd.f32 0.0, %v362
    %364 = vmatprep.mubr.f32.mxu0 0.0
    %365 = vmatmul.mubr.f32.gmra.mrb[0].mxu0 %v161
    %v366 = vpop.f32.mrb[0].mxu0
    %v367 = vadd.f32 0.0, %v366
    %v368 = vpop.f32.mrb[0].mxu0
    %v369 = vadd.f32 0.0, %v368
    %370 = vmatprep.mubr.f32.mxu0 0.0
    %371 = vmatmul.mubr.f32.gmra.mrb[0].mxu0 %v164
    %v372 = vpop.f32.mrb[0].mxu0
    %v373 = vadd.f32 0.0, %v372
    %v374 = vpop.f32.mrb[0].mxu0
    %v375 = vadd.f32 0.0, %v374
    %376 = vmatprep.mubr.f32.mxu0 0.0
    %377 = vmatmul.mubr.f32.gmra.mrb[0].mxu0 %v167
    %v378 = vpop.f32.mrb[0].mxu0
    %v379 = vadd.f32 0.0, %v378
    %v380 = vpop.f32.mrb[0].mxu0
    %v381 = vadd.f32 0.0, %v380
    %382 = vmatprep.mubr.f32.mxu0 0.0
    %383 = vmatmul.mubr.f32.gmra.mrb[0].mxu0 %v170
    %v384 = vpop.f32.mrb[0].mxu0
    %v385 = vadd.f32 0.0, %v384
    %v386 = vpop.f32.mrb[0].mxu0
    %v387 = vadd.f32 0.0, %v386
    %388 = vmatprep.mubr.f32.mxu0 0.0
    %389 = vmatmul.mubr.f32.gmra.mrb[0].mxu0 %v173
    %v390 = vpop.f32.mrb[0].mxu0
    %v391 = vadd.f32 0.0, %v390
    %v392 = vpop.f32.mrb[0].mxu0
    %v393 = vadd.f32 0.0, %v392
    %394 = vmatprep.mubr.f32.mxu0 0.0
    %395 = vmatmul.mubr.f32.gmra.mrb[0].mxu0 %v176
    %v396 = vpop.f32.mrb[0].mxu0
    %v397 = vadd.f32 0.0, %v396
    %v398 = vpop.f32.mrb[0].mxu0
    %v399 = vadd.f32 0.0, %v398
    %400 = vmatprep.mubr.f32.mxu0 0.0
    %401 = vmatmul.mubr.f32.gmra.mrb[0].mxu0 %v179
    %v402 = vpop.f32.mrb[0].mxu0
    %v403 = vadd.f32 0.0, %v402
    %v404 = vpop.f32.mrb[0].mxu0
    %v405 = vadd.f32 0.0, %v404
    %406 = vdwg.mxu0
    %407 = vmatprep.subr.mxu0 %v81
    %408 = vmatpush1.msra.mxu0 %v80
    %409 = vmatprep.subr.mxu0 0.0
    %410 = vmatpush1.msra.mxu0 0.0
    %411 = vmatprep.subr.mxu0 0.0
    %412 = vmatpush1.msra.mxu0 0.0
    %413 = vmatprep.subr.mxu0 0.0
    %414 = vmatpush1.msra.mxu0 0.0
    %415 = vmatprep.subr.mxu0 0.0
    %416 = vmatpush1.msra.mxu0 0.0
    %417 = vmatprep.subr.mxu0 0.0
    %418 = vmatpush1.msra.mxu0 0.0
    %419 = vmatprep.subr.mxu0 0.0
    %420 = vmatpush1.msra.mxu0 0.0
    %421 = vmatprep.subr.mxu0 0.0
    %422 = vmatpush1.msra.mxu0 0.0
    %423 = vmatprep.subr.mxu0 0.0
    %424 = vmatpush1.msra.mxu0 0.0
    %425 = vmatprep.subr.mxu0 0.0
    %426 = vmatpush1.msra.mxu0 0.0
    %427 = vmatprep.subr.mxu0 0.0
    %428 = vmatpush1.msra.mxu0 0.0
    %429 = vmatprep.subr.mxu0 0.0
    %430 = vmatpush1.msra.mxu0 0.0
    %431 = vmatprep.subr.mxu0 0.0
    %432 = vmatpush1.msra.mxu0 0.0
    %433 = vmatprep.subr.mxu0 0.0
    %434 = vmatpush1.msra.mxu0 0.0
    %435 = vmatprep.subr.mxu0 0.0
    %436 = vmatpush1.msra.mxu0 0.0
    %437 = vmatprep.subr.mxu0 0.0
    %438 = vmatpush1.msra.mxu0 0.0
    %439 = vmatprep.subr.mxu0 0.0
    %440 = vmatpush1.msra.mxu0 0.0
    %441 = vmatprep.subr.mxu0 0.0
    %442 = vmatpush1.msra.mxu0 0.0
    %443 = vmatprep.subr.mxu0 0.0
    %444 = vmatpush1.msra.mxu0 0.0
    %445 = vmatprep.subr.mxu0 0.0
    %446 = vmatpush1.msra.mxu0 0.0
    %447 = vmatprep.subr.mxu0 0.0
    %448 = vmatpush1.msra.mxu0 0.0
    %449 = vmatprep.subr.mxu0 0.0
    %450 = vmatpush1.msra.mxu0 0.0
    %451 = vmatprep.subr.mxu0 0.0
    %452 = vmatpush1.msra.mxu0 0.0
    %453 = vmatprep.subr.mxu0 0.0
    %454 = vmatpush1.msra.mxu0 0.0
    %455 = vmatprep.subr.mxu0 0.0
    %456 = vmatpush1.msra.mxu0 0.0
    %457 = vmatprep.subr.mxu0 0.0
    %458 = vmatpush1.msra.mxu0 0.0
    %459 = vmatprep.subr.mxu0 0.0
    %460 = vmatpush1.msra.mxu0 0.0
    %461 = vmatprep.subr.mxu0 0.0
    %462 = vmatpush1.msra.mxu0 0.0
    %463 = vmatprep.subr.mxu0 0.0
    %464 = vmatpush1.msra.mxu0 0.0
    %465 = vmatprep.subr.mxu0 0.0
    %466 = vmatpush1.msra.mxu0 0.0
    %467 = vmatprep.subr.mxu0 0.0
    %468 = vmatpush1.msra.mxu0 0.0
    %469 = vmatprep.subr.mxu0 0.0
    %470 = vmatpush1.msra.mxu0 0.0
    %471 = vmatprep.mubr.f32.mxu0 0.0
    %472 = vmatmul.mubr.f32.gmra.mrb[0].mxu0 %v158
    %v473 = vpop.f32.mrb[0].mxu0
    %v474 = vadd.f32 0.0, %v473
    %v475 = vpop.f32.mrb[0].mxu0
    %v476 = vadd.f32 0.0, %v475
    %477 = vmatprep.mubr.f32.mxu0 0.0
    %478 = vmatmul.mubr.f32.gmra.mrb[0].mxu0 %v161
    %v479 = vpop.f32.mrb[0].mxu0
    %v480 = vadd.f32 0.0, %v479
    %v481 = vpop.f32.mrb[0].mxu0
    %v482 = vadd.f32 0.0, %v481
    %483 = vmatprep.mubr.f32.mxu0 0.0
    %484 = vmatmul.mubr.f32.gmra.mrb[0].mxu0 %v164
    %v485 = vpop.f32.mrb[0].mxu0
    %v486 = vadd.f32 0.0, %v485
    %v487 = vpop.f32.mrb[0].mxu0
    %v488 = vadd.f32 0.0, %v487
    %489 = vmatprep.mubr.f32.mxu0 0.0
    %490 = vmatmul.mubr.f32.gmra.mrb[0].mxu0 %v167
    %v491 = vpop.f32.mrb[0].mxu0
    %v492 = vadd.f32 0.0, %v491
    %v493 = vpop.f32.mrb[0].mxu0
    %v494 = vadd.f32 0.0, %v493
    %495 = vmatprep.mubr.f32.mxu0 0.0
    %496 = vmatmul.mubr.f32.gmra.mrb[0].mxu0 %v170
    %v497 = vpop.f32.mrb[0].mxu0
    %v498 = vadd.f32 0.0, %v497
    %v499 = vpop.f32.mrb[0].mxu0
    %v500 = vadd.f32 0.0, %v499
    %501 = vmatprep.mubr.f32.mxu0 0.0
    %502 = vmatmul.mubr.f32.gmra.mrb[0].mxu0 %v173
    %v503 = vpop.f32.mrb[0].mxu0
    %v504 = vadd.f32 0.0, %v503
    %v505 = vpop.f32.mrb[0].mxu0
    %v506 = vadd.f32 0.0, %v505
    %507 = vmatprep.mubr.f32.mxu0 0.0
    %508 = vmatmul.mubr.f32.gmra.mrb[0].mxu0 %v176
    %v509 = vpop.f32.mrb[0].mxu0
    %v510 = vadd.f32 0.0, %v509
    %v511 = vpop.f32.mrb[0].mxu0
    %v512 = vadd.f32 0.0, %v511
    %513 = vmatprep.mubr.f32.mxu0 0.0
    %514 = vmatmul.mubr.f32.gmra.mrb[0].mxu0 %v179
    %v515 = vpop.f32.mrb[0].mxu0
    %v516 = vadd.f32 0.0, %v515
    %v517 = vpop.f32.mrb[0].mxu0
    %v518 = vadd.f32 0.0, %v517
    %519 = vdwg.mxu0
    %520 = vmatprep.subr.mxu0 %v83
    %521 = vmatpush1.msra.mxu0 %v82
    %522 = vmatprep.subr.mxu0 0.0
    %523 = vmatpush1.msra.mxu0 0.0
    %524 = vmatprep.subr.mxu0 0.0
    %525 = vmatpush1.msra.mxu0 0.0
    %526 = vmatprep.subr.mxu0 0.0
    %527 = vmatpush1.msra.mxu0 0.0
    %528 = vmatprep.subr.mxu0 0.0
    %529 = vmatpush1.msra.mxu0 0.0
    %530 = vmatprep.subr.mxu0 0.0
    %531 = vmatpush1.msra.mxu0 0.0
    %532 = vmatprep.subr.mxu0 0.0
    %533 = vmatpush1.msra.mxu0 0.0
    %534 = vmatprep.subr.mxu0 0.0
    %535 = vmatpush1.msra.mxu0 0.0
    %536 = vmatprep.subr.mxu0 0.0
    %537 = vmatpush1.msra.mxu0 0.0
    %538 = vmatprep.subr.mxu0 0.0
    %539 = vmatpush1.msra.mxu0 0.0
    %540 = vmatprep.subr.mxu0 0.0
    %541 = vmatpush1.msra.mxu0 0.0
    %542 = vmatprep.subr.mxu0 0.0
    %543 = vmatpush1.msra.mxu0 0.0
    %544 = vmatprep.subr.mxu0 0.0
    %545 = vmatpush1.msra.mxu0 0.0
    %546 = vmatprep.subr.mxu0 0.0
    %547 = vmatpush1.msra.mxu0 0.0
    %548 = vmatprep.subr.mxu0 0.0
    %549 = vmatpush1.msra.mxu0 0.0
    %550 = vmatprep.subr.mxu0 0.0
    %551 = vmatpush1.msra.mxu0 0.0
    %552 = vmatprep.subr.mxu0 0.0
    %553 = vmatpush1.msra.mxu0 0.0
    %554 = vmatprep.subr.mxu0 0.0
    %555 = vmatpush1.msra.mxu0 0.0
    %556 = vmatprep.subr.mxu0 0.0
    %557 = vmatpush1.msra.mxu0 0.0
    %558 = vmatprep.subr.mxu0 0.0
    %559 = vmatpush1.msra.mxu0 0.0
    %560 = vmatprep.subr.mxu0 0.0
    %561 = vmatpush1.msra.mxu0 0.0
    %562 = vmatprep.subr.mxu0 0.0
    %563 = vmatpush1.msra.mxu0 0.0
    %564 = vmatprep.subr.mxu0 0.0
    %565 = vmatpush1.msra.mxu0 0.0
    %566 = vmatprep.subr.mxu0 0.0
    %567 = vmatpush1.msra.mxu0 0.0
    %568 = vmatprep.subr.mxu0 0.0
    %569 = vmatpush1.msra.mxu0 0.0
    %570 = vmatprep.subr.mxu0 0.0
    %571 = vmatpush1.msra.mxu0 0.0
    %572 = vmatprep.subr.mxu0 0.0
    %573 = vmatpush1.msra.mxu0 0.0
    %574 = vmatprep.subr.mxu0 0.0
    %575 = vmatpush1.msra.mxu0 0.0
    %576 = vmatprep.subr.mxu0 0.0
    %577 = vmatpush1.msra.mxu0 0.0
    %578 = vmatprep.subr.mxu0 0.0
    %579 = vmatpush1.msra.mxu0 0.0
    %580 = vmatprep.subr.mxu0 0.0
    %581 = vmatpush1.msra.mxu0 0.0
    %582 = vmatprep.subr.mxu0 0.0
    %583 = vmatpush1.msra.mxu0 0.0
    %584 = vmatprep.mubr.f32.mxu0 0.0
    %585 = vmatmul.mubr.f32.gmra.mrb[0].mxu0 %v158
    %v586 = vpop.f32.mrb[0].mxu0
    %v587 = vadd.f32 0.0, %v586
    %v588 = vpop.f32.mrb[0].mxu0
    %v589 = vadd.f32 0.0, %v588
    %590 = vmatprep.mubr.f32.mxu0 0.0
    %591 = vmatmul.mubr.f32.gmra.mrb[0].mxu0 %v161
    %v592 = vpop.f32.mrb[0].mxu0
    %v593 = vadd.f32 0.0, %v592
    %v594 = vpop.f32.mrb[0].mxu0
    %v595 = vadd.f32 0.0, %v594
    %596 = vmatprep.mubr.f32.mxu0 0.0
    %597 = vmatmul.mubr.f32.gmra.mrb[0].mxu0 %v164
    %v598 = vpop.f32.mrb[0].mxu0
    %v599 = vadd.f32 0.0, %v598
    %v600 = vpop.f32.mrb[0].mxu0
    %v601 = vadd.f32 0.0, %v600
    %602 = vmatprep.mubr.f32.mxu0 0.0
    %603 = vmatmul.mubr.f32.gmra.mrb[0].mxu0 %v167
    %v604 = vpop.f32.mrb[0].mxu0
    %v605 = vadd.f32 0.0, %v604
    %v606 = vpop.f32.mrb[0].mxu0
    %v607 = vadd.f32 0.0, %v606
    %608 = vmatprep.mubr.f32.mxu0 0.0
    %609 = vmatmul.mubr.f32.gmra.mrb[0].mxu0 %v170
    %v610 = vpop.f32.mrb[0].mxu0
    %v611 = vadd.f32 0.0, %v610
    %v612 = vpop.f32.mrb[0].mxu0
    %v613 = vadd.f32 0.0, %v612
    %614 = vmatprep.mubr.f32.mxu0 0.0
    %615 = vmatmul.mubr.f32.gmra.mrb[0].mxu0 %v173
    %v616 = vpop.f32.mrb[0].mxu0
    %v617 = vadd.f32 0.0, %v616
    %v618 = vpop.f32.mrb[0].mxu0
    %v619 = vadd.f32 0.0, %v618
    %620 = vmatprep.mubr.f32.mxu0 0.0
    %621 = vmatmul.mubr.f32.gmra.mrb[0].mxu0 %v176
    %v622 = vpop.f32.mrb[0].mxu0
    %v623 = vadd.f32 0.0, %v622
    %v624 = vpop.f32.mrb[0].mxu0
    %v625 = vadd.f32 0.0, %v624
    %626 = vmatprep.mubr.f32.mxu0 0.0
    %627 = vmatmul.mubr.f32.gmra.mrb[0].mxu0 %v179
    %v628 = vpop.f32.mrb[0].mxu0
    %v629 = vadd.f32 0.0, %v628
    %v630 = vpop.f32.mrb[0].mxu0
    %v631 = vadd.f32 0.0, %v630
    %632 = vdwg.mxu0
    %633 = vmatprep.subr.mxu0 %v85
    %634 = vmatpush1.msra.mxu0 %v84
    %635 = vmatprep.subr.mxu0 0.0
    %636 = vmatpush1.msra.mxu0 0.0
    %637 = vmatprep.subr.mxu0 0.0
    %638 = vmatpush1.msra.mxu0 0.0
    %639 = vmatprep.subr.mxu0 0.0
    %640 = vmatpush1.msra.mxu0 0.0
    %641 = vmatprep.subr.mxu0 0.0
    %642 = vmatpush1.msra.mxu0 0.0
    %643 = vmatprep.subr.mxu0 0.0
    %644 = vmatpush1.msra.mxu0 0.0
    %645 = vmatprep.subr.mxu0 0.0
    %646 = vmatpush1.msra.mxu0 0.0
    %647 = vmatprep.subr.mxu0 0.0
    %648 = vmatpush1.msra.mxu0 0.0
    %649 = vmatprep.subr.mxu0 0.0
    %650 = vmatpush1.msra.mxu0 0.0
    %651 = vmatprep.subr.mxu0 0.0
    %652 = vmatpush1.msra.mxu0 0.0
    %653 = vmatprep.subr.mxu0 0.0
    %654 = vmatpush1.msra.mxu0 0.0
    %655 = vmatprep.subr.mxu0 0.0
    %656 = vmatpush1.msra.mxu0 0.0
    %657 = vmatprep.subr.mxu0 0.0
    %658 = vmatpush1.msra.mxu0 0.0
    %659 = vmatprep.subr.mxu0 0.0
    %660 = vmatpush1.msra.mxu0 0.0
    %661 = vmatprep.subr.mxu0 0.0
    %662 = vmatpush1.msra.mxu0 0.0
    %663 = vmatprep.subr.mxu0 0.0
    %664 = vmatpush1.msra.mxu0 0.0
    %665 = vmatprep.subr.mxu0 0.0
    %666 = vmatpush1.msra.mxu0 0.0
    %667 = vmatprep.subr.mxu0 0.0
    %668 = vmatpush1.msra.mxu0 0.0
    %669 = vmatprep.subr.mxu0 0.0
    %670 = vmatpush1.msra.mxu0 0.0
    %671 = vmatprep.subr.mxu0 0.0
    %672 = vmatpush1.msra.mxu0 0.0
    %673 = vmatprep.subr.mxu0 0.0
    %674 = vmatpush1.msra.mxu0 0.0
    %675 = vmatprep.subr.mxu0 0.0
    %676 = vmatpush1.msra.mxu0 0.0
    %677 = vmatprep.subr.mxu0 0.0
    %678 = vmatpush1.msra.mxu0 0.0
    %679 = vmatprep.subr.mxu0 0.0
    %680 = vmatpush1.msra.mxu0 0.0
    %681 = vmatprep.subr.mxu0 0.0
    %682 = vmatpush1.msra.mxu0 0.0
    %683 = vmatprep.subr.mxu0 0.0
    %684 = vmatpush1.msra.mxu0 0.0
    %685 = vmatprep.subr.mxu0 0.0
    %686 = vmatpush1.msra.mxu0 0.0
    %687 = vmatprep.subr.mxu0 0.0
    %688 = vmatpush1.msra.mxu0 0.0
    %689 = vmatprep.subr.mxu0 0.0
    %690 = vmatpush1.msra.mxu0 0.0
    %691 = vmatprep.subr.mxu0 0.0
    %692 = vmatpush1.msra.mxu0 0.0
    %693 = vmatprep.subr.mxu0 0.0
    %694 = vmatpush1.msra.mxu0 0.0
    %695 = vmatprep.subr.mxu0 0.0
    %696 = vmatpush1.msra.mxu0 0.0
    %697 = vmatprep.mubr.f32.mxu0 0.0
    %698 = vmatmul.mubr.f32.gmra.mrb[0].mxu0 %v158
    %v699 = vpop.f32.mrb[0].mxu0
    %v700 = vadd.f32 0.0, %v699
    %v701 = vpop.f32.mrb[0].mxu0
    %v702 = vadd.f32 0.0, %v701
    %703 = vmatprep.mubr.f32.mxu0 0.0
    %704 = vmatmul.mubr.f32.gmra.mrb[0].mxu0 %v161
    %v705 = vpop.f32.mrb[0].mxu0
    %v706 = vadd.f32 0.0, %v705
    %v707 = vpop.f32.mrb[0].mxu0
    %v708 = vadd.f32 0.0, %v707
    %709 = vmatprep.mubr.f32.mxu0 0.0
    %710 = vmatmul.mubr.f32.gmra.mrb[0].mxu0 %v164
    %v711 = vpop.f32.mrb[0].mxu0
    %v712 = vadd.f32 0.0, %v711
    %v713 = vpop.f32.mrb[0].mxu0
    %v714 = vadd.f32 0.0, %v713
    %715 = vmatprep.mubr.f32.mxu0 0.0
    %716 = vmatmul.mubr.f32.gmra.mrb[0].mxu0 %v167
    %v717 = vpop.f32.mrb[0].mxu0
    %v718 = vadd.f32 0.0, %v717
    %v719 = vpop.f32.mrb[0].mxu0
    %v720 = vadd.f32 0.0, %v719
    %721 = vmatprep.mubr.f32.mxu0 0.0
    %722 = vmatmul.mubr.f32.gmra.mrb[0].mxu0 %v170
    %v723 = vpop.f32.mrb[0].mxu0
    %v724 = vadd.f32 0.0, %v723
    %v725 = vpop.f32.mrb[0].mxu0
    %v726 = vadd.f32 0.0, %v725
    %727 = vmatprep.mubr.f32.mxu0 0.0
    %728 = vmatmul.mubr.f32.gmra.mrb[0].mxu0 %v173
    %v729 = vpop.f32.mrb[0].mxu0
    %v730 = vadd.f32 0.0, %v729
    %v731 = vpop.f32.mrb[0].mxu0
    %v732 = vadd.f32 0.0, %v731
    %733 = vmatprep.mubr.f32.mxu0 0.0
    %734 = vmatmul.mubr.f32.gmra.mrb[0].mxu0 %v176
    %v735 = vpop.f32.mrb[0].mxu0
    %v736 = vadd.f32 0.0, %v735
    %v737 = vpop.f32.mrb[0].mxu0
    %v738 = vadd.f32 0.0, %v737
    %739 = vmatprep.mubr.f32.mxu0 0.0
    %740 = vmatmul.mubr.f32.gmra.mrb[0].mxu0 %v179
    %v741 = vpop.f32.mrb[0].mxu0
    %v742 = vadd.f32 0.0, %v741
    %v743 = vpop.f32.mrb[0].mxu0
    %v744 = vadd.f32 0.0, %v743
    %745 = vdwg.mxu0
    %746 = vmatprep.subr.mxu0 %v87
    %747 = vmatpush1.msra.mxu0 %v86
    %748 = vmatprep.subr.mxu0 0.0
    %749 = vmatpush1.msra.mxu0 0.0
    %750 = vmatprep.subr.mxu0 0.0
    %751 = vmatpush1.msra.mxu0 0.0
    %752 = vmatprep.subr.mxu0 0.0
    %753 = vmatpush1.msra.mxu0 0.0
    %754 = vmatprep.subr.mxu0 0.0
    %755 = vmatpush1.msra.mxu0 0.0
    %756 = vmatprep.subr.mxu0 0.0
    %757 = vmatpush1.msra.mxu0 0.0
    %758 = vmatprep.subr.mxu0 0.0
    %759 = vmatpush1.msra.mxu0 0.0
    %760 = vmatprep.subr.mxu0 0.0
    %761 = vmatpush1.msra.mxu0 0.0
    %762 = vmatprep.subr.mxu0 0.0
    %763 = vmatpush1.msra.mxu0 0.0
    %764 = vmatprep.subr.mxu0 0.0
    %765 = vmatpush1.msra.mxu0 0.0
    %766 = vmatprep.subr.mxu0 0.0
    %767 = vmatpush1.msra.mxu0 0.0
    %768 = vmatprep.subr.mxu0 0.0
    %769 = vmatpush1.msra.mxu0 0.0
    %770 = vmatprep.subr.mxu0 0.0
    %771 = vmatpush1.msra.mxu0 0.0
    %772 = vmatprep.subr.mxu0 0.0
    %773 = vmatpush1.msra.mxu0 0.0
    %774 = vmatprep.subr.mxu0 0.0
    %775 = vmatpush1.msra.mxu0 0.0
    %776 = vmatprep.subr.mxu0 0.0
    %777 = vmatpush1.msra.mxu0 0.0
    %778 = vmatprep.subr.mxu0 0.0
    %779 = vmatpush1.msra.mxu0 0.0
    %780 = vmatprep.subr.mxu0 0.0
    %781 = vmatpush1.msra.mxu0 0.0
    %782 = vmatprep.subr.mxu0 0.0
    %783 = vmatpush1.msra.mxu0 0.0
    %784 = vmatprep.subr.mxu0 0.0
    %785 = vmatpush1.msra.mxu0 0.0
    %786 = vmatprep.subr.mxu0 0.0
    %787 = vmatpush1.msra.mxu0 0.0
    %788 = vmatprep.subr.mxu0 0.0
    %789 = vmatpush1.msra.mxu0 0.0
    %790 = vmatprep.subr.mxu0 0.0
    %791 = vmatpush1.msra.mxu0 0.0
    %792 = vmatprep.subr.mxu0 0.0
    %793 = vmatpush1.msra.mxu0 0.0
    %794 = vmatprep.subr.mxu0 0.0
    %795 = vmatpush1.msra.mxu0 0.0
    %796 = vmatprep.subr.mxu0 0.0
    %797 = vmatpush1.msra.mxu0 0.0
    %798 = vmatprep.subr.mxu0 0.0
    %799 = vmatpush1.msra.mxu0 0.0
    %800 = vmatprep.subr.mxu0 0.0
    %801 = vmatpush1.msra.mxu0 0.0
    %802 = vmatprep.subr.mxu0 0.0
    %803 = vmatpush1.msra.mxu0 0.0
    %804 = vmatprep.subr.mxu0 0.0
    %805 = vmatpush1.msra.mxu0 0.0
    %806 = vmatprep.subr.mxu0 0.0
    %807 = vmatpush1.msra.mxu0 0.0
    %808 = vmatprep.subr.mxu0 0.0
    %809 = vmatpush1.msra.mxu0 0.0
    %810 = vmatprep.mubr.f32.mxu0 0.0
    %811 = vmatmul.mubr.f32.gmra.mrb[0].mxu0 %v158
    %v812 = vpop.f32.mrb[0].mxu0
    %v813 = vadd.f32 0.0, %v812
    %v814 = vpop.f32.mrb[0].mxu0
    %v815 = vadd.f32 0.0, %v814
    %816 = vmatprep.mubr.f32.mxu0 0.0
    %817 = vmatmul.mubr.f32.gmra.mrb[0].mxu0 %v161
    %v818 = vpop.f32.mrb[0].mxu0
    %v819 = vadd.f32 0.0, %v818
    %v820 = vpop.f32.mrb[0].mxu0
    %v821 = vadd.f32 0.0, %v820
    %822 = vmatprep.mubr.f32.mxu0 0.0
    %823 = vmatmul.mubr.f32.gmra.mrb[0].mxu0 %v164
    %v824 = vpop.f32.mrb[0].mxu0
    %v825 = vadd.f32 0.0, %v824
    %v826 = vpop.f32.mrb[0].mxu0
    %v827 = vadd.f32 0.0, %v826
    %828 = vmatprep.mubr.f32.mxu0 0.0
    %829 = vmatmul.mubr.f32.gmra.mrb[0].mxu0 %v167
    %v830 = vpop.f32.mrb[0].mxu0
    %v831 = vadd.f32 0.0, %v830
    %v832 = vpop.f32.mrb[0].mxu0
    %v833 = vadd.f32 0.0, %v832
    %834 = vmatprep.mubr.f32.mxu0 0.0
    %835 = vmatmul.mubr.f32.gmra.mrb[0].mxu0 %v170
    %v836 = vpop.f32.mrb[0].mxu0
    %v837 = vadd.f32 0.0, %v836
    %v838 = vpop.f32.mrb[0].mxu0
    %v839 = vadd.f32 0.0, %v838
    %840 = vmatprep.mubr.f32.mxu0 0.0
    %841 = vmatmul.mubr.f32.gmra.mrb[0].mxu0 %v173
    %v842 = vpop.f32.mrb[0].mxu0
    %v843 = vadd.f32 0.0, %v842
    %v844 = vpop.f32.mrb[0].mxu0
    %v845 = vadd.f32 0.0, %v844
    %846 = vmatprep.mubr.f32.mxu0 0.0
    %847 = vmatmul.mubr.f32.gmra.mrb[0].mxu0 %v176
    %v848 = vpop.f32.mrb[0].mxu0
    %v849 = vadd.f32 0.0, %v848
    %v850 = vpop.f32.mrb[0].mxu0
    %v851 = vadd.f32 0.0, %v850
    %852 = vmatprep.mubr.f32.mxu0 0.0
    %853 = vmatmul.mubr.f32.gmra.mrb[0].mxu0 %v179
    %v854 = vpop.f32.mrb[0].mxu0
    %v855 = vadd.f32 0.0, %v854
    %v856 = vpop.f32.mrb[0].mxu0
    %v857 = vadd.f32 0.0, %v856
    %858 = vdwg.mxu0
    %859 = vmatprep.subr.mxu0 %v89
    %860 = vmatpush1.msra.mxu0 %v88
    %861 = vmatprep.subr.mxu0 0.0
    %862 = vmatpush1.msra.mxu0 0.0
    %863 = vmatprep.subr.mxu0 0.0
    %864 = vmatpush1.msra.mxu0 0.0
    %865 = vmatprep.subr.mxu0 0.0
    %866 = vmatpush1.msra.mxu0 0.0
    %867 = vmatprep.subr.mxu0 0.0
    %868 = vmatpush1.msra.mxu0 0.0
    %869 = vmatprep.subr.mxu0 0.0
    %870 = vmatpush1.msra.mxu0 0.0
    %871 = vmatprep.subr.mxu0 0.0
    %872 = vmatpush1.msra.mxu0 0.0
    %873 = vmatprep.subr.mxu0 0.0
    %874 = vmatpush1.msra.mxu0 0.0
    %875 = vmatprep.subr.mxu0 0.0
    %876 = vmatpush1.msra.mxu0 0.0
    %877 = vmatprep.subr.mxu0 0.0
    %878 = vmatpush1.msra.mxu0 0.0
    %879 = vmatprep.subr.mxu0 0.0
    %880 = vmatpush1.msra.mxu0 0.0
    %881 = vmatprep.subr.mxu0 0.0
    %882 = vmatpush1.msra.mxu0 0.0
    %883 = vmatprep.subr.mxu0 0.0
    %884 = vmatpush1.msra.mxu0 0.0
    %885 = vmatprep.subr.mxu0 0.0
    %886 = vmatpush1.msra.mxu0 0.0
    %887 = vmatprep.subr.mxu0 0.0
    %888 = vmatpush1.msra.mxu0 0.0
    %889 = vmatprep.subr.mxu0 0.0
    %890 = vmatpush1.msra.mxu0 0.0
    %891 = vmatprep.subr.mxu0 0.0
    %892 = vmatpush1.msra.mxu0 0.0
    %893 = vmatprep.subr.mxu0 0.0
    %894 = vmatpush1.msra.mxu0 0.0
    %895 = vmatprep.subr.mxu0 0.0
    %896 = vmatpush1.msra.mxu0 0.0
    %897 = vmatprep.subr.mxu0 0.0
    %898 = vmatpush1.msra.mxu0 0.0
    %899 = vmatprep.subr.mxu0 0.0
    %900 = vmatpush1.msra.mxu0 0.0
    %901 = vmatprep.subr.mxu0 0.0
    %902 = vmatpush1.msra.mxu0 0.0
    %903 = vmatprep.subr.mxu0 0.0
    %904 = vmatpush1.msra.mxu0 0.0
    %905 = vmatprep.subr.mxu0 0.0
    %906 = vmatpush1.msra.mxu0 0.0
    %907 = vmatprep.subr.mxu0 0.0
    %908 = vmatpush1.msra.mxu0 0.0
    %909 = vmatprep.subr.mxu0 0.0
    %910 = vmatpush1.msra.mxu0 0.0
    %911 = vmatprep.subr.mxu0 0.0
    %912 = vmatpush1.msra.mxu0 0.0
    %913 = vmatprep.subr.mxu0 0.0
    %914 = vmatpush1.msra.mxu0 0.0
    %915 = vmatprep.subr.mxu0 0.0
    %916 = vmatpush1.msra.mxu0 0.0
    %917 = vmatprep.subr.mxu0 0.0
    %918 = vmatpush1.msra.mxu0 0.0
    %919 = vmatprep.subr.mxu0 0.0
    %920 = vmatpush1.msra.mxu0 0.0
    %921 = vmatprep.subr.mxu0 0.0
    %922 = vmatpush1.msra.mxu0 0.0
    %923 = vmatprep.mubr.f32.mxu0 0.0
    %924 = vmatmul.mubr.f32.gmra.mrb[0].mxu0 %v158
    %v925 = vpop.f32.mrb[0].mxu0
    %v926 = vadd.f32 0.0, %v925
    %v927 = vpop.f32.mrb[0].mxu0
    %v928 = vadd.f32 0.0, %v927
    %929 = vmatprep.mubr.f32.mxu0 0.0
    %930 = vmatmul.mubr.f32.gmra.mrb[0].mxu0 %v161
    %v931 = vpop.f32.mrb[0].mxu0
    %v932 = vadd.f32 0.0, %v931
    %v933 = vpop.f32.mrb[0].mxu0
    %v934 = vadd.f32 0.0, %v933
    %935 = vmatprep.mubr.f32.mxu0 0.0
    %936 = vmatmul.mubr.f32.gmra.mrb[0].mxu0 %v164
    %v937 = vpop.f32.mrb[0].mxu0
    %v938 = vadd.f32 0.0, %v937
    %v939 = vpop.f32.mrb[0].mxu0
    %v940 = vadd.f32 0.0, %v939
    %941 = vmatprep.mubr.f32.mxu0 0.0
    %942 = vmatmul.mubr.f32.gmra.mrb[0].mxu0 %v167
    %v943 = vpop.f32.mrb[0].mxu0
    %v944 = vadd.f32 0.0, %v943
    %v945 = vpop.f32.mrb[0].mxu0
    %v946 = vadd.f32 0.0, %v945
    %947 = vmatprep.mubr.f32.mxu0 0.0
    %948 = vmatmul.mubr.f32.gmra.mrb[0].mxu0 %v170
    %v949 = vpop.f32.mrb[0].mxu0
    %v950 = vadd.f32 0.0, %v949
    %v951 = vpop.f32.mrb[0].mxu0
    %v952 = vadd.f32 0.0, %v951
    %953 = vmatprep.mubr.f32.mxu0 0.0
    %954 = vmatmul.mubr.f32.gmra.mrb[0].mxu0 %v173
    %v955 = vpop.f32.mrb[0].mxu0
    %v956 = vadd.f32 0.0, %v955
    %v957 = vpop.f32.mrb[0].mxu0
    %v958 = vadd.f32 0.0, %v957
    %959 = vmatprep.mubr.f32.mxu0 0.0
    %960 = vmatmul.mubr.f32.gmra.mrb[0].mxu0 %v176
    %v961 = vpop.f32.mrb[0].mxu0
    %v962 = vadd.f32 0.0, %v961
    %v963 = vpop.f32.mrb[0].mxu0
    %v964 = vadd.f32 0.0, %v963
    %965 = vmatprep.mubr.f32.mxu0 0.0
    %966 = vmatmul.mubr.f32.gmra.mrb[0].mxu0 %v179
    %v967 = vpop.f32.mrb[0].mxu0
    %v968 = vadd.f32 0.0, %v967
    %v969 = vpop.f32.mrb[0].mxu0
    %v970 = vadd.f32 0.0, %v969
    %971 = vdwg.mxu0
    %972 = vmatprep.subr.mxu0 %v91
    %973 = vmatpush1.msra.mxu0 %v90
    %974 = vmatprep.subr.mxu0 0.0
    %975 = vmatpush1.msra.mxu0 0.0
    %976 = vmatprep.subr.mxu0 0.0
    %977 = vmatpush1.msra.mxu0 0.0
    %978 = vmatprep.subr.mxu0 0.0
    %979 = vmatpush1.msra.mxu0 0.0
    %980 = vmatprep.subr.mxu0 0.0
    %981 = vmatpush1.msra.mxu0 0.0
    %982 = vmatprep.subr.mxu0 0.0
    %983 = vmatpush1.msra.mxu0 0.0
    %984 = vmatprep.subr.mxu0 0.0
    %985 = vmatpush1.msra.mxu0 0.0
    %986 = vmatprep.subr.mxu0 0.0
    %987 = vmatpush1.msra.mxu0 0.0
    %988 = vmatprep.subr.mxu0 0.0
    %989 = vmatpush1.msra.mxu0 0.0
    %990 = vmatprep.subr.mxu0 0.0
    %991 = vmatpush1.msra.mxu0 0.0
    %992 = vmatprep.subr.mxu0 0.0
    %993 = vmatpush1.msra.mxu0 0.0
    %994 = vmatprep.subr.mxu0 0.0
    %995 = vmatpush1.msra.mxu0 0.0
    %996 = vmatprep.subr.mxu0 0.0
    %997 = vmatpush1.msra.mxu0 0.0
    %998 = vmatprep.subr.mxu0 0.0
    %999 = vmatpush1.msra.mxu0 0.0
    %1000 = vmatprep.subr.mxu0 0.0
    %1001 = vmatpush1.msra.mxu0 0.0
    %1002 = vmatprep.subr.mxu0 0.0
    %1003 = vmatpush1.msra.mxu0 0.0
    %1004 = vmatprep.subr.mxu0 0.0
    %1005 = vmatpush1.msra.mxu0 0.0
    %1006 = vmatprep.subr.mxu0 0.0
    %1007 = vmatpush1.msra.mxu0 0.0
    %1008 = vmatprep.subr.mxu0 0.0
    %1009 = vmatpush1.msra.mxu0 0.0
    %1010 = vmatprep.subr.mxu0 0.0
    %1011 = vmatpush1.msra.mxu0 0.0
    %1012 = vmatprep.subr.mxu0 0.0
    %1013 = vmatpush1.msra.mxu0 0.0
    %1014 = vmatprep.subr.mxu0 0.0
    %1015 = vmatpush1.msra.mxu0 0.0
    %1016 = vmatprep.subr.mxu0 0.0
    %1017 = vmatpush1.msra.mxu0 0.0
    %1018 = vmatprep.subr.mxu0 0.0
    %1019 = vmatpush1.msra.mxu0 0.0
    %1020 = vmatprep.subr.mxu0 0.0
    %1021 = vmatpush1.msra.mxu0 0.0
    %1022 = vmatprep.subr.mxu0 0.0
    %1023 = vmatpush1.msra.mxu0 0.0
    %1024 = vmatprep.subr.mxu0 0.0
    %1025 = vmatpush1.msra.mxu0 0.0
    %1026 = vmatprep.subr.mxu0 0.0
    %1027 = vmatpush1.msra.mxu0 0.0
    %1028 = vmatprep.subr.mxu0 0.0
    %1029 = vmatpush1.msra.mxu0 0.0
    %1030 = vmatprep.subr.mxu0 0.0
    %1031 = vmatpush1.msra.mxu0 0.0
    %1032 = vmatprep.subr.mxu0 0.0
    %1033 = vmatpush1.msra.mxu0 0.0
    %1034 = vmatprep.subr.mxu0 0.0
    %1035 = vmatpush1.msra.mxu0 0.0
    %1036 = vmatprep.mubr.f32.mxu0 0.0
    %1037 = vmatmul.mubr.f32.gmra.mrb[0].mxu0 %v158
    %v1038 = vpop.f32.mrb[0].mxu0
    %v1039 = vadd.f32 0.0, %v1038
    %v1040 = vpop.f32.mrb[0].mxu0
    %v1041 = vadd.f32 0.0, %v1040
    %1042 = vmatprep.mubr.f32.mxu0 0.0
    %1043 = vmatmul.mubr.f32.gmra.mrb[0].mxu0 %v161
    %v1044 = vpop.f32.mrb[0].mxu0
    %v1045 = vadd.f32 0.0, %v1044
    %v1046 = vpop.f32.mrb[0].mxu0
    %v1047 = vadd.f32 0.0, %v1046
    %1048 = vmatprep.mubr.f32.mxu0 0.0
    %1049 = vmatmul.mubr.f32.gmra.mrb[0].mxu0 %v164
    %v1050 = vpop.f32.mrb[0].mxu0
    %v1051 = vadd.f32 0.0, %v1050
    %v1052 = vpop.f32.mrb[0].mxu0
    %v1053 = vadd.f32 0.0, %v1052
    %1054 = vmatprep.mubr.f32.mxu0 0.0
    %1055 = vmatmul.mubr.f32.gmra.mrb[0].mxu0 %v167
    %v1056 = vpop.f32.mrb[0].mxu0
    %v1057 = vadd.f32 0.0, %v1056
    %v1058 = vpop.f32.mrb[0].mxu0
    %v1059 = vadd.f32 0.0, %v1058
    %1060 = vmatprep.mubr.f32.mxu0 0.0
    %1061 = vmatmul.mubr.f32.gmra.mrb[0].mxu0 %v170
    %v1062 = vpop.f32.mrb[0].mxu0
    %v1063 = vadd.f32 0.0, %v1062
    %v1064 = vpop.f32.mrb[0].mxu0
    %v1065 = vadd.f32 0.0, %v1064
    %1066 = vmatprep.mubr.f32.mxu0 0.0
    %1067 = vmatmul.mubr.f32.gmra.mrb[0].mxu0 %v173
    %v1068 = vpop.f32.mrb[0].mxu0
    %v1069 = vadd.f32 0.0, %v1068
    %v1070 = vpop.f32.mrb[0].mxu0
    %v1071 = vadd.f32 0.0, %v1070
    %1072 = vmatprep.mubr.f32.mxu0 0.0
    %1073 = vmatmul.mubr.f32.gmra.mrb[0].mxu0 %v176
    %v1074 = vpop.f32.mrb[0].mxu0
    %v1075 = vadd.f32 0.0, %v1074
    %v1076 = vpop.f32.mrb[0].mxu0
    %v1077 = vadd.f32 0.0, %v1076
    %1078 = vmatprep.mubr.f32.mxu0 0.0
    %1079 = vmatmul.mubr.f32.gmra.mrb[0].mxu0 %v179
    %v1080 = vpop.f32.mrb[0].mxu0
    %v1081 = vadd.f32 0.0, %v1080
    %v1082 = vpop.f32.mrb[0].mxu0
    %v1083 = vadd.f32 0.0, %v1082
    %1084 = vdwg.mxu0
    %1085 = vmatprep.subr.mxu0 %v93
    %1086 = vmatpush1.msra.mxu0 %v92
    %1087 = vmatprep.subr.mxu0 0.0
    %1088 = vmatpush1.msra.mxu0 0.0
    %1089 = vmatprep.subr.mxu0 0.0
    %1090 = vmatpush1.msra.mxu0 0.0
    %1091 = vmatprep.subr.mxu0 0.0
    %1092 = vmatpush1.msra.mxu0 0.0
    %1093 = vmatprep.subr.mxu0 0.0
    %1094 = vmatpush1.msra.mxu0 0.0
    %1095 = vmatprep.subr.mxu0 0.0
    %1096 = vmatpush1.msra.mxu0 0.0
    %1097 = vmatprep.subr.mxu0 0.0
    %1098 = vmatpush1.msra.mxu0 0.0
    %1099 = vmatprep.subr.mxu0 0.0
    %1100 = vmatpush1.msra.mxu0 0.0
    %1101 = vmatprep.subr.mxu0 0.0
    %1102 = vmatpush1.msra.mxu0 0.0
    %1103 = vmatprep.subr.mxu0 0.0
    %1104 = vmatpush1.msra.mxu0 0.0
    %1105 = vmatprep.subr.mxu0 0.0
    %1106 = vmatpush1.msra.mxu0 0.0
    %1107 = vmatprep.subr.mxu0 0.0
    %1108 = vmatpush1.msra.mxu0 0.0
    %1109 = vmatprep.subr.mxu0 0.0
    %1110 = vmatpush1.msra.mxu0 0.0
    %1111 = vmatprep.subr.mxu0 0.0
    %1112 = vmatpush1.msra.mxu0 0.0
    %1113 = vmatprep.subr.mxu0 0.0
    %1114 = vmatpush1.msra.mxu0 0.0
    %1115 = vmatprep.subr.mxu0 0.0
    %1116 = vmatpush1.msra.mxu0 0.0
    %1117 = vmatprep.subr.mxu0 0.0
    %1118 = vmatpush1.msra.mxu0 0.0
    %1119 = vmatprep.subr.mxu0 0.0
    %1120 = vmatpush1.msra.mxu0 0.0
    %1121 = vmatprep.subr.mxu0 0.0
    %1122 = vmatpush1.msra.mxu0 0.0
    %1123 = vmatprep.subr.mxu0 0.0
    %1124 = vmatpush1.msra.mxu0 0.0
    %1125 = vmatprep.subr.mxu0 0.0
    %1126 = vmatpush1.msra.mxu0 0.0
    %1127 = vmatprep.subr.mxu0 0.0
    %1128 = vmatpush1.msra.mxu0 0.0
    %1129 = vmatprep.subr.mxu0 0.0
    %1130 = vmatpush1.msra.mxu0 0.0
    %1131 = vmatprep.subr.mxu0 0.0
    %1132 = vmatpush1.msra.mxu0 0.0
    %1133 = vmatprep.subr.mxu0 0.0
    %1134 = vmatpush1.msra.mxu0 0.0
    %1135 = vmatprep.subr.mxu0 0.0
    %1136 = vmatpush1.msra.mxu0 0.0
    %1137 = vmatprep.subr.mxu0 0.0
    %1138 = vmatpush1.msra.mxu0 0.0
    %1139 = vmatprep.subr.mxu0 0.0
    %1140 = vmatpush1.msra.mxu0 0.0
    %1141 = vmatprep.subr.mxu0 0.0
    %1142 = vmatpush1.msra.mxu0 0.0
    %1143 = vmatprep.subr.mxu0 0.0
    %1144 = vmatpush1.msra.mxu0 0.0
    %1145 = vmatprep.subr.mxu0 0.0
    %1146 = vmatpush1.msra.mxu0 0.0
    %1147 = vmatprep.subr.mxu0 0.0
    %1148 = vmatpush1.msra.mxu0 0.0
    %1149 = vmatprep.mubr.f32.mxu0 0.0
    %1150 = vmatmul.mubr.f32.gmra.mrb[0].mxu0 %v158
    %v1151 = vpop.f32.mrb[0].mxu0
    %v1152 = vadd.f32 0.0, %v1151
    %v1153 = vpop.f32.mrb[0].mxu0
    %v1154 = vadd.f32 0.0, %v1153
    %1155 = vmatprep.mubr.f32.mxu0 0.0
    %1156 = vmatmul.mubr.f32.gmra.mrb[0].mxu0 %v161
    %v1157 = vpop.f32.mrb[0].mxu0
    %v1158 = vadd.f32 0.0, %v1157
    %v1159 = vpop.f32.mrb[0].mxu0
    %v1160 = vadd.f32 0.0, %v1159
    %1161 = vmatprep.mubr.f32.mxu0 0.0
    %1162 = vmatmul.mubr.f32.gmra.mrb[0].mxu0 %v164
    %v1163 = vpop.f32.mrb[0].mxu0
    %v1164 = vadd.f32 0.0, %v1163
    %v1165 = vpop.f32.mrb[0].mxu0
    %v1166 = vadd.f32 0.0, %v1165
    %1167 = vmatprep.mubr.f32.mxu0 0.0
    %1168 = vmatmul.mubr.f32.gmra.mrb[0].mxu0 %v167
    %v1169 = vpop.f32.mrb[0].mxu0
    %v1170 = vadd.f32 0.0, %v1169
    %v1171 = vpop.f32.mrb[0].mxu0
    %v1172 = vadd.f32 0.0, %v1171
    %1173 = vmatprep.mubr.f32.mxu0 0.0
    %1174 = vmatmul.mubr.f32.gmra.mrb[0].mxu0 %v170
    %v1175 = vpop.f32.mrb[0].mxu0
    %v1176 = vadd.f32 0.0, %v1175
    %v1177 = vpop.f32.mrb[0].mxu0
    %v1178 = vadd.f32 0.0, %v1177
    %1179 = vmatprep.mubr.f32.mxu0 0.0
    %1180 = vmatmul.mubr.f32.gmra.mrb[0].mxu0 %v173
    %v1181 = vpop.f32.mrb[0].mxu0
    %v1182 = vadd.f32 0.0, %v1181
    %v1183 = vpop.f32.mrb[0].mxu0
    %v1184 = vadd.f32 0.0, %v1183
    %1185 = vmatprep.mubr.f32.mxu0 0.0
    %1186 = vmatmul.mubr.f32.gmra.mrb[0].mxu0 %v176
    %v1187 = vpop.f32.mrb[0].mxu0
    %v1188 = vadd.f32 0.0, %v1187
    %v1189 = vpop.f32.mrb[0].mxu0
    %v1190 = vadd.f32 0.0, %v1189
    %1191 = vmatprep.mubr.f32.mxu0 0.0
    %1192 = vmatmul.mubr.f32.gmra.mrb[0].mxu0 %v179
    %v1193 = vpop.f32.mrb[0].mxu0
    %v1194 = vadd.f32 0.0, %v1193
    %v1195 = vpop.f32.mrb[0].mxu0
    %v1196 = vadd.f32 0.0, %v1195
    %1197 = vdwg.mxu0
    %1198 = vmatprep.subr.mxu0 %v95
    %1199 = vmatpush1.msra.mxu0 %v94
    %1200 = vmatprep.subr.mxu0 0.0
    %1201 = vmatpush1.msra.mxu0 0.0
    %1202 = vmatprep.subr.mxu0 0.0
    %1203 = vmatpush1.msra.mxu0 0.0
    %1204 = vmatprep.subr.mxu0 0.0
    %1205 = vmatpush1.msra.mxu0 0.0
    %1206 = vmatprep.subr.mxu0 0.0
    %1207 = vmatpush1.msra.mxu0 0.0
    %1208 = vmatprep.subr.mxu0 0.0
    %1209 = vmatpush1.msra.mxu0 0.0
    %1210 = vmatprep.subr.mxu0 0.0
    %1211 = vmatpush1.msra.mxu0 0.0
    %1212 = vmatprep.subr.mxu0 0.0
    %1213 = vmatpush1.msra.mxu0 0.0
    %1214 = vmatprep.subr.mxu0 0.0
    %1215 = vmatpush1.msra.mxu0 0.0
    %1216 = vmatprep.subr.mxu0 0.0
    %1217 = vmatpush1.msra.mxu0 0.0
    %1218 = vmatprep.subr.mxu0 0.0
    %1219 = vmatpush1.msra.mxu0 0.0
    %1220 = vmatprep.subr.mxu0 0.0
    %1221 = vmatpush1.msra.mxu0 0.0
    %1222 = vmatprep.subr.mxu0 0.0
    %1223 = vmatpush1.msra.mxu0 0.0
    %1224 = vmatprep.subr.mxu0 0.0
    %1225 = vmatpush1.msra.mxu0 0.0
    %1226 = vmatprep.subr.mxu0 0.0
    %1227 = vmatpush1.msra.mxu0 0.0
    %1228 = vmatprep.subr.mxu0 0.0
    %1229 = vmatpush1.msra.mxu0 0.0
    %1230 = vmatprep.subr.mxu0 0.0
    %1231 = vmatpush1.msra.mxu0 0.0
    %1232 = vmatprep.subr.mxu0 0.0
    %1233 = vmatpush1.msra.mxu0 0.0
    %1234 = vmatprep.subr.mxu0 0.0
    %1235 = vmatpush1.msra.mxu0 0.0
    %1236 = vmatprep.subr.mxu0 0.0
    %1237 = vmatpush1.msra.mxu0 0.0
    %1238 = vmatprep.subr.mxu0 0.0
    %1239 = vmatpush1.msra.mxu0 0.0
    %1240 = vmatprep.subr.mxu0 0.0
    %1241 = vmatpush1.msra.mxu0 0.0
    %1242 = vmatprep.subr.mxu0 0.0
    %1243 = vmatpush1.msra.mxu0 0.0
    %1244 = vmatprep.subr.mxu0 0.0
    %1245 = vmatpush1.msra.mxu0 0.0
    %1246 = vmatprep.subr.mxu0 0.0
    %1247 = vmatpush1.msra.mxu0 0.0
    %1248 = vmatprep.subr.mxu0 0.0
    %1249 = vmatpush1.msra.mxu0 0.0
    %1250 = vmatprep.subr.mxu0 0.0
    %1251 = vmatpush1.msra.mxu0 0.0
    %1252 = vmatprep.subr.mxu0 0.0
    %1253 = vmatpush1.msra.mxu0 0.0
    %1254 = vmatprep.subr.mxu0 0.0
    %1255 = vmatpush1.msra.mxu0 0.0
    %1256 = vmatprep.subr.mxu0 0.0
    %1257 = vmatpush1.msra.mxu0 0.0
    %1258 = vmatprep.subr.mxu0 0.0
    %1259 = vmatpush1.msra.mxu0 0.0
    %1260 = vmatprep.subr.mxu0 0.0
    %1261 = vmatpush1.msra.mxu0 0.0
    %1262 = vmatprep.mubr.f32.mxu0 0.0
    %1263 = vmatmul.mubr.f32.gmra.mrb[0].mxu0 %v158
    %v1264 = vpop.f32.mrb[0].mxu0
    %v1265 = vadd.f32 0.0, %v1264
    %v1266 = vpop.f32.mrb[0].mxu0
    %v1267 = vadd.f32 0.0, %v1266
    %1268 = vmatprep.mubr.f32.mxu0 0.0
    %1269 = vmatmul.mubr.f32.gmra.mrb[0].mxu0 %v161
    %v1270 = vpop.f32.mrb[0].mxu0
    %v1271 = vadd.f32 0.0, %v1270
    %v1272 = vpop.f32.mrb[0].mxu0
    %v1273 = vadd.f32 0.0, %v1272
    %1274 = vmatprep.mubr.f32.mxu0 0.0
    %1275 = vmatmul.mubr.f32.gmra.mrb[0].mxu0 %v164
    %v1276 = vpop.f32.mrb[0].mxu0
    %v1277 = vadd.f32 0.0, %v1276
    %v1278 = vpop.f32.mrb[0].mxu0
    %v1279 = vadd.f32 0.0, %v1278
    %1280 = vmatprep.mubr.f32.mxu0 0.0
    %1281 = vmatmul.mubr.f32.gmra.mrb[0].mxu0 %v167
    %v1282 = vpop.f32.mrb[0].mxu0
    %v1283 = vadd.f32 0.0, %v1282
    %v1284 = vpop.f32.mrb[0].mxu0
    %v1285 = vadd.f32 0.0, %v1284
    %1286 = vmatprep.mubr.f32.mxu0 0.0
    %1287 = vmatmul.mubr.f32.gmra.mrb[0].mxu0 %v170
    %v1288 = vpop.f32.mrb[0].mxu0
    %v1289 = vadd.f32 0.0, %v1288
    %v1290 = vpop.f32.mrb[0].mxu0
    %v1291 = vadd.f32 0.0, %v1290
    %1292 = vmatprep.mubr.f32.mxu0 0.0
    %1293 = vmatmul.mubr.f32.gmra.mrb[0].mxu0 %v173
    %v1294 = vpop.f32.mrb[0].mxu0
    %v1295 = vadd.f32 0.0, %v1294
    %v1296 = vpop.f32.mrb[0].mxu0
    %v1297 = vadd.f32 0.0, %v1296
    %1298 = vmatprep.mubr.f32.mxu0 0.0
    %1299 = vmatmul.mubr.f32.gmra.mrb[0].mxu0 %v176
    %v1300 = vpop.f32.mrb[0].mxu0
    %v1301 = vadd.f32 0.0, %v1300
    %v1302 = vpop.f32.mrb[0].mxu0
    %v1303 = vadd.f32 0.0, %v1302
    %1304 = vmatprep.mubr.f32.mxu0 0.0
    %1305 = vmatmul.mubr.f32.gmra.mrb[0].mxu0 %v179
    %v1306 = vpop.f32.mrb[0].mxu0
    %v1307 = vadd.f32 0.0, %v1306
    %v1308 = vpop.f32.mrb[0].mxu0
    %v1309 = vadd.f32 0.0, %v1308
    %1310 = vdwg.mxu0
    %1311 = vmatprep.subr.mxu0 %v97
    %1312 = vmatpush1.msra.mxu0 %v96
    %1313 = vmatprep.subr.mxu0 0.0
    %1314 = vmatpush1.msra.mxu0 0.0
    %1315 = vmatprep.subr.mxu0 0.0
    %1316 = vmatpush1.msra.mxu0 0.0
    %1317 = vmatprep.subr.mxu0 0.0
    %1318 = vmatpush1.msra.mxu0 0.0
    %1319 = vmatprep.subr.mxu0 0.0
    %1320 = vmatpush1.msra.mxu0 0.0
    %1321 = vmatprep.subr.mxu0 0.0
    %1322 = vmatpush1.msra.mxu0 0.0
    %1323 = vmatprep.subr.mxu0 0.0
    %1324 = vmatpush1.msra.mxu0 0.0
    %1325 = vmatprep.subr.mxu0 0.0
    %1326 = vmatpush1.msra.mxu0 0.0
    %1327 = vmatprep.subr.mxu0 0.0
    %1328 = vmatpush1.msra.mxu0 0.0
    %1329 = vmatprep.subr.mxu0 0.0
    %1330 = vmatpush1.msra.mxu0 0.0
    %1331 = vmatprep.subr.mxu0 0.0
    %1332 = vmatpush1.msra.mxu0 0.0
    %1333 = vmatprep.subr.mxu0 0.0
    %1334 = vmatpush1.msra.mxu0 0.0
    %1335 = vmatprep.subr.mxu0 0.0
    %1336 = vmatpush1.msra.mxu0 0.0
    %1337 = vmatprep.subr.mxu0 0.0
    %1338 = vmatpush1.msra.mxu0 0.0
    %1339 = vmatprep.subr.mxu0 0.0
    %1340 = vmatpush1.msra.mxu0 0.0
    %1341 = vmatprep.subr.mxu0 0.0
    %1342 = vmatpush1.msra.mxu0 0.0
    %1343 = vmatprep.subr.mxu0 0.0
    %1344 = vmatpush1.msra.mxu0 0.0
    %1345 = vmatprep.subr.mxu0 0.0
    %1346 = vmatpush1.msra.mxu0 0.0
    %1347 = vmatprep.subr.mxu0 0.0
    %1348 = vmatpush1.msra.mxu0 0.0
    %1349 = vmatprep.subr.mxu0 0.0
    %1350 = vmatpush1.msra.mxu0 0.0
    %1351 = vmatprep.subr.mxu0 0.0
    %1352 = vmatpush1.msra.mxu0 0.0
    %1353 = vmatprep.subr.mxu0 0.0
    %1354 = vmatpush1.msra.mxu0 0.0
    %1355 = vmatprep.subr.mxu0 0.0
    %1356 = vmatpush1.msra.mxu0 0.0
    %1357 = vmatprep.subr.mxu0 0.0
    %1358 = vmatpush1.msra.mxu0 0.0
    %1359 = vmatprep.subr.mxu0 0.0
    %1360 = vmatpush1.msra.mxu0 0.0
    %1361 = vmatprep.subr.mxu0 0.0
    %1362 = vmatpush1.msra.mxu0 0.0
    %1363 = vmatprep.subr.mxu0 0.0
    %1364 = vmatpush1.msra.mxu0 0.0
    %1365 = vmatprep.subr.mxu0 0.0
    %1366 = vmatpush1.msra.mxu0 0.0
    %1367 = vmatprep.subr.mxu0 0.0
    %1368 = vmatpush1.msra.mxu0 0.0
    %1369 = vmatprep.subr.mxu0 0.0
    %1370 = vmatpush1.msra.mxu0 0.0
    %1371 = vmatprep.subr.mxu0 0.0
    %1372 = vmatpush1.msra.mxu0 0.0
    %1373 = vmatprep.subr.mxu0 0.0
    %1374 = vmatpush1.msra.mxu0 0.0
    %1375 = vmatprep.mubr.f32.mxu0 0.0
    %1376 = vmatmul.mubr.f32.gmra.mrb[0].mxu0 %v158
    %v1377 = vpop.f32.mrb[0].mxu0
    %v1378 = vadd.f32 0.0, %v1377
    %v1379 = vpop.f32.mrb[0].mxu0
    %v1380 = vadd.f32 0.0, %v1379
    %1381 = vmatprep.mubr.f32.mxu0 0.0
    %1382 = vmatmul.mubr.f32.gmra.mrb[0].mxu0 %v161
    %v1383 = vpop.f32.mrb[0].mxu0
    %v1384 = vadd.f32 0.0, %v1383
    %v1385 = vpop.f32.mrb[0].mxu0
    %v1386 = vadd.f32 0.0, %v1385
    %1387 = vmatprep.mubr.f32.mxu0 0.0
    %1388 = vmatmul.mubr.f32.gmra.mrb[0].mxu0 %v164
    %v1389 = vpop.f32.mrb[0].mxu0
    %v1390 = vadd.f32 0.0, %v1389
    %v1391 = vpop.f32.mrb[0].mxu0
    %v1392 = vadd.f32 0.0, %v1391
    %1393 = vmatprep.mubr.f32.mxu0 0.0
    %1394 = vmatmul.mubr.f32.gmra.mrb[0].mxu0 %v167
    %v1395 = vpop.f32.mrb[0].mxu0
    %v1396 = vadd.f32 0.0, %v1395
    %v1397 = vpop.f32.mrb[0].mxu0
    %v1398 = vadd.f32 0.0, %v1397
    %1399 = vmatprep.mubr.f32.mxu0 0.0
    %1400 = vmatmul.mubr.f32.gmra.mrb[0].mxu0 %v170
    %v1401 = vpop.f32.mrb[0].mxu0
    %v1402 = vadd.f32 0.0, %v1401
    %v1403 = vpop.f32.mrb[0].mxu0
    %v1404 = vadd.f32 0.0, %v1403
    %1405 = vmatprep.mubr.f32.mxu0 0.0
    %1406 = vmatmul.mubr.f32.gmra.mrb[0].mxu0 %v173
    %v1407 = vpop.f32.mrb[0].mxu0
    %v1408 = vadd.f32 0.0, %v1407
    %v1409 = vpop.f32.mrb[0].mxu0
    %v1410 = vadd.f32 0.0, %v1409
    %1411 = vmatprep.mubr.f32.mxu0 0.0
    %1412 = vmatmul.mubr.f32.gmra.mrb[0].mxu0 %v176
    %v1413 = vpop.f32.mrb[0].mxu0
    %v1414 = vadd.f32 0.0, %v1413
    %v1415 = vpop.f32.mrb[0].mxu0
    %v1416 = vadd.f32 0.0, %v1415
    %1417 = vmatprep.mubr.f32.mxu0 0.0
    %1418 = vmatmul.mubr.f32.gmra.mrb[0].mxu0 %v179
    %v1419 = vpop.f32.mrb[0].mxu0
    %v1420 = vadd.f32 0.0, %v1419
    %v1421 = vpop.f32.mrb[0].mxu0
    %v1422 = vadd.f32 0.0, %v1421
    %1423 = vdwg.mxu0
    %1424 = vmatprep.subr.mxu0 %v99
    %1425 = vmatpush1.msra.mxu0 %v98
    %1426 = vmatprep.subr.mxu0 0.0
    %1427 = vmatpush1.msra.mxu0 0.0
    %1428 = vmatprep.subr.mxu0 0.0
    %1429 = vmatpush1.msra.mxu0 0.0
    %1430 = vmatprep.subr.mxu0 0.0
    %1431 = vmatpush1.msra.mxu0 0.0
    %1432 = vmatprep.subr.mxu0 0.0
    %1433 = vmatpush1.msra.mxu0 0.0
    %1434 = vmatprep.subr.mxu0 0.0
    %1435 = vmatpush1.msra.mxu0 0.0
    %1436 = vmatprep.subr.mxu0 0.0
    %1437 = vmatpush1.msra.mxu0 0.0
    %1438 = vmatprep.subr.mxu0 0.0
    %1439 = vmatpush1.msra.mxu0 0.0
    %1440 = vmatprep.subr.mxu0 0.0
    %1441 = vmatpush1.msra.mxu0 0.0
    %1442 = vmatprep.subr.mxu0 0.0
    %1443 = vmatpush1.msra.mxu0 0.0
    %1444 = vmatprep.subr.mxu0 0.0
    %1445 = vmatpush1.msra.mxu0 0.0
    %1446 = vmatprep.subr.mxu0 0.0
    %1447 = vmatpush1.msra.mxu0 0.0
    %1448 = vmatprep.subr.mxu0 0.0
    %1449 = vmatpush1.msra.mxu0 0.0
    %1450 = vmatprep.subr.mxu0 0.0
    %1451 = vmatpush1.msra.mxu0 0.0
    %1452 = vmatprep.subr.mxu0 0.0
    %1453 = vmatpush1.msra.mxu0 0.0
    %1454 = vmatprep.subr.mxu0 0.0
    %1455 = vmatpush1.msra.mxu0 0.0
    %1456 = vmatprep.subr.mxu0 0.0
    %1457 = vmatpush1.msra.mxu0 0.0
    %1458 = vmatprep.subr.mxu0 0.0
    %1459 = vmatpush1.msra.mxu0 0.0
    %1460 = vmatprep.subr.mxu0 0.0
    %1461 = vmatpush1.msra.mxu0 0.0
    %1462 = vmatprep.subr.mxu0 0.0
    %1463 = vmatpush1.msra.mxu0 0.0
    %1464 = vmatprep.subr.mxu0 0.0
    %1465 = vmatpush1.msra.mxu0 0.0
    %1466 = vmatprep.subr.mxu0 0.0
    %1467 = vmatpush1.msra.mxu0 0.0
    %1468 = vmatprep.subr.mxu0 0.0
    %1469 = vmatpush1.msra.mxu0 0.0
    %1470 = vmatprep.subr.mxu0 0.0
    %1471 = vmatpush1.msra.mxu0 0.0
    %1472 = vmatprep.subr.mxu0 0.0
    %1473 = vmatpush1.msra.mxu0 0.0
    %1474 = vmatprep.subr.mxu0 0.0
    %1475 = vmatpush1.msra.mxu0 0.0
    %1476 = vmatprep.subr.mxu0 0.0
    %1477 = vmatpush1.msra.mxu0 0.0
    %1478 = vmatprep.subr.mxu0 0.0
    %1479 = vmatpush1.msra.mxu0 0.0
    %1480 = vmatprep.subr.mxu0 0.0
    %1481 = vmatpush1.msra.mxu0 0.0
    %1482 = vmatprep.subr.mxu0 0.0
    %1483 = vmatpush1.msra.mxu0 0.0
    %1484 = vmatprep.subr.mxu0 0.0
    %1485 = vmatpush1.msra.mxu0 0.0
    %1486 = vmatprep.subr.mxu0 0.0
    %1487 = vmatpush1.msra.mxu0 0.0
    %1488 = vmatprep.mubr.f32.mxu0 0.0
    %1489 = vmatmul.mubr.f32.gmra.mrb[0].mxu0 %v158
    %v1490 = vpop.f32.mrb[0].mxu0
    %v1491 = vadd.f32 0.0, %v1490
    %v1492 = vpop.f32.mrb[0].mxu0
    %v1493 = vadd.f32 0.0, %v1492
    %1494 = vmatprep.mubr.f32.mxu0 0.0
    %1495 = vmatmul.mubr.f32.gmra.mrb[0].mxu0 %v161
    %v1496 = vpop.f32.mrb[0].mxu0
    %v1497 = vadd.f32 0.0, %v1496
    %v1498 = vpop.f32.mrb[0].mxu0
    %v1499 = vadd.f32 0.0, %v1498
    %1500 = vmatprep.mubr.f32.mxu0 0.0
    %1501 = vmatmul.mubr.f32.gmra.mrb[0].mxu0 %v164
    %v1502 = vpop.f32.mrb[0].mxu0
    %v1503 = vadd.f32 0.0, %v1502
    %v1504 = vpop.f32.mrb[0].mxu0
    %v1505 = vadd.f32 0.0, %v1504
    %1506 = vmatprep.mubr.f32.mxu0 0.0
    %1507 = vmatmul.mubr.f32.gmra.mrb[0].mxu0 %v167
    %v1508 = vpop.f32.mrb[0].mxu0
    %v1509 = vadd.f32 0.0, %v1508
    %v1510 = vpop.f32.mrb[0].mxu0
    %v1511 = vadd.f32 0.0, %v1510
    %1512 = vmatprep.mubr.f32.mxu0 0.0
    %1513 = vmatmul.mubr.f32.gmra.mrb[0].mxu0 %v170
    %v1514 = vpop.f32.mrb[0].mxu0
    %v1515 = vadd.f32 0.0, %v1514
    %v1516 = vpop.f32.mrb[0].mxu0
    %v1517 = vadd.f32 0.0, %v1516
    %1518 = vmatprep.mubr.f32.mxu0 0.0
    %1519 = vmatmul.mubr.f32.gmra.mrb[0].mxu0 %v173
    %v1520 = vpop.f32.mrb[0].mxu0
    %v1521 = vadd.f32 0.0, %v1520
    %v1522 = vpop.f32.mrb[0].mxu0
    %v1523 = vadd.f32 0.0, %v1522
    %1524 = vmatprep.mubr.f32.mxu0 0.0
    %1525 = vmatmul.mubr.f32.gmra.mrb[0].mxu0 %v176
    %v1526 = vpop.f32.mrb[0].mxu0
    %v1527 = vadd.f32 0.0, %v1526
    %v1528 = vpop.f32.mrb[0].mxu0
    %v1529 = vadd.f32 0.0, %v1528
    %1530 = vmatprep.mubr.f32.mxu0 0.0
    %1531 = vmatmul.mubr.f32.gmra.mrb[0].mxu0 %v179
    %v1532 = vpop.f32.mrb[0].mxu0
    %v1533 = vadd.f32 0.0, %v1532
    %v1534 = vpop.f32.mrb[0].mxu0
    %v1535 = vadd.f32 0.0, %v1534
    %1536 = vdwg.mxu0
    %1537 = vmatprep.subr.mxu0 %v101
    %1538 = vmatpush1.msra.mxu0 %v100
    %1539 = vmatprep.subr.mxu0 0.0
    %1540 = vmatpush1.msra.mxu0 0.0
    %1541 = vmatprep.subr.mxu0 0.0
    %1542 = vmatpush1.msra.mxu0 0.0
    %1543 = vmatprep.subr.mxu0 0.0
    %1544 = vmatpush1.msra.mxu0 0.0
    %1545 = vmatprep.subr.mxu0 0.0
    %1546 = vmatpush1.msra.mxu0 0.0
    %1547 = vmatprep.subr.mxu0 0.0
    %1548 = vmatpush1.msra.mxu0 0.0
    %1549 = vmatprep.subr.mxu0 0.0
    %1550 = vmatpush1.msra.mxu0 0.0
    %1551 = vmatprep.subr.mxu0 0.0
    %1552 = vmatpush1.msra.mxu0 0.0
    %1553 = vmatprep.subr.mxu0 0.0
    %1554 = vmatpush1.msra.mxu0 0.0
    %1555 = vmatprep.subr.mxu0 0.0
    %1556 = vmatpush1.msra.mxu0 0.0
    %1557 = vmatprep.subr.mxu0 0.0
    %1558 = vmatpush1.msra.mxu0 0.0
    %1559 = vmatprep.subr.mxu0 0.0
    %1560 = vmatpush1.msra.mxu0 0.0
    %1561 = vmatprep.subr.mxu0 0.0
    %1562 = vmatpush1.msra.mxu0 0.0
    %1563 = vmatprep.subr.mxu0 0.0
    %1564 = vmatpush1.msra.mxu0 0.0
    %1565 = vmatprep.subr.mxu0 0.0
    %1566 = vmatpush1.msra.mxu0 0.0
    %1567 = vmatprep.subr.mxu0 0.0
    %1568 = vmatpush1.msra.mxu0 0.0
    %1569 = vmatprep.subr.mxu0 0.0
    %1570 = vmatpush1.msra.mxu0 0.0
    %1571 = vmatprep.subr.mxu0 0.0
    %1572 = vmatpush1.msra.mxu0 0.0
    %1573 = vmatprep.subr.mxu0 0.0
    %1574 = vmatpush1.msra.mxu0 0.0
    %1575 = vmatprep.subr.mxu0 0.0
    %1576 = vmatpush1.msra.mxu0 0.0
    %1577 = vmatprep.subr.mxu0 0.0
    %1578 = vmatpush1.msra.mxu0 0.0
    %1579 = vmatprep.subr.mxu0 0.0
    %1580 = vmatpush1.msra.mxu0 0.0
    %1581 = vmatprep.subr.mxu0 0.0
    %1582 = vmatpush1.msra.mxu0 0.0
    %1583 = vmatprep.subr.mxu0 0.0
    %1584 = vmatpush1.msra.mxu0 0.0
    %1585 = vmatprep.subr.mxu0 0.0
    %1586 = vmatpush1.msra.mxu0 0.0
    %1587 = vmatprep.subr.mxu0 0.0
    %1588 = vmatpush1.msra.mxu0 0.0
    %1589 = vmatprep.subr.mxu0 0.0
    %1590 = vmatpush1.msra.mxu0 0.0
    %1591 = vmatprep.subr.mxu0 0.0
    %1592 = vmatpush1.msra.mxu0 0.0
    %1593 = vmatprep.subr.mxu0 0.0
    %1594 = vmatpush1.msra.mxu0 0.0
    %1595 = vmatprep.subr.mxu0 0.0
    %1596 = vmatpush1.msra.mxu0 0.0
    %1597 = vmatprep.subr.mxu0 0.0
    %1598 = vmatpush1.msra.mxu0 0.0
    %1599 = vmatprep.subr.mxu0 0.0
    %1600 = vmatpush1.msra.mxu0 0.0
    %1601 = vmatprep.mubr.f32.mxu0 0.0
    %1602 = vmatmul.mubr.f32.gmra.mrb[0].mxu0 %v158
    %v1603 = vpop.f32.mrb[0].mxu0
    %v1604 = vadd.f32 0.0, %v1603
    %v1605 = vpop.f32.mrb[0].mxu0
    %v1606 = vadd.f32 0.0, %v1605
    %1607 = vmatprep.mubr.f32.mxu0 0.0
    %1608 = vmatmul.mubr.f32.gmra.mrb[0].mxu0 %v161
    %v1609 = vpop.f32.mrb[0].mxu0
    %v1610 = vadd.f32 0.0, %v1609
    %v1611 = vpop.f32.mrb[0].mxu0
    %v1612 = vadd.f32 0.0, %v1611
    %1613 = vmatprep.mubr.f32.mxu0 0.0
    %1614 = vmatmul.mubr.f32.gmra.mrb[0].mxu0 %v164
    %v1615 = vpop.f32.mrb[0].mxu0
    %v1616 = vadd.f32 0.0, %v1615
    %v1617 = vpop.f32.mrb[0].mxu0
    %v1618 = vadd.f32 0.0, %v1617
    %1619 = vmatprep.mubr.f32.mxu0 0.0
    %1620 = vmatmul.mubr.f32.gmra.mrb[0].mxu0 %v167
    %v1621 = vpop.f32.mrb[0].mxu0
    %v1622 = vadd.f32 0.0, %v1621
    %v1623 = vpop.f32.mrb[0].mxu0
    %v1624 = vadd.f32 0.0, %v1623
    %1625 = vmatprep.mubr.f32.mxu0 0.0
    %1626 = vmatmul.mubr.f32.gmra.mrb[0].mxu0 %v170
    %v1627 = vpop.f32.mrb[0].mxu0
    %v1628 = vadd.f32 0.0, %v1627
    %v1629 = vpop.f32.mrb[0].mxu0
    %v1630 = vadd.f32 0.0, %v1629
    %1631 = vmatprep.mubr.f32.mxu0 0.0
    %1632 = vmatmul.mubr.f32.gmra.mrb[0].mxu0 %v173
    %v1633 = vpop.f32.mrb[0].mxu0
    %v1634 = vadd.f32 0.0, %v1633
    %v1635 = vpop.f32.mrb[0].mxu0
    %v1636 = vadd.f32 0.0, %v1635
    %1637 = vmatprep.mubr.f32.mxu0 0.0
    %1638 = vmatmul.mubr.f32.gmra.mrb[0].mxu0 %v176
    %v1639 = vpop.f32.mrb[0].mxu0
    %v1640 = vadd.f32 0.0, %v1639
    %v1641 = vpop.f32.mrb[0].mxu0
    %v1642 = vadd.f32 0.0, %v1641
    %1643 = vmatprep.mubr.f32.mxu0 0.0
    %1644 = vmatmul.mubr.f32.gmra.mrb[0].mxu0 %v179
    %v1645 = vpop.f32.mrb[0].mxu0
    %v1646 = vadd.f32 0.0, %v1645
    %v1647 = vpop.f32.mrb[0].mxu0
    %v1648 = vadd.f32 0.0, %v1647
    %1649 = vdwg.mxu0
    %1650 = vmatprep.subr.mxu0 %v103
    %1651 = vmatpush1.msra.mxu0 %v102
    %1652 = vmatprep.subr.mxu0 0.0
    %1653 = vmatpush1.msra.mxu0 0.0
    %1654 = vmatprep.subr.mxu0 0.0
    %1655 = vmatpush1.msra.mxu0 0.0
    %1656 = vmatprep.subr.mxu0 0.0
    %1657 = vmatpush1.msra.mxu0 0.0
    %1658 = vmatprep.subr.mxu0 0.0
    %1659 = vmatpush1.msra.mxu0 0.0
    %1660 = vmatprep.subr.mxu0 0.0
    %1661 = vmatpush1.msra.mxu0 0.0
    %1662 = vmatprep.subr.mxu0 0.0
    %1663 = vmatpush1.msra.mxu0 0.0
    %1664 = vmatprep.subr.mxu0 0.0
    %1665 = vmatpush1.msra.mxu0 0.0
    %1666 = vmatprep.subr.mxu0 0.0
    %1667 = vmatpush1.msra.mxu0 0.0
    %1668 = vmatprep.subr.mxu0 0.0
    %1669 = vmatpush1.msra.mxu0 0.0
    %1670 = vmatprep.subr.mxu0 0.0
    %1671 = vmatpush1.msra.mxu0 0.0
    %1672 = vmatprep.subr.mxu0 0.0
    %1673 = vmatpush1.msra.mxu0 0.0
    %1674 = vmatprep.subr.mxu0 0.0
    %1675 = vmatpush1.msra.mxu0 0.0
    %1676 = vmatprep.subr.mxu0 0.0
    %1677 = vmatpush1.msra.mxu0 0.0
    %1678 = vmatprep.subr.mxu0 0.0
    %1679 = vmatpush1.msra.mxu0 0.0
    %1680 = vmatprep.subr.mxu0 0.0
    %1681 = vmatpush1.msra.mxu0 0.0
    %1682 = vmatprep.subr.mxu0 0.0
    %1683 = vmatpush1.msra.mxu0 0.0
    %1684 = vmatprep.subr.mxu0 0.0
    %1685 = vmatpush1.msra.mxu0 0.0
    %1686 = vmatprep.subr.mxu0 0.0
    %1687 = vmatpush1.msra.mxu0 0.0
    %1688 = vmatprep.subr.mxu0 0.0
    %1689 = vmatpush1.msra.mxu0 0.0
    %1690 = vmatprep.subr.mxu0 0.0
    %1691 = vmatpush1.msra.mxu0 0.0
    %1692 = vmatprep.subr.mxu0 0.0
    %1693 = vmatpush1.msra.mxu0 0.0
    %1694 = vmatprep.subr.mxu0 0.0
    %1695 = vmatpush1.msra.mxu0 0.0
    %1696 = vmatprep.subr.mxu0 0.0
    %1697 = vmatpush1.msra.mxu0 0.0
    %1698 = vmatprep.subr.mxu0 0.0
    %1699 = vmatpush1.msra.mxu0 0.0
    %1700 = vmatprep.subr.mxu0 0.0
    %1701 = vmatpush1.msra.mxu0 0.0
    %1702 = vmatprep.subr.mxu0 0.0
    %1703 = vmatpush1.msra.mxu0 0.0
    %1704 = vmatprep.subr.mxu0 0.0
    %1705 = vmatpush1.msra.mxu0 0.0
    %1706 = vmatprep.subr.mxu0 0.0
    %1707 = vmatpush1.msra.mxu0 0.0
    %1708 = vmatprep.subr.mxu0 0.0
    %1709 = vmatpush1.msra.mxu0 0.0
    %1710 = vmatprep.subr.mxu0 0.0
    %1711 = vmatpush1.msra.mxu0 0.0
    %1712 = vmatprep.subr.mxu0 0.0
    %1713 = vmatpush1.msra.mxu0 0.0
    %1714 = vmatprep.mubr.f32.mxu0 0.0
    %1715 = vmatmul.mubr.f32.gmra.mrb[0].mxu0 %v158
    %v1716 = vpop.f32.mrb[0].mxu0
    %v1717 = vadd.f32 0.0, %v1716
    %v1718 = vpop.f32.mrb[0].mxu0
    %v1719 = vadd.f32 0.0, %v1718
    %1720 = vmatprep.mubr.f32.mxu0 0.0
    %1721 = vmatmul.mubr.f32.gmra.mrb[0].mxu0 %v161
    %v1722 = vpop.f32.mrb[0].mxu0
    %v1723 = vadd.f32 0.0, %v1722
    %v1724 = vpop.f32.mrb[0].mxu0
    %v1725 = vadd.f32 0.0, %v1724
    %1726 = vmatprep.mubr.f32.mxu0 0.0
    %1727 = vmatmul.mubr.f32.gmra.mrb[0].mxu0 %v164
    %v1728 = vpop.f32.mrb[0].mxu0
    %v1729 = vadd.f32 0.0, %v1728
    %v1730 = vpop.f32.mrb[0].mxu0
    %v1731 = vadd.f32 0.0, %v1730
    %1732 = vmatprep.mubr.f32.mxu0 0.0
    %1733 = vmatmul.mubr.f32.gmra.mrb[0].mxu0 %v167
    %v1734 = vpop.f32.mrb[0].mxu0
    %v1735 = vadd.f32 0.0, %v1734
    %v1736 = vpop.f32.mrb[0].mxu0
    %v1737 = vadd.f32 0.0, %v1736
    %1738 = vmatprep.mubr.f32.mxu0 0.0
    %1739 = vmatmul.mubr.f32.gmra.mrb[0].mxu0 %v170
    %v1740 = vpop.f32.mrb[0].mxu0
    %v1741 = vadd.f32 0.0, %v1740
    %v1742 = vpop.f32.mrb[0].mxu0
    %v1743 = vadd.f32 0.0, %v1742
    %1744 = vmatprep.mubr.f32.mxu0 0.0
    %1745 = vmatmul.mubr.f32.gmra.mrb[0].mxu0 %v173
    %v1746 = vpop.f32.mrb[0].mxu0
    %v1747 = vadd.f32 0.0, %v1746
    %v1748 = vpop.f32.mrb[0].mxu0
    %v1749 = vadd.f32 0.0, %v1748
    %1750 = vmatprep.mubr.f32.mxu0 0.0
    %1751 = vmatmul.mubr.f32.gmra.mrb[0].mxu0 %v176
    %v1752 = vpop.f32.mrb[0].mxu0
    %v1753 = vadd.f32 0.0, %v1752
    %v1754 = vpop.f32.mrb[0].mxu0
    %v1755 = vadd.f32 0.0, %v1754
    %1756 = vmatprep.mubr.f32.mxu0 0.0
    %1757 = vmatmul.mubr.f32.gmra.mrb[0].mxu0 %v179
    %v1758 = vpop.f32.mrb[0].mxu0
    %v1759 = vadd.f32 0.0, %v1758
    %v1760 = vpop.f32.mrb[0].mxu0
    %v1761 = vadd.f32 0.0, %v1760
    %1762 = vdwg.mxu0
    %1763 = vmatprep.subr.mxu0 %v105
    %1764 = vmatpush1.msra.mxu0 %v104
    %1765 = vmatprep.subr.mxu0 0.0
    %1766 = vmatpush1.msra.mxu0 0.0
    %1767 = vmatprep.subr.mxu0 0.0
    %1768 = vmatpush1.msra.mxu0 0.0
    %1769 = vmatprep.subr.mxu0 0.0
    %1770 = vmatpush1.msra.mxu0 0.0
    %1771 = vmatprep.subr.mxu0 0.0
    %1772 = vmatpush1.msra.mxu0 0.0
    %1773 = vmatprep.subr.mxu0 0.0
    %1774 = vmatpush1.msra.mxu0 0.0
    %1775 = vmatprep.subr.mxu0 0.0
    %1776 = vmatpush1.msra.mxu0 0.0
    %1777 = vmatprep.subr.mxu0 0.0
    %1778 = vmatpush1.msra.mxu0 0.0
    %1779 = vmatprep.subr.mxu0 0.0
    %1780 = vmatpush1.msra.mxu0 0.0
    %1781 = vmatprep.subr.mxu0 0.0
    %1782 = vmatpush1.msra.mxu0 0.0
    %1783 = vmatprep.subr.mxu0 0.0
    %1784 = vmatpush1.msra.mxu0 0.0
    %1785 = vmatprep.subr.mxu0 0.0
    %1786 = vmatpush1.msra.mxu0 0.0
    %1787 = vmatprep.subr.mxu0 0.0
    %1788 = vmatpush1.msra.mxu0 0.0
    %1789 = vmatprep.subr.mxu0 0.0
    %1790 = vmatpush1.msra.mxu0 0.0
    %1791 = vmatprep.subr.mxu0 0.0
    %1792 = vmatpush1.msra.mxu0 0.0
    %1793 = vmatprep.subr.mxu0 0.0
    %1794 = vmatpush1.msra.mxu0 0.0
    %1795 = vmatprep.subr.mxu0 0.0
    %1796 = vmatpush1.msra.mxu0 0.0
    %1797 = vmatprep.subr.mxu0 0.0
    %1798 = vmatpush1.msra.mxu0 0.0
    %1799 = vmatprep.subr.mxu0 0.0
    %1800 = vmatpush1.msra.mxu0 0.0
    %1801 = vmatprep.subr.mxu0 0.0
    %1802 = vmatpush1.msra.mxu0 0.0
    %1803 = vmatprep.subr.mxu0 0.0
    %1804 = vmatpush1.msra.mxu0 0.0
    %1805 = vmatprep.subr.mxu0 0.0
    %1806 = vmatpush1.msra.mxu0 0.0
    %1807 = vmatprep.subr.mxu0 0.0
    %1808 = vmatpush1.msra.mxu0 0.0
    %1809 = vmatprep.subr.mxu0 0.0
    %1810 = vmatpush1.msra.mxu0 0.0
    %1811 = vmatprep.subr.mxu0 0.0
    %1812 = vmatpush1.msra.mxu0 0.0
    %1813 = vmatprep.subr.mxu0 0.0
    %1814 = vmatpush1.msra.mxu0 0.0
    %1815 = vmatprep.subr.mxu0 0.0
    %1816 = vmatpush1.msra.mxu0 0.0
    %1817 = vmatprep.subr.mxu0 0.0
    %1818 = vmatpush1.msra.mxu0 0.0
    %1819 = vmatprep.subr.mxu0 0.0
    %1820 = vmatpush1.msra.mxu0 0.0
    %1821 = vmatprep.subr.mxu0 0.0
    %1822 = vmatpush1.msra.mxu0 0.0
    %1823 = vmatprep.subr.mxu0 0.0
    %1824 = vmatpush1.msra.mxu0 0.0
    %1825 = vmatprep.subr.mxu0 0.0
    %1826 = vmatpush1.msra.mxu0 0.0
    %1827 = vmatprep.mubr.f32.mxu0 0.0
    %1828 = vmatmul.mubr.f32.gmra.mrb[0].mxu0 %v158
    %v1829 = vpop.f32.mrb[0].mxu0
    %v1830 = vadd.f32 0.0, %v1829
    %v1831 = vpop.f32.mrb[0].mxu0
    %v1832 = vadd.f32 0.0, %v1831
    %1833 = vmatprep.mubr.f32.mxu0 0.0
    %1834 = vmatmul.mubr.f32.gmra.mrb[0].mxu0 %v161
    %v1835 = vpop.f32.mrb[0].mxu0
    %v1836 = vadd.f32 0.0, %v1835
    %v1837 = vpop.f32.mrb[0].mxu0
    %v1838 = vadd.f32 0.0, %v1837
    %1839 = vmatprep.mubr.f32.mxu0 0.0
    %1840 = vmatmul.mubr.f32.gmra.mrb[0].mxu0 %v164
    %v1841 = vpop.f32.mrb[0].mxu0
    %v1842 = vadd.f32 0.0, %v1841
    %v1843 = vpop.f32.mrb[0].mxu0
    %v1844 = vadd.f32 0.0, %v1843
    %1845 = vmatprep.mubr.f32.mxu0 0.0
    %1846 = vmatmul.mubr.f32.gmra.mrb[0].mxu0 %v167
    %v1847 = vpop.f32.mrb[0].mxu0
    %v1848 = vadd.f32 0.0, %v1847
    %v1849 = vpop.f32.mrb[0].mxu0
    %v1850 = vadd.f32 0.0, %v1849
    %1851 = vmatprep.mubr.f32.mxu0 0.0
    %1852 = vmatmul.mubr.f32.gmra.mrb[0].mxu0 %v170
    %v1853 = vpop.f32.mrb[0].mxu0
    %v1854 = vadd.f32 0.0, %v1853
    %v1855 = vpop.f32.mrb[0].mxu0
    %v1856 = vadd.f32 0.0, %v1855
    %1857 = vmatprep.mubr.f32.mxu0 0.0
    %1858 = vmatmul.mubr.f32.gmra.mrb[0].mxu0 %v173
    %v1859 = vpop.f32.mrb[0].mxu0
    %v1860 = vadd.f32 0.0, %v1859
    %v1861 = vpop.f32.mrb[0].mxu0
    %v1862 = vadd.f32 0.0, %v1861
    %1863 = vmatprep.mubr.f32.mxu0 0.0
    %1864 = vmatmul.mubr.f32.gmra.mrb[0].mxu0 %v176
    %v1865 = vpop.f32.mrb[0].mxu0
    %v1866 = vadd.f32 0.0, %v1865
    %v1867 = vpop.f32.mrb[0].mxu0
    %v1868 = vadd.f32 0.0, %v1867
    %1869 = vmatprep.mubr.f32.mxu0 0.0
    %1870 = vmatmul.mubr.f32.gmra.mrb[0].mxu0 %v179
    %v1871 = vpop.f32.mrb[0].mxu0
    %v1872 = vadd.f32 0.0, %v1871
    %v1873 = vpop.f32.mrb[0].mxu0
    %v1874 = vadd.f32 0.0, %v1873
    %1875 = vdwg.mxu0
    %1876 = vmatprep.subr.mxu0 %v107
    %1877 = vmatpush1.msra.mxu0 %v106
    %1878 = vmatprep.subr.mxu0 0.0
    %1879 = vmatpush1.msra.mxu0 0.0
    %1880 = vmatprep.subr.mxu0 0.0
    %1881 = vmatpush1.msra.mxu0 0.0
    %1882 = vmatprep.subr.mxu0 0.0
    %1883 = vmatpush1.msra.mxu0 0.0
    %1884 = vmatprep.subr.mxu0 0.0
    %1885 = vmatpush1.msra.mxu0 0.0
    %1886 = vmatprep.subr.mxu0 0.0
    %1887 = vmatpush1.msra.mxu0 0.0
    %1888 = vmatprep.subr.mxu0 0.0
    %1889 = vmatpush1.msra.mxu0 0.0
    %1890 = vmatprep.subr.mxu0 0.0
    %1891 = vmatpush1.msra.mxu0 0.0
    %1892 = vmatprep.subr.mxu0 0.0
    %1893 = vmatpush1.msra.mxu0 0.0
    %1894 = vmatprep.subr.mxu0 0.0
    %1895 = vmatpush1.msra.mxu0 0.0
    %1896 = vmatprep.subr.mxu0 0.0
    %1897 = vmatpush1.msra.mxu0 0.0
    %1898 = vmatprep.subr.mxu0 0.0
    %1899 = vmatpush1.msra.mxu0 0.0
    %1900 = vmatprep.subr.mxu0 0.0
    %1901 = vmatpush1.msra.mxu0 0.0
    %1902 = vmatprep.subr.mxu0 0.0
    %1903 = vmatpush1.msra.mxu0 0.0
    %1904 = vmatprep.subr.mxu0 0.0
    %1905 = vmatpush1.msra.mxu0 0.0
    %1906 = vmatprep.subr.mxu0 0.0
    %1907 = vmatpush1.msra.mxu0 0.0
    %1908 = vmatprep.subr.mxu0 0.0
    %1909 = vmatpush1.msra.mxu0 0.0
    %1910 = vmatprep.subr.mxu0 0.0
    %1911 = vmatpush1.msra.mxu0 0.0
    %1912 = vmatprep.subr.mxu0 0.0
    %1913 = vmatpush1.msra.mxu0 0.0
    %1914 = vmatprep.subr.mxu0 0.0
    %1915 = vmatpush1.msra.mxu0 0.0
    %1916 = vmatprep.subr.mxu0 0.0
    %1917 = vmatpush1.msra.mxu0 0.0
    %1918 = vmatprep.subr.mxu0 0.0
    %1919 = vmatpush1.msra.mxu0 0.0
    %1920 = vmatprep.subr.mxu0 0.0
    %1921 = vmatpush1.msra.mxu0 0.0
    %1922 = vmatprep.subr.mxu0 0.0
    %1923 = vmatpush1.msra.mxu0 0.0
    %1924 = vmatprep.subr.mxu0 0.0
    %1925 = vmatpush1.msra.mxu0 0.0
    %1926 = vmatprep.subr.mxu0 0.0
    %1927 = vmatpush1.msra.mxu0 0.0
    %1928 = vmatprep.subr.mxu0 0.0
    %1929 = vmatpush1.msra.mxu0 0.0
    %1930 = vmatprep.subr.mxu0 0.0
    %1931 = vmatpush1.msra.mxu0 0.0
    %1932 = vmatprep.subr.mxu0 0.0
    %1933 = vmatpush1.msra.mxu0 0.0
    %1934 = vmatprep.subr.mxu0 0.0
    %1935 = vmatpush1.msra.mxu0 0.0
    %1936 = vmatprep.subr.mxu0 0.0
    %1937 = vmatpush1.msra.mxu0 0.0
    %1938 = vmatprep.subr.mxu0 0.0
    %1939 = vmatpush1.msra.mxu0 0.0
    %1940 = vmatprep.mubr.f32.mxu0 0.0
    %1941 = vmatmul.mubr.f32.gmra.mrb[0].mxu0 %v158
    %v1942 = vpop.f32.mrb[0].mxu0
    %v1943 = vadd.f32 0.0, %v1942
    %v1944 = vpop.f32.mrb[0].mxu0
    %v1945 = vadd.f32 0.0, %v1944
    %1946 = vmatprep.mubr.f32.mxu0 0.0
    %1947 = vmatmul.mubr.f32.gmra.mrb[0].mxu0 %v161
    %v1948 = vpop.f32.mrb[0].mxu0
    %v1949 = vadd.f32 0.0, %v1948
    %v1950 = vpop.f32.mrb[0].mxu0
    %v1951 = vadd.f32 0.0, %v1950
    %1952 = vmatprep.mubr.f32.mxu0 0.0
    %1953 = vmatmul.mubr.f32.gmra.mrb[0].mxu0 %v164
    %v1954 = vpop.f32.mrb[0].mxu0
    %v1955 = vadd.f32 0.0, %v1954
    %v1956 = vpop.f32.mrb[0].mxu0
    %v1957 = vadd.f32 0.0, %v1956
    %1958 = vmatprep.mubr.f32.mxu0 0.0
    %1959 = vmatmul.mubr.f32.gmra.mrb[0].mxu0 %v167
    %v1960 = vpop.f32.mrb[0].mxu0
    %v1961 = vadd.f32 0.0, %v1960
    %v1962 = vpop.f32.mrb[0].mxu0
    %v1963 = vadd.f32 0.0, %v1962
    %1964 = vmatprep.mubr.f32.mxu0 0.0
    %1965 = vmatmul.mubr.f32.gmra.mrb[0].mxu0 %v170
    %v1966 = vpop.f32.mrb[0].mxu0
    %v1967 = vadd.f32 0.0, %v1966
    %v1968 = vpop.f32.mrb[0].mxu0
    %v1969 = vadd.f32 0.0, %v1968
    %1970 = vmatprep.mubr.f32.mxu0 0.0
    %1971 = vmatmul.mubr.f32.gmra.mrb[0].mxu0 %v173
    %v1972 = vpop.f32.mrb[0].mxu0
    %v1973 = vadd.f32 0.0, %v1972
    %v1974 = vpop.f32.mrb[0].mxu0
    %v1975 = vadd.f32 0.0, %v1974
    %1976 = vmatprep.mubr.f32.mxu0 0.0
    %1977 = vmatmul.mubr.f32.gmra.mrb[0].mxu0 %v176
    %v1978 = vpop.f32.mrb[0].mxu0
    %v1979 = vadd.f32 0.0, %v1978
    %v1980 = vpop.f32.mrb[0].mxu0
    %v1981 = vadd.f32 0.0, %v1980
    %1982 = vmatprep.mubr.f32.mxu0 0.0
    %1983 = vmatmul.mubr.f32.gmra.mrb[0].mxu0 %v179
    %v1984 = vpop.f32.mrb[0].mxu0
    %v1985 = vadd.f32 0.0, %v1984
    %v1986 = vpop.f32.mrb[0].mxu0
    %v1987 = vadd.f32 0.0, %v1986
    %1988 = vdwg.mxu0
    %1989 = vmatprep.subr.mxu0 %v109
    %1990 = vmatpush1.msra.mxu0 %v108
    %1991 = vmatprep.subr.mxu0 0.0
    %1992 = vmatpush1.msra.mxu0 0.0
    %1993 = vmatprep.subr.mxu0 0.0
    %1994 = vmatpush1.msra.mxu0 0.0
    %1995 = vmatprep.subr.mxu0 0.0
    %1996 = vmatpush1.msra.mxu0 0.0
    %1997 = vmatprep.subr.mxu0 0.0
    %1998 = vmatpush1.msra.mxu0 0.0
    %1999 = vmatprep.subr.mxu0 0.0
    %2000 = vmatpush1.msra.mxu0 0.0
    %2001 = vmatprep.subr.mxu0 0.0
    %2002 = vmatpush1.msra.mxu0 0.0
    %2003 = vmatprep.subr.mxu0 0.0
    %2004 = vmatpush1.msra.mxu0 0.0
    %2005 = vmatprep.subr.mxu0 0.0
    %2006 = vmatpush1.msra.mxu0 0.0
    %2007 = vmatprep.subr.mxu0 0.0
    %2008 = vmatpush1.msra.mxu0 0.0
    %2009 = vmatprep.subr.mxu0 0.0
    %2010 = vmatpush1.msra.mxu0 0.0
    %2011 = vmatprep.subr.mxu0 0.0
    %2012 = vmatpush1.msra.mxu0 0.0
    %2013 = vmatprep.subr.mxu0 0.0
    %2014 = vmatpush1.msra.mxu0 0.0
    %2015 = vmatprep.subr.mxu0 0.0
    %2016 = vmatpush1.msra.mxu0 0.0
    %2017 = vmatprep.subr.mxu0 0.0
    %2018 = vmatpush1.msra.mxu0 0.0
    %2019 = vmatprep.subr.mxu0 0.0
    %2020 = vmatpush1.msra.mxu0 0.0
    %2021 = vmatprep.subr.mxu0 0.0
    %2022 = vmatpush1.msra.mxu0 0.0
    %2023 = vmatprep.subr.mxu0 0.0
    %2024 = vmatpush1.msra.mxu0 0.0
    %2025 = vmatprep.subr.mxu0 0.0
    %2026 = vmatpush1.msra.mxu0 0.0
    %2027 = vmatprep.subr.mxu0 0.0
    %2028 = vmatpush1.msra.mxu0 0.0
    %2029 = vmatprep.subr.mxu0 0.0
    %2030 = vmatpush1.msra.mxu0 0.0
    %2031 = vmatprep.subr.mxu0 0.0
    %2032 = vmatpush1.msra.mxu0 0.0
    %2033 = vmatprep.subr.mxu0 0.0
    %2034 = vmatpush1.msra.mxu0 0.0
    %2035 = vmatprep.subr.mxu0 0.0
    %2036 = vmatpush1.msra.mxu0 0.0
    %2037 = vmatprep.subr.mxu0 0.0
    %2038 = vmatpush1.msra.mxu0 0.0
    %2039 = vmatprep.subr.mxu0 0.0
    %2040 = vmatpush1.msra.mxu0 0.0
    %2041 = vmatprep.subr.mxu0 0.0
    %2042 = vmatpush1.msra.mxu0 0.0
    %2043 = vmatprep.subr.mxu0 0.0
    %2044 = vmatpush1.msra.mxu0 0.0
    %2045 = vmatprep.subr.mxu0 0.0
    %2046 = vmatpush1.msra.mxu0 0.0
    %2047 = vmatprep.subr.mxu0 0.0
    %2048 = vmatpush1.msra.mxu0 0.0
    %2049 = vmatprep.subr.mxu0 0.0
    %2050 = vmatpush1.msra.mxu0 0.0
    %2051 = vmatprep.subr.mxu0 0.0
    %2052 = vmatpush1.msra.mxu0 0.0
    %2053 = vmatprep.mubr.f32.mxu0 0.0
    %2054 = vmatmul.mubr.f32.gmra.mrb[0].mxu0 %v158
    %v2055 = vpop.f32.mrb[0].mxu0
    %v2056 = vadd.f32 0.0, %v2055
    %v2057 = vpop.f32.mrb[0].mxu0
    %v2058 = vadd.f32 0.0, %v2057
    %2059 = vmatprep.mubr.f32.mxu0 0.0
    %2060 = vmatmul.mubr.f32.gmra.mrb[0].mxu0 %v161
    %v2061 = vpop.f32.mrb[0].mxu0
    %v2062 = vadd.f32 0.0, %v2061
    %v2063 = vpop.f32.mrb[0].mxu0
    %v2064 = vadd.f32 0.0, %v2063
    %2065 = vmatprep.mubr.f32.mxu0 0.0
    %2066 = vmatmul.mubr.f32.gmra.mrb[0].mxu0 %v164
    %v2067 = vpop.f32.mrb[0].mxu0
    %v2068 = vadd.f32 0.0, %v2067
    %v2069 = vpop.f32.mrb[0].mxu0
    %v2070 = vadd.f32 0.0, %v2069
    %2071 = vmatprep.mubr.f32.mxu0 0.0
    %2072 = vmatmul.mubr.f32.gmra.mrb[0].mxu0 %v167
    %v2073 = vpop.f32.mrb[0].mxu0
    %v2074 = vadd.f32 0.0, %v2073
    %v2075 = vpop.f32.mrb[0].mxu0
    %v2076 = vadd.f32 0.0, %v2075
    %2077 = vmatprep.mubr.f32.mxu0 0.0
    %2078 = vmatmul.mubr.f32.gmra.mrb[0].mxu0 %v170
    %v2079 = vpop.f32.mrb[0].mxu0
    %v2080 = vadd.f32 0.0, %v2079
    %v2081 = vpop.f32.mrb[0].mxu0
    %v2082 = vadd.f32 0.0, %v2081
    %2083 = vmatprep.mubr.f32.mxu0 0.0
    %2084 = vmatmul.mubr.f32.gmra.mrb[0].mxu0 %v173
    %v2085 = vpop.f32.mrb[0].mxu0
    %v2086 = vadd.f32 0.0, %v2085
    %v2087 = vpop.f32.mrb[0].mxu0
    %v2088 = vadd.f32 0.0, %v2087
    %2089 = vmatprep.mubr.f32.mxu0 0.0
    %2090 = vmatmul.mubr.f32.gmra.mrb[0].mxu0 %v176
    %v2091 = vpop.f32.mrb[0].mxu0
    %v2092 = vadd.f32 0.0, %v2091
    %v2093 = vpop.f32.mrb[0].mxu0
    %v2094 = vadd.f32 0.0, %v2093
    %2095 = vmatprep.mubr.f32.mxu0 0.0
    %2096 = vmatmul.mubr.f32.gmra.mrb[0].mxu0 %v179
    %v2097 = vpop.f32.mrb[0].mxu0
    %v2098 = vadd.f32 0.0, %v2097
    %v2099 = vpop.f32.mrb[0].mxu0
    %v2100 = vadd.f32 0.0, %v2099
    %2101 = vdwg.mxu0
    %2102 = vmatprep.subr.mxu0 %v111
    %2103 = vmatpush1.msra.mxu0 %v110
    %2104 = vmatprep.subr.mxu0 0.0
    %2105 = vmatpush1.msra.mxu0 0.0
    %2106 = vmatprep.subr.mxu0 0.0
    %2107 = vmatpush1.msra.mxu0 0.0
    %2108 = vmatprep.subr.mxu0 0.0
    %2109 = vmatpush1.msra.mxu0 0.0
    %2110 = vmatprep.subr.mxu0 0.0
    %2111 = vmatpush1.msra.mxu0 0.0
    %2112 = vmatprep.subr.mxu0 0.0
    %2113 = vmatpush1.msra.mxu0 0.0
    %2114 = vmatprep.subr.mxu0 0.0
    %2115 = vmatpush1.msra.mxu0 0.0
    %2116 = vmatprep.subr.mxu0 0.0
    %2117 = vmatpush1.msra.mxu0 0.0
    %2118 = vmatprep.subr.mxu0 0.0
    %2119 = vmatpush1.msra.mxu0 0.0
    %2120 = vmatprep.subr.mxu0 0.0
    %2121 = vmatpush1.msra.mxu0 0.0
    %2122 = vmatprep.subr.mxu0 0.0
    %2123 = vmatpush1.msra.mxu0 0.0
    %2124 = vmatprep.subr.mxu0 0.0
    %2125 = vmatpush1.msra.mxu0 0.0
    %2126 = vmatprep.subr.mxu0 0.0
    %2127 = vmatpush1.msra.mxu0 0.0
    %2128 = vmatprep.subr.mxu0 0.0
    %2129 = vmatpush1.msra.mxu0 0.0
    %2130 = vmatprep.subr.mxu0 0.0
    %2131 = vmatpush1.msra.mxu0 0.0
    %2132 = vmatprep.subr.mxu0 0.0
    %2133 = vmatpush1.msra.mxu0 0.0
    %2134 = vmatprep.subr.mxu0 0.0
    %2135 = vmatpush1.msra.mxu0 0.0
    %2136 = vmatprep.subr.mxu0 0.0
    %2137 = vmatpush1.msra.mxu0 0.0
    %2138 = vmatprep.subr.mxu0 0.0
    %2139 = vmatpush1.msra.mxu0 0.0
    %2140 = vmatprep.subr.mxu0 0.0
    %2141 = vmatpush1.msra.mxu0 0.0
    %2142 = vmatprep.subr.mxu0 0.0
    %2143 = vmatpush1.msra.mxu0 0.0
    %2144 = vmatprep.subr.mxu0 0.0
    %2145 = vmatpush1.msra.mxu0 0.0
    %2146 = vmatprep.subr.mxu0 0.0
    %2147 = vmatpush1.msra.mxu0 0.0
    %2148 = vmatprep.subr.mxu0 0.0
    %2149 = vmatpush1.msra.mxu0 0.0
    %2150 = vmatprep.subr.mxu0 0.0
    %2151 = vmatpush1.msra.mxu0 0.0
    %2152 = vmatprep.subr.mxu0 0.0
    %2153 = vmatpush1.msra.mxu0 0.0
    %2154 = vmatprep.subr.mxu0 0.0
    %2155 = vmatpush1.msra.mxu0 0.0
    %2156 = vmatprep.subr.mxu0 0.0
    %2157 = vmatpush1.msra.mxu0 0.0
    %2158 = vmatprep.subr.mxu0 0.0
    %2159 = vmatpush1.msra.mxu0 0.0
    %2160 = vmatprep.subr.mxu0 0.0
    %2161 = vmatpush1.msra.mxu0 0.0
    %2162 = vmatprep.subr.mxu0 0.0
    %2163 = vmatpush1.msra.mxu0 0.0
    %2164 = vmatprep.subr.mxu0 0.0
    %2165 = vmatpush1.msra.mxu0 0.0
    %2166 = vmatprep.mubr.f32.mxu0 0.0
    %2167 = vmatmul.mubr.f32.gmra.mrb[0].mxu0 %v158
    %v2168 = vpop.f32.mrb[0].mxu0
    %v2169 = vadd.f32 0.0, %v2168
    %v2170 = vpop.f32.mrb[0].mxu0
    %v2171 = vadd.f32 0.0, %v2170
    %2172 = vmatprep.mubr.f32.mxu0 0.0
    %2173 = vmatmul.mubr.f32.gmra.mrb[0].mxu0 %v161
    %v2174 = vpop.f32.mrb[0].mxu0
    %v2175 = vadd.f32 0.0, %v2174
    %v2176 = vpop.f32.mrb[0].mxu0
    %v2177 = vadd.f32 0.0, %v2176
    %2178 = vmatprep.mubr.f32.mxu0 0.0
    %2179 = vmatmul.mubr.f32.gmra.mrb[0].mxu0 %v164
    %v2180 = vpop.f32.mrb[0].mxu0
    %v2181 = vadd.f32 0.0, %v2180
    %v2182 = vpop.f32.mrb[0].mxu0
    %v2183 = vadd.f32 0.0, %v2182
    %2184 = vmatprep.mubr.f32.mxu0 0.0
    %2185 = vmatmul.mubr.f32.gmra.mrb[0].mxu0 %v167
    %v2186 = vpop.f32.mrb[0].mxu0
    %v2187 = vadd.f32 0.0, %v2186
    %v2188 = vpop.f32.mrb[0].mxu0
    %v2189 = vadd.f32 0.0, %v2188
    %2190 = vmatprep.mubr.f32.mxu0 0.0
    %2191 = vmatmul.mubr.f32.gmra.mrb[0].mxu0 %v170
    %v2192 = vpop.f32.mrb[0].mxu0
    %v2193 = vadd.f32 0.0, %v2192
    %v2194 = vpop.f32.mrb[0].mxu0
    %v2195 = vadd.f32 0.0, %v2194
    %2196 = vmatprep.mubr.f32.mxu0 0.0
    %2197 = vmatmul.mubr.f32.gmra.mrb[0].mxu0 %v173
    %v2198 = vpop.f32.mrb[0].mxu0
    %v2199 = vadd.f32 0.0, %v2198
    %v2200 = vpop.f32.mrb[0].mxu0
    %v2201 = vadd.f32 0.0, %v2200
    %2202 = vmatprep.mubr.f32.mxu0 0.0
    %2203 = vmatmul.mubr.f32.gmra.mrb[0].mxu0 %v176
    %v2204 = vpop.f32.mrb[0].mxu0
    %v2205 = vadd.f32 0.0, %v2204
    %v2206 = vpop.f32.mrb[0].mxu0
    %v2207 = vadd.f32 0.0, %v2206
    %2208 = vmatprep.mubr.f32.mxu0 0.0
    %2209 = vmatmul.mubr.f32.gmra.mrb[0].mxu0 %v179
    %v2210 = vpop.f32.mrb[0].mxu0
    %v2211 = vadd.f32 0.0, %v2210
    %v2212 = vpop.f32.mrb[0].mxu0
    %v2213 = vadd.f32 0.0, %v2212
    %2214 = vdwg.mxu0
    %2215 = vmatprep.subr.mxu0 %v113
    %2216 = vmatpush1.msra.mxu0 %v112
    %2217 = vmatprep.subr.mxu0 0.0
    %2218 = vmatpush1.msra.mxu0 0.0
    %2219 = vmatprep.subr.mxu0 0.0
    %2220 = vmatpush1.msra.mxu0 0.0
    %2221 = vmatprep.subr.mxu0 0.0
    %2222 = vmatpush1.msra.mxu0 0.0
    %2223 = vmatprep.subr.mxu0 0.0
    %2224 = vmatpush1.msra.mxu0 0.0
    %2225 = vmatprep.subr.mxu0 0.0
    %2226 = vmatpush1.msra.mxu0 0.0
    %2227 = vmatprep.subr.mxu0 0.0
    %2228 = vmatpush1.msra.mxu0 0.0
    %2229 = vmatprep.subr.mxu0 0.0
    %2230 = vmatpush1.msra.mxu0 0.0
    %2231 = vmatprep.subr.mxu0 0.0
    %2232 = vmatpush1.msra.mxu0 0.0
    %2233 = vmatprep.subr.mxu0 0.0
    %2234 = vmatpush1.msra.mxu0 0.0
    %2235 = vmatprep.subr.mxu0 0.0
    %2236 = vmatpush1.msra.mxu0 0.0
    %2237 = vmatprep.subr.mxu0 0.0
    %2238 = vmatpush1.msra.mxu0 0.0
    %2239 = vmatprep.subr.mxu0 0.0
    %2240 = vmatpush1.msra.mxu0 0.0
    %2241 = vmatprep.subr.mxu0 0.0
    %2242 = vmatpush1.msra.mxu0 0.0
    %2243 = vmatprep.subr.mxu0 0.0
    %2244 = vmatpush1.msra.mxu0 0.0
    %2245 = vmatprep.subr.mxu0 0.0
    %2246 = vmatpush1.msra.mxu0 0.0
    %2247 = vmatprep.subr.mxu0 0.0
    %2248 = vmatpush1.msra.mxu0 0.0
    %2249 = vmatprep.subr.mxu0 0.0
    %2250 = vmatpush1.msra.mxu0 0.0
    %2251 = vmatprep.subr.mxu0 0.0
    %2252 = vmatpush1.msra.mxu0 0.0
    %2253 = vmatprep.subr.mxu0 0.0
    %2254 = vmatpush1.msra.mxu0 0.0
    %2255 = vmatprep.subr.mxu0 0.0
    %2256 = vmatpush1.msra.mxu0 0.0
    %2257 = vmatprep.subr.mxu0 0.0
    %2258 = vmatpush1.msra.mxu0 0.0
    %2259 = vmatprep.subr.mxu0 0.0
    %2260 = vmatpush1.msra.mxu0 0.0
    %2261 = vmatprep.subr.mxu0 0.0
    %2262 = vmatpush1.msra.mxu0 0.0
    %2263 = vmatprep.subr.mxu0 0.0
    %2264 = vmatpush1.msra.mxu0 0.0
    %2265 = vmatprep.subr.mxu0 0.0
    %2266 = vmatpush1.msra.mxu0 0.0
    %2267 = vmatprep.subr.mxu0 0.0
    %2268 = vmatpush1.msra.mxu0 0.0
    %2269 = vmatprep.subr.mxu0 0.0
    %2270 = vmatpush1.msra.mxu0 0.0
    %2271 = vmatprep.subr.mxu0 0.0
    %2272 = vmatpush1.msra.mxu0 0.0
    %2273 = vmatprep.subr.mxu0 0.0
    %2274 = vmatpush1.msra.mxu0 0.0
    %2275 = vmatprep.subr.mxu0 0.0
    %2276 = vmatpush1.msra.mxu0 0.0
    %2277 = vmatprep.subr.mxu0 0.0
    %2278 = vmatpush1.msra.mxu0 0.0
    %2279 = vmatprep.mubr.f32.mxu0 0.0
    %2280 = vmatmul.mubr.f32.gmra.mrb[0].mxu0 %v158
    %v2281 = vpop.f32.mrb[0].mxu0
    %v2282 = vadd.f32 0.0, %v2281
    %v2283 = vpop.f32.mrb[0].mxu0
    %v2284 = vadd.f32 0.0, %v2283
    %2285 = vmatprep.mubr.f32.mxu0 0.0
    %2286 = vmatmul.mubr.f32.gmra.mrb[0].mxu0 %v161
    %v2287 = vpop.f32.mrb[0].mxu0
    %v2288 = vadd.f32 0.0, %v2287
    %v2289 = vpop.f32.mrb[0].mxu0
    %v2290 = vadd.f32 0.0, %v2289
    %2291 = vmatprep.mubr.f32.mxu0 0.0
    %2292 = vmatmul.mubr.f32.gmra.mrb[0].mxu0 %v164
    %v2293 = vpop.f32.mrb[0].mxu0
    %v2294 = vadd.f32 0.0, %v2293
    %v2295 = vpop.f32.mrb[0].mxu0
    %v2296 = vadd.f32 0.0, %v2295
    %2297 = vmatprep.mubr.f32.mxu0 0.0
    %2298 = vmatmul.mubr.f32.gmra.mrb[0].mxu0 %v167
    %v2299 = vpop.f32.mrb[0].mxu0
    %v2300 = vadd.f32 0.0, %v2299
    %v2301 = vpop.f32.mrb[0].mxu0
    %v2302 = vadd.f32 0.0, %v2301
    %2303 = vmatprep.mubr.f32.mxu0 0.0
    %2304 = vmatmul.mubr.f32.gmra.mrb[0].mxu0 %v170
    %v2305 = vpop.f32.mrb[0].mxu0
    %v2306 = vadd.f32 0.0, %v2305
    %v2307 = vpop.f32.mrb[0].mxu0
    %v2308 = vadd.f32 0.0, %v2307
    %2309 = vmatprep.mubr.f32.mxu0 0.0
    %2310 = vmatmul.mubr.f32.gmra.mrb[0].mxu0 %v173
    %v2311 = vpop.f32.mrb[0].mxu0
    %v2312 = vadd.f32 0.0, %v2311
    %v2313 = vpop.f32.mrb[0].mxu0
    %v2314 = vadd.f32 0.0, %v2313
    %2315 = vmatprep.mubr.f32.mxu0 0.0
    %2316 = vmatmul.mubr.f32.gmra.mrb[0].mxu0 %v176
    %v2317 = vpop.f32.mrb[0].mxu0
    %v2318 = vadd.f32 0.0, %v2317
    %v2319 = vpop.f32.mrb[0].mxu0
    %v2320 = vadd.f32 0.0, %v2319
    %2321 = vmatprep.mubr.f32.mxu0 0.0
    %2322 = vmatmul.mubr.f32.gmra.mrb[0].mxu0 %v179
    %v2323 = vpop.f32.mrb[0].mxu0
    %v2324 = vadd.f32 0.0, %v2323
    %v2325 = vpop.f32.mrb[0].mxu0
    %v2326 = vadd.f32 0.0, %v2325
    %2327 = vdwg.mxu0
    %2328 = vmatprep.subr.mxu0 %v115
    %2329 = vmatpush1.msra.mxu0 %v114
    %2330 = vmatprep.subr.mxu0 0.0
    %2331 = vmatpush1.msra.mxu0 0.0
    %2332 = vmatprep.subr.mxu0 0.0
    %2333 = vmatpush1.msra.mxu0 0.0
    %2334 = vmatprep.subr.mxu0 0.0
    %2335 = vmatpush1.msra.mxu0 0.0
    %2336 = vmatprep.subr.mxu0 0.0
    %2337 = vmatpush1.msra.mxu0 0.0
    %2338 = vmatprep.subr.mxu0 0.0
    %2339 = vmatpush1.msra.mxu0 0.0
    %2340 = vmatprep.subr.mxu0 0.0
    %2341 = vmatpush1.msra.mxu0 0.0
    %2342 = vmatprep.subr.mxu0 0.0
    %2343 = vmatpush1.msra.mxu0 0.0
    %2344 = vmatprep.subr.mxu0 0.0
    %2345 = vmatpush1.msra.mxu0 0.0
    %2346 = vmatprep.subr.mxu0 0.0
    %2347 = vmatpush1.msra.mxu0 0.0
    %2348 = vmatprep.subr.mxu0 0.0
    %2349 = vmatpush1.msra.mxu0 0.0
    %2350 = vmatprep.subr.mxu0 0.0
    %2351 = vmatpush1.msra.mxu0 0.0
    %2352 = vmatprep.subr.mxu0 0.0
    %2353 = vmatpush1.msra.mxu0 0.0
    %2354 = vmatprep.subr.mxu0 0.0
    %2355 = vmatpush1.msra.mxu0 0.0
    %2356 = vmatprep.subr.mxu0 0.0
    %2357 = vmatpush1.msra.mxu0 0.0
    %2358 = vmatprep.subr.mxu0 0.0
    %2359 = vmatpush1.msra.mxu0 0.0
    %2360 = vmatprep.subr.mxu0 0.0
    %2361 = vmatpush1.msra.mxu0 0.0
    %2362 = vmatprep.subr.mxu0 0.0
    %2363 = vmatpush1.msra.mxu0 0.0
    %2364 = vmatprep.subr.mxu0 0.0
    %2365 = vmatpush1.msra.mxu0 0.0
    %2366 = vmatprep.subr.mxu0 0.0
    %2367 = vmatpush1.msra.mxu0 0.0
    %2368 = vmatprep.subr.mxu0 0.0
    %2369 = vmatpush1.msra.mxu0 0.0
    %2370 = vmatprep.subr.mxu0 0.0
    %2371 = vmatpush1.msra.mxu0 0.0
    %2372 = vmatprep.subr.mxu0 0.0
    %2373 = vmatpush1.msra.mxu0 0.0
    %2374 = vmatprep.subr.mxu0 0.0
    %2375 = vmatpush1.msra.mxu0 0.0
    %2376 = vmatprep.subr.mxu0 0.0
    %2377 = vmatpush1.msra.mxu0 0.0
    %2378 = vmatprep.subr.mxu0 0.0
    %2379 = vmatpush1.msra.mxu0 0.0
    %2380 = vmatprep.subr.mxu0 0.0
    %2381 = vmatpush1.msra.mxu0 0.0
    %2382 = vmatprep.subr.mxu0 0.0
    %2383 = vmatpush1.msra.mxu0 0.0
    %2384 = vmatprep.subr.mxu0 0.0
    %2385 = vmatpush1.msra.mxu0 0.0
    %2386 = vmatprep.subr.mxu0 0.0
    %2387 = vmatpush1.msra.mxu0 0.0
    %2388 = vmatprep.subr.mxu0 0.0
    %2389 = vmatpush1.msra.mxu0 0.0
    %2390 = vmatprep.subr.mxu0 0.0
    %2391 = vmatpush1.msra.mxu0 0.0
    %2392 = vmatprep.mubr.f32.mxu0 0.0
    %2393 = vmatmul.mubr.f32.gmra.mrb[0].mxu0 %v158
    %v2394 = vpop.f32.mrb[0].mxu0
    %v2395 = vadd.f32 0.0, %v2394
    %v2396 = vpop.f32.mrb[0].mxu0
    %v2397 = vadd.f32 0.0, %v2396
    %2398 = vmatprep.mubr.f32.mxu0 0.0
    %2399 = vmatmul.mubr.f32.gmra.mrb[0].mxu0 %v161
    %v2400 = vpop.f32.mrb[0].mxu0
    %v2401 = vadd.f32 0.0, %v2400
    %v2402 = vpop.f32.mrb[0].mxu0
    %v2403 = vadd.f32 0.0, %v2402
    %2404 = vmatprep.mubr.f32.mxu0 0.0
    %2405 = vmatmul.mubr.f32.gmra.mrb[0].mxu0 %v164
    %v2406 = vpop.f32.mrb[0].mxu0
    %v2407 = vadd.f32 0.0, %v2406
    %v2408 = vpop.f32.mrb[0].mxu0
    %v2409 = vadd.f32 0.0, %v2408
    %2410 = vmatprep.mubr.f32.mxu0 0.0
    %2411 = vmatmul.mubr.f32.gmra.mrb[0].mxu0 %v167
    %v2412 = vpop.f32.mrb[0].mxu0
    %v2413 = vadd.f32 0.0, %v2412
    %v2414 = vpop.f32.mrb[0].mxu0
    %v2415 = vadd.f32 0.0, %v2414
    %2416 = vmatprep.mubr.f32.mxu0 0.0
    %2417 = vmatmul.mubr.f32.gmra.mrb[0].mxu0 %v170
    %v2418 = vpop.f32.mrb[0].mxu0
    %v2419 = vadd.f32 0.0, %v2418
    %v2420 = vpop.f32.mrb[0].mxu0
    %v2421 = vadd.f32 0.0, %v2420
    %2422 = vmatprep.mubr.f32.mxu0 0.0
    %2423 = vmatmul.mubr.f32.gmra.mrb[0].mxu0 %v173
    %v2424 = vpop.f32.mrb[0].mxu0
    %v2425 = vadd.f32 0.0, %v2424
    %v2426 = vpop.f32.mrb[0].mxu0
    %v2427 = vadd.f32 0.0, %v2426
    %2428 = vmatprep.mubr.f32.mxu0 0.0
    %2429 = vmatmul.mubr.f32.gmra.mrb[0].mxu0 %v176
    %v2430 = vpop.f32.mrb[0].mxu0
    %v2431 = vadd.f32 0.0, %v2430
    %v2432 = vpop.f32.mrb[0].mxu0
    %v2433 = vadd.f32 0.0, %v2432
    %2434 = vmatprep.mubr.f32.mxu0 0.0
    %2435 = vmatmul.mubr.f32.gmra.mrb[0].mxu0 %v179
    %v2436 = vpop.f32.mrb[0].mxu0
    %v2437 = vadd.f32 0.0, %v2436
    %v2438 = vpop.f32.mrb[0].mxu0
    %v2439 = vadd.f32 0.0, %v2438
    %2440 = vdwg.mxu0
    %2441 = vmatprep.subr.mxu0 %v117
    %2442 = vmatpush1.msra.mxu0 %v116
    %2443 = vmatprep.subr.mxu0 0.0
    %2444 = vmatpush1.msra.mxu0 0.0
    %2445 = vmatprep.subr.mxu0 0.0
    %2446 = vmatpush1.msra.mxu0 0.0
    %2447 = vmatprep.subr.mxu0 0.0
    %2448 = vmatpush1.msra.mxu0 0.0
    %2449 = vmatprep.subr.mxu0 0.0
    %2450 = vmatpush1.msra.mxu0 0.0
    %2451 = vmatprep.subr.mxu0 0.0
    %2452 = vmatpush1.msra.mxu0 0.0
    %2453 = vmatprep.subr.mxu0 0.0
    %2454 = vmatpush1.msra.mxu0 0.0
    %2455 = vmatprep.subr.mxu0 0.0
    %2456 = vmatpush1.msra.mxu0 0.0
    %2457 = vmatprep.subr.mxu0 0.0
    %2458 = vmatpush1.msra.mxu0 0.0
    %2459 = vmatprep.subr.mxu0 0.0
    %2460 = vmatpush1.msra.mxu0 0.0
    %2461 = vmatprep.subr.mxu0 0.0
    %2462 = vmatpush1.msra.mxu0 0.0
    %2463 = vmatprep.subr.mxu0 0.0
    %2464 = vmatpush1.msra.mxu0 0.0
    %2465 = vmatprep.subr.mxu0 0.0
    %2466 = vmatpush1.msra.mxu0 0.0
    %2467 = vmatprep.subr.mxu0 0.0
    %2468 = vmatpush1.msra.mxu0 0.0
    %2469 = vmatprep.subr.mxu0 0.0
    %2470 = vmatpush1.msra.mxu0 0.0
    %2471 = vmatprep.subr.mxu0 0.0
    %2472 = vmatpush1.msra.mxu0 0.0
    %2473 = vmatprep.subr.mxu0 0.0
    %2474 = vmatpush1.msra.mxu0 0.0
    %2475 = vmatprep.subr.mxu0 0.0
    %2476 = vmatpush1.msra.mxu0 0.0
    %2477 = vmatprep.subr.mxu0 0.0
    %2478 = vmatpush1.msra.mxu0 0.0
    %2479 = vmatprep.subr.mxu0 0.0
    %2480 = vmatpush1.msra.mxu0 0.0
    %2481 = vmatprep.subr.mxu0 0.0
    %2482 = vmatpush1.msra.mxu0 0.0
    %2483 = vmatprep.subr.mxu0 0.0
    %2484 = vmatpush1.msra.mxu0 0.0
    %2485 = vmatprep.subr.mxu0 0.0
    %2486 = vmatpush1.msra.mxu0 0.0
    %2487 = vmatprep.subr.mxu0 0.0
    %2488 = vmatpush1.msra.mxu0 0.0
    %2489 = vmatprep.subr.mxu0 0.0
    %2490 = vmatpush1.msra.mxu0 0.0
    %2491 = vmatprep.subr.mxu0 0.0
    %2492 = vmatpush1.msra.mxu0 0.0
    %2493 = vmatprep.subr.mxu0 0.0
    %2494 = vmatpush1.msra.mxu0 0.0
    %2495 = vmatprep.subr.mxu0 0.0
    %2496 = vmatpush1.msra.mxu0 0.0
    %2497 = vmatprep.subr.mxu0 0.0
    %2498 = vmatpush1.msra.mxu0 0.0
    %2499 = vmatprep.subr.mxu0 0.0
    %2500 = vmatpush1.msra.mxu0 0.0
    %2501 = vmatprep.subr.mxu0 0.0
    %2502 = vmatpush1.msra.mxu0 0.0
    %2503 = vmatprep.subr.mxu0 0.0
    %2504 = vmatpush1.msra.mxu0 0.0
    %2505 = vmatprep.mubr.f32.mxu0 0.0
    %2506 = vmatmul.mubr.f32.gmra.mrb[0].mxu0 %v158
    %v2507 = vpop.f32.mrb[0].mxu0
    %v2508 = vadd.f32 0.0, %v2507
    %v2509 = vpop.f32.mrb[0].mxu0
    %v2510 = vadd.f32 0.0, %v2509
    %2511 = vmatprep.mubr.f32.mxu0 0.0
    %2512 = vmatmul.mubr.f32.gmra.mrb[0].mxu0 %v161
    %v2513 = vpop.f32.mrb[0].mxu0
    %v2514 = vadd.f32 0.0, %v2513
    %v2515 = vpop.f32.mrb[0].mxu0
    %v2516 = vadd.f32 0.0, %v2515
    %2517 = vmatprep.mubr.f32.mxu0 0.0
    %2518 = vmatmul.mubr.f32.gmra.mrb[0].mxu0 %v164
    %v2519 = vpop.f32.mrb[0].mxu0
    %v2520 = vadd.f32 0.0, %v2519
    %v2521 = vpop.f32.mrb[0].mxu0
    %v2522 = vadd.f32 0.0, %v2521
    %2523 = vmatprep.mubr.f32.mxu0 0.0
    %2524 = vmatmul.mubr.f32.gmra.mrb[0].mxu0 %v167
    %v2525 = vpop.f32.mrb[0].mxu0
    %v2526 = vadd.f32 0.0, %v2525
    %v2527 = vpop.f32.mrb[0].mxu0
    %v2528 = vadd.f32 0.0, %v2527
    %2529 = vmatprep.mubr.f32.mxu0 0.0
    %2530 = vmatmul.mubr.f32.gmra.mrb[0].mxu0 %v170
    %v2531 = vpop.f32.mrb[0].mxu0
    %v2532 = vadd.f32 0.0, %v2531
    %v2533 = vpop.f32.mrb[0].mxu0
    %v2534 = vadd.f32 0.0, %v2533
    %2535 = vmatprep.mubr.f32.mxu0 0.0
    %2536 = vmatmul.mubr.f32.gmra.mrb[0].mxu0 %v173
    %v2537 = vpop.f32.mrb[0].mxu0
    %v2538 = vadd.f32 0.0, %v2537
    %v2539 = vpop.f32.mrb[0].mxu0
    %v2540 = vadd.f32 0.0, %v2539
    %2541 = vmatprep.mubr.f32.mxu0 0.0
    %2542 = vmatmul.mubr.f32.gmra.mrb[0].mxu0 %v176
    %v2543 = vpop.f32.mrb[0].mxu0
    %v2544 = vadd.f32 0.0, %v2543
    %v2545 = vpop.f32.mrb[0].mxu0
    %v2546 = vadd.f32 0.0, %v2545
    %2547 = vmatprep.mubr.f32.mxu0 0.0
    %2548 = vmatmul.mubr.f32.gmra.mrb[0].mxu0 %v179
    %v2549 = vpop.f32.mrb[0].mxu0
    %v2550 = vadd.f32 0.0, %v2549
    %v2551 = vpop.f32.mrb[0].mxu0
    %v2552 = vadd.f32 0.0, %v2551
    %2553 = vdwg.mxu0
    %2554 = vmatprep.subr.mxu0 %v119
    %2555 = vmatpush1.msra.mxu0 %v118
    %2556 = vmatprep.subr.mxu0 0.0
    %2557 = vmatpush1.msra.mxu0 0.0
    %2558 = vmatprep.subr.mxu0 0.0
    %2559 = vmatpush1.msra.mxu0 0.0
    %2560 = vmatprep.subr.mxu0 0.0
    %2561 = vmatpush1.msra.mxu0 0.0
    %2562 = vmatprep.subr.mxu0 0.0
    %2563 = vmatpush1.msra.mxu0 0.0
    %2564 = vmatprep.subr.mxu0 0.0
    %2565 = vmatpush1.msra.mxu0 0.0
    %2566 = vmatprep.subr.mxu0 0.0
    %2567 = vmatpush1.msra.mxu0 0.0
    %2568 = vmatprep.subr.mxu0 0.0
    %2569 = vmatpush1.msra.mxu0 0.0
    %2570 = vmatprep.subr.mxu0 0.0
    %2571 = vmatpush1.msra.mxu0 0.0
    %2572 = vmatprep.subr.mxu0 0.0
    %2573 = vmatpush1.msra.mxu0 0.0
    %2574 = vmatprep.subr.mxu0 0.0
    %2575 = vmatpush1.msra.mxu0 0.0
    %2576 = vmatprep.subr.mxu0 0.0
    %2577 = vmatpush1.msra.mxu0 0.0
    %2578 = vmatprep.subr.mxu0 0.0
    %2579 = vmatpush1.msra.mxu0 0.0
    %2580 = vmatprep.subr.mxu0 0.0
    %2581 = vmatpush1.msra.mxu0 0.0
    %2582 = vmatprep.subr.mxu0 0.0
    %2583 = vmatpush1.msra.mxu0 0.0
    %2584 = vmatprep.subr.mxu0 0.0
    %2585 = vmatpush1.msra.mxu0 0.0
    %2586 = vmatprep.subr.mxu0 0.0
    %2587 = vmatpush1.msra.mxu0 0.0
    %2588 = vmatprep.subr.mxu0 0.0
    %2589 = vmatpush1.msra.mxu0 0.0
    %2590 = vmatprep.subr.mxu0 0.0
    %2591 = vmatpush1.msra.mxu0 0.0
    %2592 = vmatprep.subr.mxu0 0.0
    %2593 = vmatpush1.msra.mxu0 0.0
    %2594 = vmatprep.subr.mxu0 0.0
    %2595 = vmatpush1.msra.mxu0 0.0
    %2596 = vmatprep.subr.mxu0 0.0
    %2597 = vmatpush1.msra.mxu0 0.0
    %2598 = vmatprep.subr.mxu0 0.0
    %2599 = vmatpush1.msra.mxu0 0.0
    %2600 = vmatprep.subr.mxu0 0.0
    %2601 = vmatpush1.msra.mxu0 0.0
    %2602 = vmatprep.subr.mxu0 0.0
    %2603 = vmatpush1.msra.mxu0 0.0
    %2604 = vmatprep.subr.mxu0 0.0
    %2605 = vmatpush1.msra.mxu0 0.0
    %2606 = vmatprep.subr.mxu0 0.0
    %2607 = vmatpush1.msra.mxu0 0.0
    %2608 = vmatprep.subr.mxu0 0.0
    %2609 = vmatpush1.msra.mxu0 0.0
    %2610 = vmatprep.subr.mxu0 0.0
    %2611 = vmatpush1.msra.mxu0 0.0
    %2612 = vmatprep.subr.mxu0 0.0
    %2613 = vmatpush1.msra.mxu0 0.0
    %2614 = vmatprep.subr.mxu0 0.0
    %2615 = vmatpush1.msra.mxu0 0.0
    %2616 = vmatprep.subr.mxu0 0.0
    %2617 = vmatpush1.msra.mxu0 0.0
    %2618 = vmatprep.mubr.f32.mxu0 0.0
    %2619 = vmatmul.mubr.f32.gmra.mrb[0].mxu0 %v158
    %v2620 = vpop.f32.mrb[0].mxu0
    %v2621 = vadd.f32 0.0, %v2620
    %v2622 = vpop.f32.mrb[0].mxu0
    %v2623 = vadd.f32 0.0, %v2622
    %2624 = vmatprep.mubr.f32.mxu0 0.0
    %2625 = vmatmul.mubr.f32.gmra.mrb[0].mxu0 %v161
    %v2626 = vpop.f32.mrb[0].mxu0
    %v2627 = vadd.f32 0.0, %v2626
    %v2628 = vpop.f32.mrb[0].mxu0
    %v2629 = vadd.f32 0.0, %v2628
    %2630 = vmatprep.mubr.f32.mxu0 0.0
    %2631 = vmatmul.mubr.f32.gmra.mrb[0].mxu0 %v164
    %v2632 = vpop.f32.mrb[0].mxu0
    %v2633 = vadd.f32 0.0, %v2632
    %v2634 = vpop.f32.mrb[0].mxu0
    %v2635 = vadd.f32 0.0, %v2634
    %2636 = vmatprep.mubr.f32.mxu0 0.0
    %2637 = vmatmul.mubr.f32.gmra.mrb[0].mxu0 %v167
    %v2638 = vpop.f32.mrb[0].mxu0
    %v2639 = vadd.f32 0.0, %v2638
    %v2640 = vpop.f32.mrb[0].mxu0
    %v2641 = vadd.f32 0.0, %v2640
    %2642 = vmatprep.mubr.f32.mxu0 0.0
    %2643 = vmatmul.mubr.f32.gmra.mrb[0].mxu0 %v170
    %v2644 = vpop.f32.mrb[0].mxu0
    %v2645 = vadd.f32 0.0, %v2644
    %v2646 = vpop.f32.mrb[0].mxu0
    %v2647 = vadd.f32 0.0, %v2646
    %2648 = vmatprep.mubr.f32.mxu0 0.0
    %2649 = vmatmul.mubr.f32.gmra.mrb[0].mxu0 %v173
    %v2650 = vpop.f32.mrb[0].mxu0
    %v2651 = vadd.f32 0.0, %v2650
    %v2652 = vpop.f32.mrb[0].mxu0
    %v2653 = vadd.f32 0.0, %v2652
    %2654 = vmatprep.mubr.f32.mxu0 0.0
    %2655 = vmatmul.mubr.f32.gmra.mrb[0].mxu0 %v176
    %v2656 = vpop.f32.mrb[0].mxu0
    %v2657 = vadd.f32 0.0, %v2656
    %v2658 = vpop.f32.mrb[0].mxu0
    %v2659 = vadd.f32 0.0, %v2658
    %2660 = vmatprep.mubr.f32.mxu0 0.0
    %2661 = vmatmul.mubr.f32.gmra.mrb[0].mxu0 %v179
    %v2662 = vpop.f32.mrb[0].mxu0
    %v2663 = vadd.f32 0.0, %v2662
    %v2664 = vpop.f32.mrb[0].mxu0
    %v2665 = vadd.f32 0.0, %v2664
    %2666 = vdwg.mxu0
    %2667 = vmatprep.subr.mxu0 %v121
    %2668 = vmatpush1.msra.mxu0 %v120
    %2669 = vmatprep.subr.mxu0 0.0
    %2670 = vmatpush1.msra.mxu0 0.0
    %2671 = vmatprep.subr.mxu0 0.0
    %2672 = vmatpush1.msra.mxu0 0.0
    %2673 = vmatprep.subr.mxu0 0.0
    %2674 = vmatpush1.msra.mxu0 0.0
    %2675 = vmatprep.subr.mxu0 0.0
    %2676 = vmatpush1.msra.mxu0 0.0
    %2677 = vmatprep.subr.mxu0 0.0
    %2678 = vmatpush1.msra.mxu0 0.0
    %2679 = vmatprep.subr.mxu0 0.0
    %2680 = vmatpush1.msra.mxu0 0.0
    %2681 = vmatprep.subr.mxu0 0.0
    %2682 = vmatpush1.msra.mxu0 0.0
    %2683 = vmatprep.subr.mxu0 0.0
    %2684 = vmatpush1.msra.mxu0 0.0
    %2685 = vmatprep.subr.mxu0 0.0
    %2686 = vmatpush1.msra.mxu0 0.0
    %2687 = vmatprep.subr.mxu0 0.0
    %2688 = vmatpush1.msra.mxu0 0.0
    %2689 = vmatprep.subr.mxu0 0.0
    %2690 = vmatpush1.msra.mxu0 0.0
    %2691 = vmatprep.subr.mxu0 0.0
    %2692 = vmatpush1.msra.mxu0 0.0
    %2693 = vmatprep.subr.mxu0 0.0
    %2694 = vmatpush1.msra.mxu0 0.0
    %2695 = vmatprep.subr.mxu0 0.0
    %2696 = vmatpush1.msra.mxu0 0.0
    %2697 = vmatprep.subr.mxu0 0.0
    %2698 = vmatpush1.msra.mxu0 0.0
    %2699 = vmatprep.subr.mxu0 0.0
    %2700 = vmatpush1.msra.mxu0 0.0
    %2701 = vmatprep.subr.mxu0 0.0
    %2702 = vmatpush1.msra.mxu0 0.0
    %2703 = vmatprep.subr.mxu0 0.0
    %2704 = vmatpush1.msra.mxu0 0.0
    %2705 = vmatprep.subr.mxu0 0.0
    %2706 = vmatpush1.msra.mxu0 0.0
    %2707 = vmatprep.subr.mxu0 0.0
    %2708 = vmatpush1.msra.mxu0 0.0
    %2709 = vmatprep.subr.mxu0 0.0
    %2710 = vmatpush1.msra.mxu0 0.0
    %2711 = vmatprep.subr.mxu0 0.0
    %2712 = vmatpush1.msra.mxu0 0.0
    %2713 = vmatprep.subr.mxu0 0.0
    %2714 = vmatpush1.msra.mxu0 0.0
    %2715 = vmatprep.subr.mxu0 0.0
    %2716 = vmatpush1.msra.mxu0 0.0
    %2717 = vmatprep.subr.mxu0 0.0
    %2718 = vmatpush1.msra.mxu0 0.0
    %2719 = vmatprep.subr.mxu0 0.0
    %2720 = vmatpush1.msra.mxu0 0.0
    %2721 = vmatprep.subr.mxu0 0.0
    %2722 = vmatpush1.msra.mxu0 0.0
    %2723 = vmatprep.subr.mxu0 0.0
    %2724 = vmatpush1.msra.mxu0 0.0
    %2725 = vmatprep.subr.mxu0 0.0
    %2726 = vmatpush1.msra.mxu0 0.0
    %2727 = vmatprep.subr.mxu0 0.0
    %2728 = vmatpush1.msra.mxu0 0.0
    %2729 = vmatprep.subr.mxu0 0.0
    %2730 = vmatpush1.msra.mxu0 0.0
    %2731 = vmatprep.mubr.f32.mxu0 0.0
    %2732 = vmatmul.mubr.f32.gmra.mrb[0].mxu0 %v158
    %v2733 = vpop.f32.mrb[0].mxu0
    %v2734 = vadd.f32 0.0, %v2733
    %v2735 = vpop.f32.mrb[0].mxu0
    %v2736 = vadd.f32 0.0, %v2735
    %2737 = vmatprep.mubr.f32.mxu0 0.0
    %2738 = vmatmul.mubr.f32.gmra.mrb[0].mxu0 %v161
    %v2739 = vpop.f32.mrb[0].mxu0
    %v2740 = vadd.f32 0.0, %v2739
    %v2741 = vpop.f32.mrb[0].mxu0
    %v2742 = vadd.f32 0.0, %v2741
    %2743 = vmatprep.mubr.f32.mxu0 0.0
    %2744 = vmatmul.mubr.f32.gmra.mrb[0].mxu0 %v164
    %v2745 = vpop.f32.mrb[0].mxu0
    %v2746 = vadd.f32 0.0, %v2745
    %v2747 = vpop.f32.mrb[0].mxu0
    %v2748 = vadd.f32 0.0, %v2747
    %2749 = vmatprep.mubr.f32.mxu0 0.0
    %2750 = vmatmul.mubr.f32.gmra.mrb[0].mxu0 %v167
    %v2751 = vpop.f32.mrb[0].mxu0
    %v2752 = vadd.f32 0.0, %v2751
    %v2753 = vpop.f32.mrb[0].mxu0
    %v2754 = vadd.f32 0.0, %v2753
    %2755 = vmatprep.mubr.f32.mxu0 0.0
    %2756 = vmatmul.mubr.f32.gmra.mrb[0].mxu0 %v170
    %v2757 = vpop.f32.mrb[0].mxu0
    %v2758 = vadd.f32 0.0, %v2757
    %v2759 = vpop.f32.mrb[0].mxu0
    %v2760 = vadd.f32 0.0, %v2759
    %2761 = vmatprep.mubr.f32.mxu0 0.0
    %2762 = vmatmul.mubr.f32.gmra.mrb[0].mxu0 %v173
    %v2763 = vpop.f32.mrb[0].mxu0
    %v2764 = vadd.f32 0.0, %v2763
    %v2765 = vpop.f32.mrb[0].mxu0
    %v2766 = vadd.f32 0.0, %v2765
    %2767 = vmatprep.mubr.f32.mxu0 0.0
    %2768 = vmatmul.mubr.f32.gmra.mrb[0].mxu0 %v176
    %v2769 = vpop.f32.mrb[0].mxu0
    %v2770 = vadd.f32 0.0, %v2769
    %v2771 = vpop.f32.mrb[0].mxu0
    %v2772 = vadd.f32 0.0, %v2771
    %2773 = vmatprep.mubr.f32.mxu0 0.0
    %2774 = vmatmul.mubr.f32.gmra.mrb[0].mxu0 %v179
    %v2775 = vpop.f32.mrb[0].mxu0
    %v2776 = vadd.f32 0.0, %v2775
    %v2777 = vpop.f32.mrb[0].mxu0
    %v2778 = vadd.f32 0.0, %v2777
    %2779 = vdwg.mxu0
    %2780 = vmatprep.subr.mxu0 %v123
    %2781 = vmatpush1.msra.mxu0 %v122
    %2782 = vmatprep.subr.mxu0 0.0
    %2783 = vmatpush1.msra.mxu0 0.0
    %2784 = vmatprep.subr.mxu0 0.0
    %2785 = vmatpush1.msra.mxu0 0.0
    %2786 = vmatprep.subr.mxu0 0.0
    %2787 = vmatpush1.msra.mxu0 0.0
    %2788 = vmatprep.subr.mxu0 0.0
    %2789 = vmatpush1.msra.mxu0 0.0
    %2790 = vmatprep.subr.mxu0 0.0
    %2791 = vmatpush1.msra.mxu0 0.0
    %2792 = vmatprep.subr.mxu0 0.0
    %2793 = vmatpush1.msra.mxu0 0.0
    %2794 = vmatprep.subr.mxu0 0.0
    %2795 = vmatpush1.msra.mxu0 0.0
    %2796 = vmatprep.subr.mxu0 0.0
    %2797 = vmatpush1.msra.mxu0 0.0
    %2798 = vmatprep.subr.mxu0 0.0
    %2799 = vmatpush1.msra.mxu0 0.0
    %2800 = vmatprep.subr.mxu0 0.0
    %2801 = vmatpush1.msra.mxu0 0.0
    %2802 = vmatprep.subr.mxu0 0.0
    %2803 = vmatpush1.msra.mxu0 0.0
    %2804 = vmatprep.subr.mxu0 0.0
    %2805 = vmatpush1.msra.mxu0 0.0
    %2806 = vmatprep.subr.mxu0 0.0
    %2807 = vmatpush1.msra.mxu0 0.0
    %2808 = vmatprep.subr.mxu0 0.0
    %2809 = vmatpush1.msra.mxu0 0.0
    %2810 = vmatprep.subr.mxu0 0.0
    %2811 = vmatpush1.msra.mxu0 0.0
    %2812 = vmatprep.subr.mxu0 0.0
    %2813 = vmatpush1.msra.mxu0 0.0
    %2814 = vmatprep.subr.mxu0 0.0
    %2815 = vmatpush1.msra.mxu0 0.0
    %2816 = vmatprep.subr.mxu0 0.0
    %2817 = vmatpush1.msra.mxu0 0.0
    %2818 = vmatprep.subr.mxu0 0.0
    %2819 = vmatpush1.msra.mxu0 0.0
    %2820 = vmatprep.subr.mxu0 0.0
    %2821 = vmatpush1.msra.mxu0 0.0
    %2822 = vmatprep.subr.mxu0 0.0
    %2823 = vmatpush1.msra.mxu0 0.0
    %2824 = vmatprep.subr.mxu0 0.0
    %2825 = vmatpush1.msra.mxu0 0.0
    %2826 = vmatprep.subr.mxu0 0.0
    %2827 = vmatpush1.msra.mxu0 0.0
    %2828 = vmatprep.subr.mxu0 0.0
    %2829 = vmatpush1.msra.mxu0 0.0
    %2830 = vmatprep.subr.mxu0 0.0
    %2831 = vmatpush1.msra.mxu0 0.0
    %2832 = vmatprep.subr.mxu0 0.0
    %2833 = vmatpush1.msra.mxu0 0.0
    %2834 = vmatprep.subr.mxu0 0.0
    %2835 = vmatpush1.msra.mxu0 0.0
    %2836 = vmatprep.subr.mxu0 0.0
    %2837 = vmatpush1.msra.mxu0 0.0
    %2838 = vmatprep.subr.mxu0 0.0
    %2839 = vmatpush1.msra.mxu0 0.0
    %2840 = vmatprep.subr.mxu0 0.0
    %2841 = vmatpush1.msra.mxu0 0.0
    %2842 = vmatprep.subr.mxu0 0.0
    %2843 = vmatpush1.msra.mxu0 0.0
    %2844 = vmatprep.mubr.f32.mxu0 0.0
    %2845 = vmatmul.mubr.f32.gmra.mrb[0].mxu0 %v158
    %v2846 = vpop.f32.mrb[0].mxu0
    %v2847 = vadd.f32 0.0, %v2846
    %v2848 = vpop.f32.mrb[0].mxu0
    %v2849 = vadd.f32 0.0, %v2848
    %2850 = vmatprep.mubr.f32.mxu0 0.0
    %2851 = vmatmul.mubr.f32.gmra.mrb[0].mxu0 %v161
    %v2852 = vpop.f32.mrb[0].mxu0
    %v2853 = vadd.f32 0.0, %v2852
    %v2854 = vpop.f32.mrb[0].mxu0
    %v2855 = vadd.f32 0.0, %v2854
    %2856 = vmatprep.mubr.f32.mxu0 0.0
    %2857 = vmatmul.mubr.f32.gmra.mrb[0].mxu0 %v164
    %v2858 = vpop.f32.mrb[0].mxu0
    %v2859 = vadd.f32 0.0, %v2858
    %v2860 = vpop.f32.mrb[0].mxu0
    %v2861 = vadd.f32 0.0, %v2860
    %2862 = vmatprep.mubr.f32.mxu0 0.0
    %2863 = vmatmul.mubr.f32.gmra.mrb[0].mxu0 %v167
    %v2864 = vpop.f32.mrb[0].mxu0
    %v2865 = vadd.f32 0.0, %v2864
    %v2866 = vpop.f32.mrb[0].mxu0
    %v2867 = vadd.f32 0.0, %v2866
    %2868 = vmatprep.mubr.f32.mxu0 0.0
    %2869 = vmatmul.mubr.f32.gmra.mrb[0].mxu0 %v170
    %v2870 = vpop.f32.mrb[0].mxu0
    %v2871 = vadd.f32 0.0, %v2870
    %v2872 = vpop.f32.mrb[0].mxu0
    %v2873 = vadd.f32 0.0, %v2872
    %2874 = vmatprep.mubr.f32.mxu0 0.0
    %2875 = vmatmul.mubr.f32.gmra.mrb[0].mxu0 %v173
    %v2876 = vpop.f32.mrb[0].mxu0
    %v2877 = vadd.f32 0.0, %v2876
    %v2878 = vpop.f32.mrb[0].mxu0
    %v2879 = vadd.f32 0.0, %v2878
    %2880 = vmatprep.mubr.f32.mxu0 0.0
    %2881 = vmatmul.mubr.f32.gmra.mrb[0].mxu0 %v176
    %v2882 = vpop.f32.mrb[0].mxu0
    %v2883 = vadd.f32 0.0, %v2882
    %v2884 = vpop.f32.mrb[0].mxu0
    %v2885 = vadd.f32 0.0, %v2884
    %2886 = vmatprep.mubr.f32.mxu0 0.0
    %2887 = vmatmul.mubr.f32.gmra.mrb[0].mxu0 %v179
    %v2888 = vpop.f32.mrb[0].mxu0
    %v2889 = vadd.f32 0.0, %v2888
    %v2890 = vpop.f32.mrb[0].mxu0
    %v2891 = vadd.f32 0.0, %v2890
    %2892 = vdwg.mxu0
    %2893 = vmatprep.subr.mxu0 %v125
    %2894 = vmatpush1.msra.mxu0 %v124
    %2895 = vmatprep.subr.mxu0 0.0
    %2896 = vmatpush1.msra.mxu0 0.0
    %2897 = vmatprep.subr.mxu0 0.0
    %2898 = vmatpush1.msra.mxu0 0.0
    %2899 = vmatprep.subr.mxu0 0.0
    %2900 = vmatpush1.msra.mxu0 0.0
    %2901 = vmatprep.subr.mxu0 0.0
    %2902 = vmatpush1.msra.mxu0 0.0
    %2903 = vmatprep.subr.mxu0 0.0
    %2904 = vmatpush1.msra.mxu0 0.0
    %2905 = vmatprep.subr.mxu0 0.0
    %2906 = vmatpush1.msra.mxu0 0.0
    %2907 = vmatprep.subr.mxu0 0.0
    %2908 = vmatpush1.msra.mxu0 0.0
    %2909 = vmatprep.subr.mxu0 0.0
    %2910 = vmatpush1.msra.mxu0 0.0
    %2911 = vmatprep.subr.mxu0 0.0
    %2912 = vmatpush1.msra.mxu0 0.0
    %2913 = vmatprep.subr.mxu0 0.0
    %2914 = vmatpush1.msra.mxu0 0.0
    %2915 = vmatprep.subr.mxu0 0.0
    %2916 = vmatpush1.msra.mxu0 0.0
    %2917 = vmatprep.subr.mxu0 0.0
    %2918 = vmatpush1.msra.mxu0 0.0
    %2919 = vmatprep.subr.mxu0 0.0
    %2920 = vmatpush1.msra.mxu0 0.0
    %2921 = vmatprep.subr.mxu0 0.0
    %2922 = vmatpush1.msra.mxu0 0.0
    %2923 = vmatprep.subr.mxu0 0.0
    %2924 = vmatpush1.msra.mxu0 0.0
    %2925 = vmatprep.subr.mxu0 0.0
    %2926 = vmatpush1.msra.mxu0 0.0
    %2927 = vmatprep.subr.mxu0 0.0
    %2928 = vmatpush1.msra.mxu0 0.0
    %2929 = vmatprep.subr.mxu0 0.0
    %2930 = vmatpush1.msra.mxu0 0.0
    %2931 = vmatprep.subr.mxu0 0.0
    %2932 = vmatpush1.msra.mxu0 0.0
    %2933 = vmatprep.subr.mxu0 0.0
    %2934 = vmatpush1.msra.mxu0 0.0
    %2935 = vmatprep.subr.mxu0 0.0
    %2936 = vmatpush1.msra.mxu0 0.0
    %2937 = vmatprep.subr.mxu0 0.0
    %2938 = vmatpush1.msra.mxu0 0.0
    %2939 = vmatprep.subr.mxu0 0.0
    %2940 = vmatpush1.msra.mxu0 0.0
    %2941 = vmatprep.subr.mxu0 0.0
    %2942 = vmatpush1.msra.mxu0 0.0
    %2943 = vmatprep.subr.mxu0 0.0
    %2944 = vmatpush1.msra.mxu0 0.0
    %2945 = vmatprep.subr.mxu0 0.0
    %2946 = vmatpush1.msra.mxu0 0.0
    %2947 = vmatprep.subr.mxu0 0.0
    %2948 = vmatpush1.msra.mxu0 0.0
    %2949 = vmatprep.subr.mxu0 0.0
    %2950 = vmatpush1.msra.mxu0 0.0
    %2951 = vmatprep.subr.mxu0 0.0
    %2952 = vmatpush1.msra.mxu0 0.0
    %2953 = vmatprep.subr.mxu0 0.0
    %2954 = vmatpush1.msra.mxu0 0.0
    %2955 = vmatprep.subr.mxu0 0.0
    %2956 = vmatpush1.msra.mxu0 0.0
    %2957 = vmatprep.mubr.f32.mxu0 0.0
    %2958 = vmatmul.mubr.f32.gmra.mrb[0].mxu0 %v158
    %v2959 = vpop.f32.mrb[0].mxu0
    %v2960 = vadd.f32 0.0, %v2959
    %v2961 = vpop.f32.mrb[0].mxu0
    %v2962 = vadd.f32 0.0, %v2961
    %2963 = vmatprep.mubr.f32.mxu0 0.0
    %2964 = vmatmul.mubr.f32.gmra.mrb[0].mxu0 %v161
    %v2965 = vpop.f32.mrb[0].mxu0
    %v2966 = vadd.f32 0.0, %v2965
    %v2967 = vpop.f32.mrb[0].mxu0
    %v2968 = vadd.f32 0.0, %v2967
    %2969 = vmatprep.mubr.f32.mxu0 0.0
    %2970 = vmatmul.mubr.f32.gmra.mrb[0].mxu0 %v164
    %v2971 = vpop.f32.mrb[0].mxu0
    %v2972 = vadd.f32 0.0, %v2971
    %v2973 = vpop.f32.mrb[0].mxu0
    %v2974 = vadd.f32 0.0, %v2973
    %2975 = vmatprep.mubr.f32.mxu0 0.0
    %2976 = vmatmul.mubr.f32.gmra.mrb[0].mxu0 %v167
    %v2977 = vpop.f32.mrb[0].mxu0
    %v2978 = vadd.f32 0.0, %v2977
    %v2979 = vpop.f32.mrb[0].mxu0
    %v2980 = vadd.f32 0.0, %v2979
    %2981 = vmatprep.mubr.f32.mxu0 0.0
    %2982 = vmatmul.mubr.f32.gmra.mrb[0].mxu0 %v170
    %v2983 = vpop.f32.mrb[0].mxu0
    %v2984 = vadd.f32 0.0, %v2983
    %v2985 = vpop.f32.mrb[0].mxu0
    %v2986 = vadd.f32 0.0, %v2985
    %2987 = vmatprep.mubr.f32.mxu0 0.0
    %2988 = vmatmul.mubr.f32.gmra.mrb[0].mxu0 %v173
    %v2989 = vpop.f32.mrb[0].mxu0
    %v2990 = vadd.f32 0.0, %v2989
    %v2991 = vpop.f32.mrb[0].mxu0
    %v2992 = vadd.f32 0.0, %v2991
    %2993 = vmatprep.mubr.f32.mxu0 0.0
    %2994 = vmatmul.mubr.f32.gmra.mrb[0].mxu0 %v176
    %v2995 = vpop.f32.mrb[0].mxu0
    %v2996 = vadd.f32 0.0, %v2995
    %v2997 = vpop.f32.mrb[0].mxu0
    %v2998 = vadd.f32 0.0, %v2997
    %2999 = vmatprep.mubr.f32.mxu0 0.0
    %3000 = vmatmul.mubr.f32.gmra.mrb[0].mxu0 %v179
    %v3001 = vpop.f32.mrb[0].mxu0
    %v3002 = vadd.f32 0.0, %v3001
    %v3003 = vpop.f32.mrb[0].mxu0
    %v3004 = vadd.f32 0.0, %v3003
    %3005 = vdwg.mxu0
    %3006 = vmatprep.subr.mxu0 %v127
    %3007 = vmatpush1.msra.mxu0 %v126
    %3008 = vmatprep.subr.mxu0 0.0
    %3009 = vmatpush1.msra.mxu0 0.0
    %3010 = vmatprep.subr.mxu0 0.0
    %3011 = vmatpush1.msra.mxu0 0.0
    %3012 = vmatprep.subr.mxu0 0.0
    %3013 = vmatpush1.msra.mxu0 0.0
    %3014 = vmatprep.subr.mxu0 0.0
    %3015 = vmatpush1.msra.mxu0 0.0
    %3016 = vmatprep.subr.mxu0 0.0
    %3017 = vmatpush1.msra.mxu0 0.0
    %3018 = vmatprep.subr.mxu0 0.0
    %3019 = vmatpush1.msra.mxu0 0.0
    %3020 = vmatprep.subr.mxu0 0.0
    %3021 = vmatpush1.msra.mxu0 0.0
    %3022 = vmatprep.subr.mxu0 0.0
    %3023 = vmatpush1.msra.mxu0 0.0
    %3024 = vmatprep.subr.mxu0 0.0
    %3025 = vmatpush1.msra.mxu0 0.0
    %3026 = vmatprep.subr.mxu0 0.0
    %3027 = vmatpush1.msra.mxu0 0.0
    %3028 = vmatprep.subr.mxu0 0.0
    %3029 = vmatpush1.msra.mxu0 0.0
    %3030 = vmatprep.subr.mxu0 0.0
    %3031 = vmatpush1.msra.mxu0 0.0
    %3032 = vmatprep.subr.mxu0 0.0
    %3033 = vmatpush1.msra.mxu0 0.0
    %3034 = vmatprep.subr.mxu0 0.0
    %3035 = vmatpush1.msra.mxu0 0.0
    %3036 = vmatprep.subr.mxu0 0.0
    %3037 = vmatpush1.msra.mxu0 0.0
    %3038 = vmatprep.subr.mxu0 0.0
    %3039 = vmatpush1.msra.mxu0 0.0
    %3040 = vmatprep.subr.mxu0 0.0
    %3041 = vmatpush1.msra.mxu0 0.0
    %3042 = vmatprep.subr.mxu0 0.0
    %3043 = vmatpush1.msra.mxu0 0.0
    %3044 = vmatprep.subr.mxu0 0.0
    %3045 = vmatpush1.msra.mxu0 0.0
    %3046 = vmatprep.subr.mxu0 0.0
    %3047 = vmatpush1.msra.mxu0 0.0
    %3048 = vmatprep.subr.mxu0 0.0
    %3049 = vmatpush1.msra.mxu0 0.0
    %3050 = vmatprep.subr.mxu0 0.0
    %3051 = vmatpush1.msra.mxu0 0.0
    %3052 = vmatprep.subr.mxu0 0.0
    %3053 = vmatpush1.msra.mxu0 0.0
    %3054 = vmatprep.subr.mxu0 0.0
    %3055 = vmatpush1.msra.mxu0 0.0
    %3056 = vmatprep.subr.mxu0 0.0
    %3057 = vmatpush1.msra.mxu0 0.0
    %3058 = vmatprep.subr.mxu0 0.0
    %3059 = vmatpush1.msra.mxu0 0.0
    %3060 = vmatprep.subr.mxu0 0.0
    %3061 = vmatpush1.msra.mxu0 0.0
    %3062 = vmatprep.subr.mxu0 0.0
    %3063 = vmatpush1.msra.mxu0 0.0
    %3064 = vmatprep.subr.mxu0 0.0
    %3065 = vmatpush1.msra.mxu0 0.0
    %3066 = vmatprep.subr.mxu0 0.0
    %3067 = vmatpush1.msra.mxu0 0.0
    %3068 = vmatprep.subr.mxu0 0.0
    %3069 = vmatpush1.msra.mxu0 0.0
    %3070 = vmatprep.mubr.f32.mxu0 0.0
    %3071 = vmatmul.mubr.f32.gmra.mrb[0].mxu0 %v158
    %v3072 = vpop.f32.mrb[0].mxu0
    %v3073 = vadd.f32 0.0, %v3072
    %v3074 = vpop.f32.mrb[0].mxu0
    %v3075 = vadd.f32 0.0, %v3074
    %3076 = vmatprep.mubr.f32.mxu0 0.0
    %3077 = vmatmul.mubr.f32.gmra.mrb[0].mxu0 %v161
    %v3078 = vpop.f32.mrb[0].mxu0
    %v3079 = vadd.f32 0.0, %v3078
    %v3080 = vpop.f32.mrb[0].mxu0
    %v3081 = vadd.f32 0.0, %v3080
    %3082 = vmatprep.mubr.f32.mxu0 0.0
    %3083 = vmatmul.mubr.f32.gmra.mrb[0].mxu0 %v164
    %v3084 = vpop.f32.mrb[0].mxu0
    %v3085 = vadd.f32 0.0, %v3084
    %v3086 = vpop.f32.mrb[0].mxu0
    %v3087 = vadd.f32 0.0, %v3086
    %3088 = vmatprep.mubr.f32.mxu0 0.0
    %3089 = vmatmul.mubr.f32.gmra.mrb[0].mxu0 %v167
    %v3090 = vpop.f32.mrb[0].mxu0
    %v3091 = vadd.f32 0.0, %v3090
    %v3092 = vpop.f32.mrb[0].mxu0
    %v3093 = vadd.f32 0.0, %v3092
    %3094 = vmatprep.mubr.f32.mxu0 0.0
    %3095 = vmatmul.mubr.f32.gmra.mrb[0].mxu0 %v170
    %v3096 = vpop.f32.mrb[0].mxu0
    %v3097 = vadd.f32 0.0, %v3096
    %v3098 = vpop.f32.mrb[0].mxu0
    %v3099 = vadd.f32 0.0, %v3098
    %3100 = vmatprep.mubr.f32.mxu0 0.0
    %3101 = vmatmul.mubr.f32.gmra.mrb[0].mxu0 %v173
    %v3102 = vpop.f32.mrb[0].mxu0
    %v3103 = vadd.f32 0.0, %v3102
    %v3104 = vpop.f32.mrb[0].mxu0
    %v3105 = vadd.f32 0.0, %v3104
    %3106 = vmatprep.mubr.f32.mxu0 0.0
    %3107 = vmatmul.mubr.f32.gmra.mrb[0].mxu0 %v176
    %v3108 = vpop.f32.mrb[0].mxu0
    %v3109 = vadd.f32 0.0, %v3108
    %v3110 = vpop.f32.mrb[0].mxu0
    %v3111 = vadd.f32 0.0, %v3110
    %3112 = vmatprep.mubr.f32.mxu0 0.0
    %3113 = vmatmul.mubr.f32.gmra.mrb[0].mxu0 %v179
    %v3114 = vpop.f32.mrb[0].mxu0
    %v3115 = vadd.f32 0.0, %v3114
    %v3116 = vpop.f32.mrb[0].mxu0
    %v3117 = vadd.f32 0.0, %v3116
    %3118 = vdwg.mxu0
    %3119 = vmatprep.subr.mxu0 %v129
    %3120 = vmatpush1.msra.mxu0 %v128
    %3121 = vmatprep.subr.mxu0 0.0
    %3122 = vmatpush1.msra.mxu0 0.0
    %3123 = vmatprep.subr.mxu0 0.0
    %3124 = vmatpush1.msra.mxu0 0.0
    %3125 = vmatprep.subr.mxu0 0.0
    %3126 = vmatpush1.msra.mxu0 0.0
    %3127 = vmatprep.subr.mxu0 0.0
    %3128 = vmatpush1.msra.mxu0 0.0
    %3129 = vmatprep.subr.mxu0 0.0
    %3130 = vmatpush1.msra.mxu0 0.0
    %3131 = vmatprep.subr.mxu0 0.0
    %3132 = vmatpush1.msra.mxu0 0.0
    %3133 = vmatprep.subr.mxu0 0.0
    %3134 = vmatpush1.msra.mxu0 0.0
    %3135 = vmatprep.subr.mxu0 0.0
    %3136 = vmatpush1.msra.mxu0 0.0
    %3137 = vmatprep.subr.mxu0 0.0
    %3138 = vmatpush1.msra.mxu0 0.0
    %3139 = vmatprep.subr.mxu0 0.0
    %3140 = vmatpush1.msra.mxu0 0.0
    %3141 = vmatprep.subr.mxu0 0.0
    %3142 = vmatpush1.msra.mxu0 0.0
    %3143 = vmatprep.subr.mxu0 0.0
    %3144 = vmatpush1.msra.mxu0 0.0
    %3145 = vmatprep.subr.mxu0 0.0
    %3146 = vmatpush1.msra.mxu0 0.0
    %3147 = vmatprep.subr.mxu0 0.0
    %3148 = vmatpush1.msra.mxu0 0.0
    %3149 = vmatprep.subr.mxu0 0.0
    %3150 = vmatpush1.msra.mxu0 0.0
    %3151 = vmatprep.subr.mxu0 0.0
    %3152 = vmatpush1.msra.mxu0 0.0
    %3153 = vmatprep.subr.mxu0 0.0
    %3154 = vmatpush1.msra.mxu0 0.0
    %3155 = vmatprep.subr.mxu0 0.0
    %3156 = vmatpush1.msra.mxu0 0.0
    %3157 = vmatprep.subr.mxu0 0.0
    %3158 = vmatpush1.msra.mxu0 0.0
    %3159 = vmatprep.subr.mxu0 0.0
    %3160 = vmatpush1.msra.mxu0 0.0
    %3161 = vmatprep.subr.mxu0 0.0
    %3162 = vmatpush1.msra.mxu0 0.0
    %3163 = vmatprep.subr.mxu0 0.0
    %3164 = vmatpush1.msra.mxu0 0.0
    %3165 = vmatprep.subr.mxu0 0.0
    %3166 = vmatpush1.msra.mxu0 0.0
    %3167 = vmatprep.subr.mxu0 0.0
    %3168 = vmatpush1.msra.mxu0 0.0
    %3169 = vmatprep.subr.mxu0 0.0
    %3170 = vmatpush1.msra.mxu0 0.0
    %3171 = vmatprep.subr.mxu0 0.0
    %3172 = vmatpush1.msra.mxu0 0.0
    %3173 = vmatprep.subr.mxu0 0.0
    %3174 = vmatpush1.msra.mxu0 0.0
    %3175 = vmatprep.subr.mxu0 0.0
    %3176 = vmatpush1.msra.mxu0 0.0
    %3177 = vmatprep.subr.mxu0 0.0
    %3178 = vmatpush1.msra.mxu0 0.0
    %3179 = vmatprep.subr.mxu0 0.0
    %3180 = vmatpush1.msra.mxu0 0.0
    %3181 = vmatprep.subr.mxu0 0.0
    %3182 = vmatpush1.msra.mxu0 0.0
    %3183 = vmatprep.mubr.f32.mxu0 0.0
    %3184 = vmatmul.mubr.f32.gmra.mrb[0].mxu0 %v158
    %v3185 = vpop.f32.mrb[0].mxu0
    %v3186 = vadd.f32 0.0, %v3185
    %v3187 = vpop.f32.mrb[0].mxu0
    %v3188 = vadd.f32 0.0, %v3187
    %3189 = vmatprep.mubr.f32.mxu0 0.0
    %3190 = vmatmul.mubr.f32.gmra.mrb[0].mxu0 %v161
    %v3191 = vpop.f32.mrb[0].mxu0
    %v3192 = vadd.f32 0.0, %v3191
    %v3193 = vpop.f32.mrb[0].mxu0
    %v3194 = vadd.f32 0.0, %v3193
    %3195 = vmatprep.mubr.f32.mxu0 0.0
    %3196 = vmatmul.mubr.f32.gmra.mrb[0].mxu0 %v164
    %v3197 = vpop.f32.mrb[0].mxu0
    %v3198 = vadd.f32 0.0, %v3197
    %v3199 = vpop.f32.mrb[0].mxu0
    %v3200 = vadd.f32 0.0, %v3199
    %3201 = vmatprep.mubr.f32.mxu0 0.0
    %3202 = vmatmul.mubr.f32.gmra.mrb[0].mxu0 %v167
    %v3203 = vpop.f32.mrb[0].mxu0
    %v3204 = vadd.f32 0.0, %v3203
    %v3205 = vpop.f32.mrb[0].mxu0
    %v3206 = vadd.f32 0.0, %v3205
    %3207 = vmatprep.mubr.f32.mxu0 0.0
    %3208 = vmatmul.mubr.f32.gmra.mrb[0].mxu0 %v170
    %v3209 = vpop.f32.mrb[0].mxu0
    %v3210 = vadd.f32 0.0, %v3209
    %v3211 = vpop.f32.mrb[0].mxu0
    %v3212 = vadd.f32 0.0, %v3211
    %3213 = vmatprep.mubr.f32.mxu0 0.0
    %3214 = vmatmul.mubr.f32.gmra.mrb[0].mxu0 %v173
    %v3215 = vpop.f32.mrb[0].mxu0
    %v3216 = vadd.f32 0.0, %v3215
    %v3217 = vpop.f32.mrb[0].mxu0
    %v3218 = vadd.f32 0.0, %v3217
    %3219 = vmatprep.mubr.f32.mxu0 0.0
    %3220 = vmatmul.mubr.f32.gmra.mrb[0].mxu0 %v176
    %v3221 = vpop.f32.mrb[0].mxu0
    %v3222 = vadd.f32 0.0, %v3221
    %v3223 = vpop.f32.mrb[0].mxu0
    %v3224 = vadd.f32 0.0, %v3223
    %3225 = vmatprep.mubr.f32.mxu0 0.0
    %3226 = vmatmul.mubr.f32.gmra.mrb[0].mxu0 %v179
    %v3227 = vpop.f32.mrb[0].mxu0
    %v3228 = vadd.f32 0.0, %v3227
    %v3229 = vpop.f32.mrb[0].mxu0
    %v3230 = vadd.f32 0.0, %v3229
    %3231 = vdwg.mxu0
    %3232 = vmatprep.subr.mxu0 %v131
    %3233 = vmatpush1.msra.mxu0 %v130
    %3234 = vmatprep.subr.mxu0 0.0
    %3235 = vmatpush1.msra.mxu0 0.0
    %3236 = vmatprep.subr.mxu0 0.0
    %3237 = vmatpush1.msra.mxu0 0.0
    %3238 = vmatprep.subr.mxu0 0.0
    %3239 = vmatpush1.msra.mxu0 0.0
    %3240 = vmatprep.subr.mxu0 0.0
    %3241 = vmatpush1.msra.mxu0 0.0
    %3242 = vmatprep.subr.mxu0 0.0
    %3243 = vmatpush1.msra.mxu0 0.0
    %3244 = vmatprep.subr.mxu0 0.0
    %3245 = vmatpush1.msra.mxu0 0.0
    %3246 = vmatprep.subr.mxu0 0.0
    %3247 = vmatpush1.msra.mxu0 0.0
    %3248 = vmatprep.subr.mxu0 0.0
    %3249 = vmatpush1.msra.mxu0 0.0
    %3250 = vmatprep.subr.mxu0 0.0
    %3251 = vmatpush1.msra.mxu0 0.0
    %3252 = vmatprep.subr.mxu0 0.0
    %3253 = vmatpush1.msra.mxu0 0.0
    %3254 = vmatprep.subr.mxu0 0.0
    %3255 = vmatpush1.msra.mxu0 0.0
    %3256 = vmatprep.subr.mxu0 0.0
    %3257 = vmatpush1.msra.mxu0 0.0
    %3258 = vmatprep.subr.mxu0 0.0
    %3259 = vmatpush1.msra.mxu0 0.0
    %3260 = vmatprep.subr.mxu0 0.0
    %3261 = vmatpush1.msra.mxu0 0.0
    %3262 = vmatprep.subr.mxu0 0.0
    %3263 = vmatpush1.msra.mxu0 0.0
    %3264 = vmatprep.subr.mxu0 0.0
    %3265 = vmatpush1.msra.mxu0 0.0
    %3266 = vmatprep.subr.mxu0 0.0
    %3267 = vmatpush1.msra.mxu0 0.0
    %3268 = vmatprep.subr.mxu0 0.0
    %3269 = vmatpush1.msra.mxu0 0.0
    %3270 = vmatprep.subr.mxu0 0.0
    %3271 = vmatpush1.msra.mxu0 0.0
    %3272 = vmatprep.subr.mxu0 0.0
    %3273 = vmatpush1.msra.mxu0 0.0
    %3274 = vmatprep.subr.mxu0 0.0
    %3275 = vmatpush1.msra.mxu0 0.0
    %3276 = vmatprep.subr.mxu0 0.0
    %3277 = vmatpush1.msra.mxu0 0.0
    %3278 = vmatprep.subr.mxu0 0.0
    %3279 = vmatpush1.msra.mxu0 0.0
    %3280 = vmatprep.subr.mxu0 0.0
    %3281 = vmatpush1.msra.mxu0 0.0
    %3282 = vmatprep.subr.mxu0 0.0
    %3283 = vmatpush1.msra.mxu0 0.0
    %3284 = vmatprep.subr.mxu0 0.0
    %3285 = vmatpush1.msra.mxu0 0.0
    %3286 = vmatprep.subr.mxu0 0.0
    %3287 = vmatpush1.msra.mxu0 0.0
    %3288 = vmatprep.subr.mxu0 0.0
    %3289 = vmatpush1.msra.mxu0 0.0
    %3290 = vmatprep.subr.mxu0 0.0
    %3291 = vmatpush1.msra.mxu0 0.0
    %3292 = vmatprep.subr.mxu0 0.0
    %3293 = vmatpush1.msra.mxu0 0.0
    %3294 = vmatprep.subr.mxu0 0.0
    %3295 = vmatpush1.msra.mxu0 0.0
    %3296 = vmatprep.mubr.f32.mxu0 0.0
    %3297 = vmatmul.mubr.f32.gmra.mrb[0].mxu0 %v158
    %v3298 = vpop.f32.mrb[0].mxu0
    %v3299 = vadd.f32 0.0, %v3298
    %v3300 = vpop.f32.mrb[0].mxu0
    %v3301 = vadd.f32 0.0, %v3300
    %3302 = vmatprep.mubr.f32.mxu0 0.0
    %3303 = vmatmul.mubr.f32.gmra.mrb[0].mxu0 %v161
    %v3304 = vpop.f32.mrb[0].mxu0
    %v3305 = vadd.f32 0.0, %v3304
    %v3306 = vpop.f32.mrb[0].mxu0
    %v3307 = vadd.f32 0.0, %v3306
    %3308 = vmatprep.mubr.f32.mxu0 0.0
    %3309 = vmatmul.mubr.f32.gmra.mrb[0].mxu0 %v164
    %v3310 = vpop.f32.mrb[0].mxu0
    %v3311 = vadd.f32 0.0, %v3310
    %v3312 = vpop.f32.mrb[0].mxu0
    %v3313 = vadd.f32 0.0, %v3312
    %3314 = vmatprep.mubr.f32.mxu0 0.0
    %3315 = vmatmul.mubr.f32.gmra.mrb[0].mxu0 %v167
    %v3316 = vpop.f32.mrb[0].mxu0
    %v3317 = vadd.f32 0.0, %v3316
    %v3318 = vpop.f32.mrb[0].mxu0
    %v3319 = vadd.f32 0.0, %v3318
    %3320 = vmatprep.mubr.f32.mxu0 0.0
    %3321 = vmatmul.mubr.f32.gmra.mrb[0].mxu0 %v170
    %v3322 = vpop.f32.mrb[0].mxu0
    %v3323 = vadd.f32 0.0, %v3322
    %v3324 = vpop.f32.mrb[0].mxu0
    %v3325 = vadd.f32 0.0, %v3324
    %3326 = vmatprep.mubr.f32.mxu0 0.0
    %3327 = vmatmul.mubr.f32.gmra.mrb[0].mxu0 %v173
    %v3328 = vpop.f32.mrb[0].mxu0
    %v3329 = vadd.f32 0.0, %v3328
    %v3330 = vpop.f32.mrb[0].mxu0
    %v3331 = vadd.f32 0.0, %v3330
    %3332 = vmatprep.mubr.f32.mxu0 0.0
    %3333 = vmatmul.mubr.f32.gmra.mrb[0].mxu0 %v176
    %v3334 = vpop.f32.mrb[0].mxu0
    %v3335 = vadd.f32 0.0, %v3334
    %v3336 = vpop.f32.mrb[0].mxu0
    %v3337 = vadd.f32 0.0, %v3336
    %3338 = vmatprep.mubr.f32.mxu0 0.0
    %3339 = vmatmul.mubr.f32.gmra.mrb[0].mxu0 %v179
    %v3340 = vpop.f32.mrb[0].mxu0
    %v3341 = vadd.f32 0.0, %v3340
    %v3342 = vpop.f32.mrb[0].mxu0
    %v3343 = vadd.f32 0.0, %v3342
    %3344 = vdwg.mxu0
    %3345 = vmatprep.subr.mxu0 %v133
    %3346 = vmatpush1.msra.mxu0 %v132
    %3347 = vmatprep.subr.mxu0 0.0
    %3348 = vmatpush1.msra.mxu0 0.0
    %3349 = vmatprep.subr.mxu0 0.0
    %3350 = vmatpush1.msra.mxu0 0.0
    %3351 = vmatprep.subr.mxu0 0.0
    %3352 = vmatpush1.msra.mxu0 0.0
    %3353 = vmatprep.subr.mxu0 0.0
    %3354 = vmatpush1.msra.mxu0 0.0
    %3355 = vmatprep.subr.mxu0 0.0
    %3356 = vmatpush1.msra.mxu0 0.0
    %3357 = vmatprep.subr.mxu0 0.0
    %3358 = vmatpush1.msra.mxu0 0.0
    %3359 = vmatprep.subr.mxu0 0.0
    %3360 = vmatpush1.msra.mxu0 0.0
    %3361 = vmatprep.subr.mxu0 0.0
    %3362 = vmatpush1.msra.mxu0 0.0
    %3363 = vmatprep.subr.mxu0 0.0
    %3364 = vmatpush1.msra.mxu0 0.0
    %3365 = vmatprep.subr.mxu0 0.0
    %3366 = vmatpush1.msra.mxu0 0.0
    %3367 = vmatprep.subr.mxu0 0.0
    %3368 = vmatpush1.msra.mxu0 0.0
    %3369 = vmatprep.subr.mxu0 0.0
    %3370 = vmatpush1.msra.mxu0 0.0
    %3371 = vmatprep.subr.mxu0 0.0
    %3372 = vmatpush1.msra.mxu0 0.0
    %3373 = vmatprep.subr.mxu0 0.0
    %3374 = vmatpush1.msra.mxu0 0.0
    %3375 = vmatprep.subr.mxu0 0.0
    %3376 = vmatpush1.msra.mxu0 0.0
    %3377 = vmatprep.subr.mxu0 0.0
    %3378 = vmatpush1.msra.mxu0 0.0
    %3379 = vmatprep.subr.mxu0 0.0
    %3380 = vmatpush1.msra.mxu0 0.0
    %3381 = vmatprep.subr.mxu0 0.0
    %3382 = vmatpush1.msra.mxu0 0.0
    %3383 = vmatprep.subr.mxu0 0.0
    %3384 = vmatpush1.msra.mxu0 0.0
    %3385 = vmatprep.subr.mxu0 0.0
    %3386 = vmatpush1.msra.mxu0 0.0
    %3387 = vmatprep.subr.mxu0 0.0
    %3388 = vmatpush1.msra.mxu0 0.0
    %3389 = vmatprep.subr.mxu0 0.0
    %3390 = vmatpush1.msra.mxu0 0.0
    %3391 = vmatprep.subr.mxu0 0.0
    %3392 = vmatpush1.msra.mxu0 0.0
    %3393 = vmatprep.subr.mxu0 0.0
    %3394 = vmatpush1.msra.mxu0 0.0
    %3395 = vmatprep.subr.mxu0 0.0
    %3396 = vmatpush1.msra.mxu0 0.0
    %3397 = vmatprep.subr.mxu0 0.0
    %3398 = vmatpush1.msra.mxu0 0.0
    %3399 = vmatprep.subr.mxu0 0.0
    %3400 = vmatpush1.msra.mxu0 0.0
    %3401 = vmatprep.subr.mxu0 0.0
    %3402 = vmatpush1.msra.mxu0 0.0
    %3403 = vmatprep.subr.mxu0 0.0
    %3404 = vmatpush1.msra.mxu0 0.0
    %3405 = vmatprep.subr.mxu0 0.0
    %3406 = vmatpush1.msra.mxu0 0.0
    %3407 = vmatprep.subr.mxu0 0.0
    %3408 = vmatpush1.msra.mxu0 0.0
    %3409 = vmatprep.mubr.f32.mxu0 0.0
    %3410 = vmatmul.mubr.f32.gmra.mrb[0].mxu0 %v158
    %v3411 = vpop.f32.mrb[0].mxu0
    %v3412 = vadd.f32 0.0, %v3411
    %v3413 = vpop.f32.mrb[0].mxu0
    %v3414 = vadd.f32 0.0, %v3413
    %3415 = vmatprep.mubr.f32.mxu0 0.0
    %3416 = vmatmul.mubr.f32.gmra.mrb[0].mxu0 %v161
    %v3417 = vpop.f32.mrb[0].mxu0
    %v3418 = vadd.f32 0.0, %v3417
    %v3419 = vpop.f32.mrb[0].mxu0
    %v3420 = vadd.f32 0.0, %v3419
    %3421 = vmatprep.mubr.f32.mxu0 0.0
    %3422 = vmatmul.mubr.f32.gmra.mrb[0].mxu0 %v164
    %v3423 = vpop.f32.mrb[0].mxu0
    %v3424 = vadd.f32 0.0, %v3423
    %v3425 = vpop.f32.mrb[0].mxu0
    %v3426 = vadd.f32 0.0, %v3425
    %3427 = vmatprep.mubr.f32.mxu0 0.0
    %3428 = vmatmul.mubr.f32.gmra.mrb[0].mxu0 %v167
    %v3429 = vpop.f32.mrb[0].mxu0
    %v3430 = vadd.f32 0.0, %v3429
    %v3431 = vpop.f32.mrb[0].mxu0
    %v3432 = vadd.f32 0.0, %v3431
    %3433 = vmatprep.mubr.f32.mxu0 0.0
    %3434 = vmatmul.mubr.f32.gmra.mrb[0].mxu0 %v170
    %v3435 = vpop.f32.mrb[0].mxu0
    %v3436 = vadd.f32 0.0, %v3435
    %v3437 = vpop.f32.mrb[0].mxu0
    %v3438 = vadd.f32 0.0, %v3437
    %3439 = vmatprep.mubr.f32.mxu0 0.0
    %3440 = vmatmul.mubr.f32.gmra.mrb[0].mxu0 %v173
    %v3441 = vpop.f32.mrb[0].mxu0
    %v3442 = vadd.f32 0.0, %v3441
    %v3443 = vpop.f32.mrb[0].mxu0
    %v3444 = vadd.f32 0.0, %v3443
    %3445 = vmatprep.mubr.f32.mxu0 0.0
    %3446 = vmatmul.mubr.f32.gmra.mrb[0].mxu0 %v176
    %v3447 = vpop.f32.mrb[0].mxu0
    %v3448 = vadd.f32 0.0, %v3447
    %v3449 = vpop.f32.mrb[0].mxu0
    %v3450 = vadd.f32 0.0, %v3449
    %3451 = vmatprep.mubr.f32.mxu0 0.0
    %3452 = vmatmul.mubr.f32.gmra.mrb[0].mxu0 %v179
    %v3453 = vpop.f32.mrb[0].mxu0
    %v3454 = vadd.f32 0.0, %v3453
    %v3455 = vpop.f32.mrb[0].mxu0
    %v3456 = vadd.f32 0.0, %v3455
    %3457 = vdwg.mxu0
    %3458 = vmatprep.subr.mxu0 %v135
    %3459 = vmatpush1.msra.mxu0 %v134
    %3460 = vmatprep.subr.mxu0 0.0
    %3461 = vmatpush1.msra.mxu0 0.0
    %3462 = vmatprep.subr.mxu0 0.0
    %3463 = vmatpush1.msra.mxu0 0.0
    %3464 = vmatprep.subr.mxu0 0.0
    %3465 = vmatpush1.msra.mxu0 0.0
    %3466 = vmatprep.subr.mxu0 0.0
    %3467 = vmatpush1.msra.mxu0 0.0
    %3468 = vmatprep.subr.mxu0 0.0
    %3469 = vmatpush1.msra.mxu0 0.0
    %3470 = vmatprep.subr.mxu0 0.0
    %3471 = vmatpush1.msra.mxu0 0.0
    %3472 = vmatprep.subr.mxu0 0.0
    %3473 = vmatpush1.msra.mxu0 0.0
    %3474 = vmatprep.subr.mxu0 0.0
    %3475 = vmatpush1.msra.mxu0 0.0
    %3476 = vmatprep.subr.mxu0 0.0
    %3477 = vmatpush1.msra.mxu0 0.0
    %3478 = vmatprep.subr.mxu0 0.0
    %3479 = vmatpush1.msra.mxu0 0.0
    %3480 = vmatprep.subr.mxu0 0.0
    %3481 = vmatpush1.msra.mxu0 0.0
    %3482 = vmatprep.subr.mxu0 0.0
    %3483 = vmatpush1.msra.mxu0 0.0
    %3484 = vmatprep.subr.mxu0 0.0
    %3485 = vmatpush1.msra.mxu0 0.0
    %3486 = vmatprep.subr.mxu0 0.0
    %3487 = vmatpush1.msra.mxu0 0.0
    %3488 = vmatprep.subr.mxu0 0.0
    %3489 = vmatpush1.msra.mxu0 0.0
    %3490 = vmatprep.subr.mxu0 0.0
    %3491 = vmatpush1.msra.mxu0 0.0
    %3492 = vmatprep.subr.mxu0 0.0
    %3493 = vmatpush1.msra.mxu0 0.0
    %3494 = vmatprep.subr.mxu0 0.0
    %3495 = vmatpush1.msra.mxu0 0.0
    %3496 = vmatprep.subr.mxu0 0.0
    %3497 = vmatpush1.msra.mxu0 0.0
    %3498 = vmatprep.subr.mxu0 0.0
    %3499 = vmatpush1.msra.mxu0 0.0
    %3500 = vmatprep.subr.mxu0 0.0
    %3501 = vmatpush1.msra.mxu0 0.0
    %3502 = vmatprep.subr.mxu0 0.0
    %3503 = vmatpush1.msra.mxu0 0.0
    %3504 = vmatprep.subr.mxu0 0.0
    %3505 = vmatpush1.msra.mxu0 0.0
    %3506 = vmatprep.subr.mxu0 0.0
    %3507 = vmatpush1.msra.mxu0 0.0
    %3508 = vmatprep.subr.mxu0 0.0
    %3509 = vmatpush1.msra.mxu0 0.0
    %3510 = vmatprep.subr.mxu0 0.0
    %3511 = vmatpush1.msra.mxu0 0.0
    %3512 = vmatprep.subr.mxu0 0.0
    %3513 = vmatpush1.msra.mxu0 0.0
    %3514 = vmatprep.subr.mxu0 0.0
    %3515 = vmatpush1.msra.mxu0 0.0
    %3516 = vmatprep.subr.mxu0 0.0
    %3517 = vmatpush1.msra.mxu0 0.0
    %3518 = vmatprep.subr.mxu0 0.0
    %3519 = vmatpush1.msra.mxu0 0.0
    %3520 = vmatprep.subr.mxu0 0.0
    %3521 = vmatpush1.msra.mxu0 0.0
    %3522 = vmatprep.mubr.f32.mxu0 0.0
    %3523 = vmatmul.mubr.f32.gmra.mrb[0].mxu0 %v158
    %v3524 = vpop.f32.mrb[0].mxu0
    %v3525 = vadd.f32 0.0, %v3524
    %v3526 = vpop.f32.mrb[0].mxu0
    %v3527 = vadd.f32 0.0, %v3526
    %3528 = vmatprep.mubr.f32.mxu0 0.0
    %3529 = vmatmul.mubr.f32.gmra.mrb[0].mxu0 %v161
    %v3530 = vpop.f32.mrb[0].mxu0
    %v3531 = vadd.f32 0.0, %v3530
    %v3532 = vpop.f32.mrb[0].mxu0
    %v3533 = vadd.f32 0.0, %v3532
    %3534 = vmatprep.mubr.f32.mxu0 0.0
    %3535 = vmatmul.mubr.f32.gmra.mrb[0].mxu0 %v164
    %v3536 = vpop.f32.mrb[0].mxu0
    %v3537 = vadd.f32 0.0, %v3536
    %v3538 = vpop.f32.mrb[0].mxu0
    %v3539 = vadd.f32 0.0, %v3538
    %3540 = vmatprep.mubr.f32.mxu0 0.0
    %3541 = vmatmul.mubr.f32.gmra.mrb[0].mxu0 %v167
    %v3542 = vpop.f32.mrb[0].mxu0
    %v3543 = vadd.f32 0.0, %v3542
    %v3544 = vpop.f32.mrb[0].mxu0
    %v3545 = vadd.f32 0.0, %v3544
    %3546 = vmatprep.mubr.f32.mxu0 0.0
    %3547 = vmatmul.mubr.f32.gmra.mrb[0].mxu0 %v170
    %v3548 = vpop.f32.mrb[0].mxu0
    %v3549 = vadd.f32 0.0, %v3548
    %v3550 = vpop.f32.mrb[0].mxu0
    %v3551 = vadd.f32 0.0, %v3550
    %3552 = vmatprep.mubr.f32.mxu0 0.0
    %3553 = vmatmul.mubr.f32.gmra.mrb[0].mxu0 %v173
    %v3554 = vpop.f32.mrb[0].mxu0
    %v3555 = vadd.f32 0.0, %v3554
    %v3556 = vpop.f32.mrb[0].mxu0
    %v3557 = vadd.f32 0.0, %v3556
    %3558 = vmatprep.mubr.f32.mxu0 0.0
    %3559 = vmatmul.mubr.f32.gmra.mrb[0].mxu0 %v176
    %v3560 = vpop.f32.mrb[0].mxu0
    %v3561 = vadd.f32 0.0, %v3560
    %v3562 = vpop.f32.mrb[0].mxu0
    %v3563 = vadd.f32 0.0, %v3562
    %3564 = vmatprep.mubr.f32.mxu0 0.0
    %3565 = vmatmul.mubr.f32.gmra.mrb[0].mxu0 %v179
    %v3566 = vpop.f32.mrb[0].mxu0
    %v3567 = vadd.f32 0.0, %v3566
    %v3568 = vpop.f32.mrb[0].mxu0
    %v3569 = vadd.f32 0.0, %v3568
    %3570 = vdwg.mxu0
    %3571 = vmatprep.subr.mxu0 %v137
    %3572 = vmatpush1.msra.mxu0 %v136
    %3573 = vmatprep.subr.mxu0 0.0
    %3574 = vmatpush1.msra.mxu0 0.0
    %3575 = vmatprep.subr.mxu0 0.0
    %3576 = vmatpush1.msra.mxu0 0.0
    %3577 = vmatprep.subr.mxu0 0.0
    %3578 = vmatpush1.msra.mxu0 0.0
    %3579 = vmatprep.subr.mxu0 0.0
    %3580 = vmatpush1.msra.mxu0 0.0
    %3581 = vmatprep.subr.mxu0 0.0
    %3582 = vmatpush1.msra.mxu0 0.0
    %3583 = vmatprep.subr.mxu0 0.0
    %3584 = vmatpush1.msra.mxu0 0.0
    %3585 = vmatprep.subr.mxu0 0.0
    %3586 = vmatpush1.msra.mxu0 0.0
    %3587 = vmatprep.subr.mxu0 0.0
    %3588 = vmatpush1.msra.mxu0 0.0
    %3589 = vmatprep.subr.mxu0 0.0
    %3590 = vmatpush1.msra.mxu0 0.0
    %3591 = vmatprep.subr.mxu0 0.0
    %3592 = vmatpush1.msra.mxu0 0.0
    %3593 = vmatprep.subr.mxu0 0.0
    %3594 = vmatpush1.msra.mxu0 0.0
    %3595 = vmatprep.subr.mxu0 0.0
    %3596 = vmatpush1.msra.mxu0 0.0
    %3597 = vmatprep.subr.mxu0 0.0
    %3598 = vmatpush1.msra.mxu0 0.0
    %3599 = vmatprep.subr.mxu0 0.0
    %3600 = vmatpush1.msra.mxu0 0.0
    %3601 = vmatprep.subr.mxu0 0.0
    %3602 = vmatpush1.msra.mxu0 0.0
    %3603 = vmatprep.subr.mxu0 0.0
    %3604 = vmatpush1.msra.mxu0 0.0
    %3605 = vmatprep.subr.mxu0 0.0
    %3606 = vmatpush1.msra.mxu0 0.0
    %3607 = vmatprep.subr.mxu0 0.0
    %3608 = vmatpush1.msra.mxu0 0.0
    %3609 = vmatprep.subr.mxu0 0.0
    %3610 = vmatpush1.msra.mxu0 0.0
    %3611 = vmatprep.subr.mxu0 0.0
    %3612 = vmatpush1.msra.mxu0 0.0
    %3613 = vmatprep.subr.mxu0 0.0
    %3614 = vmatpush1.msra.mxu0 0.0
    %3615 = vmatprep.subr.mxu0 0.0
    %3616 = vmatpush1.msra.mxu0 0.0
    %3617 = vmatprep.subr.mxu0 0.0
    %3618 = vmatpush1.msra.mxu0 0.0
    %3619 = vmatprep.subr.mxu0 0.0
    %3620 = vmatpush1.msra.mxu0 0.0
    %3621 = vmatprep.subr.mxu0 0.0
    %3622 = vmatpush1.msra.mxu0 0.0
    %3623 = vmatprep.subr.mxu0 0.0
    %3624 = vmatpush1.msra.mxu0 0.0
    %3625 = vmatprep.subr.mxu0 0.0
    %3626 = vmatpush1.msra.mxu0 0.0
    %3627 = vmatprep.subr.mxu0 0.0
    %3628 = vmatpush1.msra.mxu0 0.0
    %3629 = vmatprep.subr.mxu0 0.0
    %3630 = vmatpush1.msra.mxu0 0.0
    %3631 = vmatprep.subr.mxu0 0.0
    %3632 = vmatpush1.msra.mxu0 0.0
    %3633 = vmatprep.subr.mxu0 0.0
    %3634 = vmatpush1.msra.mxu0 0.0
    %3635 = vmatprep.mubr.f32.mxu0 0.0
    %3636 = vmatmul.mubr.f32.gmra.mrb[0].mxu0 %v158
    %v3637 = vpop.f32.mrb[0].mxu0
    %v3638 = vadd.f32 0.0, %v3637
    %v3639 = vpop.f32.mrb[0].mxu0
    %v3640 = vadd.f32 0.0, %v3639
    %3641 = vmatprep.mubr.f32.mxu0 0.0
    %3642 = vmatmul.mubr.f32.gmra.mrb[0].mxu0 %v161
    %v3643 = vpop.f32.mrb[0].mxu0
    %v3644 = vadd.f32 0.0, %v3643
    %v3645 = vpop.f32.mrb[0].mxu0
    %v3646 = vadd.f32 0.0, %v3645
    %3647 = vmatprep.mubr.f32.mxu0 0.0
    %3648 = vmatmul.mubr.f32.gmra.mrb[0].mxu0 %v164
    %v3649 = vpop.f32.mrb[0].mxu0
    %v3650 = vadd.f32 0.0, %v3649
    %v3651 = vpop.f32.mrb[0].mxu0
    %v3652 = vadd.f32 0.0, %v3651
    %3653 = vmatprep.mubr.f32.mxu0 0.0
    %3654 = vmatmul.mubr.f32.gmra.mrb[0].mxu0 %v167
    %v3655 = vpop.f32.mrb[0].mxu0
    %v3656 = vadd.f32 0.0, %v3655
    %v3657 = vpop.f32.mrb[0].mxu0
    %v3658 = vadd.f32 0.0, %v3657
    %3659 = vmatprep.mubr.f32.mxu0 0.0
    %3660 = vmatmul.mubr.f32.gmra.mrb[0].mxu0 %v170
    %v3661 = vpop.f32.mrb[0].mxu0
    %v3662 = vadd.f32 0.0, %v3661
    %v3663 = vpop.f32.mrb[0].mxu0
    %v3664 = vadd.f32 0.0, %v3663
    %3665 = vmatprep.mubr.f32.mxu0 0.0
    %3666 = vmatmul.mubr.f32.gmra.mrb[0].mxu0 %v173
    %v3667 = vpop.f32.mrb[0].mxu0
    %v3668 = vadd.f32 0.0, %v3667
    %v3669 = vpop.f32.mrb[0].mxu0
    %v3670 = vadd.f32 0.0, %v3669
    %3671 = vmatprep.mubr.f32.mxu0 0.0
    %3672 = vmatmul.mubr.f32.gmra.mrb[0].mxu0 %v176
    %v3673 = vpop.f32.mrb[0].mxu0
    %v3674 = vadd.f32 0.0, %v3673
    %v3675 = vpop.f32.mrb[0].mxu0
    %v3676 = vadd.f32 0.0, %v3675
    %3677 = vmatprep.mubr.f32.mxu0 0.0
    %3678 = vmatmul.mubr.f32.gmra.mrb[0].mxu0 %v179
    %v3679 = vpop.f32.mrb[0].mxu0
    %v3680 = vadd.f32 0.0, %v3679
    %v3681 = vpop.f32.mrb[0].mxu0
    %v3682 = vadd.f32 0.0, %v3681
    %3683 = vdwg.mxu0
    %3684 = vmatprep.subr.mxu0 %v139
    %3685 = vmatpush1.msra.mxu0 %v138
    %3686 = vmatprep.subr.mxu0 0.0
    %3687 = vmatpush1.msra.mxu0 0.0
    %3688 = vmatprep.subr.mxu0 0.0
    %3689 = vmatpush1.msra.mxu0 0.0
    %3690 = vmatprep.subr.mxu0 0.0
    %3691 = vmatpush1.msra.mxu0 0.0
    %3692 = vmatprep.subr.mxu0 0.0
    %3693 = vmatpush1.msra.mxu0 0.0
    %3694 = vmatprep.subr.mxu0 0.0
    %3695 = vmatpush1.msra.mxu0 0.0
    %3696 = vmatprep.subr.mxu0 0.0
    %3697 = vmatpush1.msra.mxu0 0.0
    %3698 = vmatprep.subr.mxu0 0.0
    %3699 = vmatpush1.msra.mxu0 0.0
    %3700 = vmatprep.subr.mxu0 0.0
    %3701 = vmatpush1.msra.mxu0 0.0
    %3702 = vmatprep.subr.mxu0 0.0
    %3703 = vmatpush1.msra.mxu0 0.0
    %3704 = vmatprep.subr.mxu0 0.0
    %3705 = vmatpush1.msra.mxu0 0.0
    %3706 = vmatprep.subr.mxu0 0.0
    %3707 = vmatpush1.msra.mxu0 0.0
    %3708 = vmatprep.subr.mxu0 0.0
    %3709 = vmatpush1.msra.mxu0 0.0
    %3710 = vmatprep.subr.mxu0 0.0
    %3711 = vmatpush1.msra.mxu0 0.0
    %3712 = vmatprep.subr.mxu0 0.0
    %3713 = vmatpush1.msra.mxu0 0.0
    %3714 = vmatprep.subr.mxu0 0.0
    %3715 = vmatpush1.msra.mxu0 0.0
    %3716 = vmatprep.subr.mxu0 0.0
    %3717 = vmatpush1.msra.mxu0 0.0
    %3718 = vmatprep.subr.mxu0 0.0
    %3719 = vmatpush1.msra.mxu0 0.0
    %3720 = vmatprep.subr.mxu0 0.0
    %3721 = vmatpush1.msra.mxu0 0.0
    %3722 = vmatprep.subr.mxu0 0.0
    %3723 = vmatpush1.msra.mxu0 0.0
    %3724 = vmatprep.subr.mxu0 0.0
    %3725 = vmatpush1.msra.mxu0 0.0
    %3726 = vmatprep.subr.mxu0 0.0
    %3727 = vmatpush1.msra.mxu0 0.0
    %3728 = vmatprep.subr.mxu0 0.0
    %3729 = vmatpush1.msra.mxu0 0.0
    %3730 = vmatprep.subr.mxu0 0.0
    %3731 = vmatpush1.msra.mxu0 0.0
    %3732 = vmatprep.subr.mxu0 0.0
    %3733 = vmatpush1.msra.mxu0 0.0
    %3734 = vmatprep.subr.mxu0 0.0
    %3735 = vmatpush1.msra.mxu0 0.0
    %3736 = vmatprep.subr.mxu0 0.0
    %3737 = vmatpush1.msra.mxu0 0.0
    %3738 = vmatprep.subr.mxu0 0.0
    %3739 = vmatpush1.msra.mxu0 0.0
    %3740 = vmatprep.subr.mxu0 0.0
    %3741 = vmatpush1.msra.mxu0 0.0
    %3742 = vmatprep.subr.mxu0 0.0
    %3743 = vmatpush1.msra.mxu0 0.0
    %3744 = vmatprep.subr.mxu0 0.0
    %3745 = vmatpush1.msra.mxu0 0.0
    %3746 = vmatprep.subr.mxu0 0.0
    %3747 = vmatpush1.msra.mxu0 0.0
    %3748 = vmatprep.mubr.f32.mxu0 0.0
    %3749 = vmatmul.mubr.f32.gmra.mrb[0].mxu0 %v158
    %v3750 = vpop.f32.mrb[0].mxu0
    %v3751 = vadd.f32 0.0, %v3750
    %v3752 = vpop.f32.mrb[0].mxu0
    %v3753 = vadd.f32 0.0, %v3752
    %3754 = vmatprep.mubr.f32.mxu0 0.0
    %3755 = vmatmul.mubr.f32.gmra.mrb[0].mxu0 %v161
    %v3756 = vpop.f32.mrb[0].mxu0
    %v3757 = vadd.f32 0.0, %v3756
    %v3758 = vpop.f32.mrb[0].mxu0
    %v3759 = vadd.f32 0.0, %v3758
    %3760 = vmatprep.mubr.f32.mxu0 0.0
    %3761 = vmatmul.mubr.f32.gmra.mrb[0].mxu0 %v164
    %v3762 = vpop.f32.mrb[0].mxu0
    %v3763 = vadd.f32 0.0, %v3762
    %v3764 = vpop.f32.mrb[0].mxu0
    %v3765 = vadd.f32 0.0, %v3764
    %3766 = vmatprep.mubr.f32.mxu0 0.0
    %3767 = vmatmul.mubr.f32.gmra.mrb[0].mxu0 %v167
    %v3768 = vpop.f32.mrb[0].mxu0
    %v3769 = vadd.f32 0.0, %v3768
    %v3770 = vpop.f32.mrb[0].mxu0
    %v3771 = vadd.f32 0.0, %v3770
    %3772 = vmatprep.mubr.f32.mxu0 0.0
    %3773 = vmatmul.mubr.f32.gmra.mrb[0].mxu0 %v170
    %v3774 = vpop.f32.mrb[0].mxu0
    %v3775 = vadd.f32 0.0, %v3774
    %v3776 = vpop.f32.mrb[0].mxu0
    %v3777 = vadd.f32 0.0, %v3776
    %3778 = vmatprep.mubr.f32.mxu0 0.0
    %3779 = vmatmul.mubr.f32.gmra.mrb[0].mxu0 %v173
    %v3780 = vpop.f32.mrb[0].mxu0
    %v3781 = vadd.f32 0.0, %v3780
    %v3782 = vpop.f32.mrb[0].mxu0
    %v3783 = vadd.f32 0.0, %v3782
    %3784 = vmatprep.mubr.f32.mxu0 0.0
    %3785 = vmatmul.mubr.f32.gmra.mrb[0].mxu0 %v176
    %v3786 = vpop.f32.mrb[0].mxu0
    %v3787 = vadd.f32 0.0, %v3786
    %v3788 = vpop.f32.mrb[0].mxu0
    %v3789 = vadd.f32 0.0, %v3788
    %3790 = vmatprep.mubr.f32.mxu0 0.0
    %3791 = vmatmul.mubr.f32.gmra.mrb[0].mxu0 %v179
    %v3792 = vpop.f32.mrb[0].mxu0
    %v3793 = vadd.f32 0.0, %v3792
    %v3794 = vpop.f32.mrb[0].mxu0
    %v3795 = vadd.f32 0.0, %v3794
    %3796 = vdwg.mxu0
    %3797 = vmatprep.subr.mxu0 %v141
    %3798 = vmatpush1.msra.mxu0 %v140
    %3799 = vmatprep.subr.mxu0 0.0
    %3800 = vmatpush1.msra.mxu0 0.0
    %3801 = vmatprep.subr.mxu0 0.0
    %3802 = vmatpush1.msra.mxu0 0.0
    %3803 = vmatprep.subr.mxu0 0.0
    %3804 = vmatpush1.msra.mxu0 0.0
    %3805 = vmatprep.subr.mxu0 0.0
    %3806 = vmatpush1.msra.mxu0 0.0
    %3807 = vmatprep.subr.mxu0 0.0
    %3808 = vmatpush1.msra.mxu0 0.0
    %3809 = vmatprep.subr.mxu0 0.0
    %3810 = vmatpush1.msra.mxu0 0.0
    %3811 = vmatprep.subr.mxu0 0.0
    %3812 = vmatpush1.msra.mxu0 0.0
    %3813 = vmatprep.subr.mxu0 0.0
    %3814 = vmatpush1.msra.mxu0 0.0
    %3815 = vmatprep.subr.mxu0 0.0
    %3816 = vmatpush1.msra.mxu0 0.0
    %3817 = vmatprep.subr.mxu0 0.0
    %3818 = vmatpush1.msra.mxu0 0.0
    %3819 = vmatprep.subr.mxu0 0.0
    %3820 = vmatpush1.msra.mxu0 0.0
    %3821 = vmatprep.subr.mxu0 0.0
    %3822 = vmatpush1.msra.mxu0 0.0
    %3823 = vmatprep.subr.mxu0 0.0
    %3824 = vmatpush1.msra.mxu0 0.0
    %3825 = vmatprep.subr.mxu0 0.0
    %3826 = vmatpush1.msra.mxu0 0.0
    %3827 = vmatprep.subr.mxu0 0.0
    %3828 = vmatpush1.msra.mxu0 0.0
    %3829 = vmatprep.subr.mxu0 0.0
    %3830 = vmatpush1.msra.mxu0 0.0
    %3831 = vmatprep.subr.mxu0 0.0
    %3832 = vmatpush1.msra.mxu0 0.0
    %3833 = vmatprep.subr.mxu0 0.0
    %3834 = vmatpush1.msra.mxu0 0.0
    %3835 = vmatprep.subr.mxu0 0.0
    %3836 = vmatpush1.msra.mxu0 0.0
    %3837 = vmatprep.subr.mxu0 0.0
    %3838 = vmatpush1.msra.mxu0 0.0
    %3839 = vmatprep.subr.mxu0 0.0
    %3840 = vmatpush1.msra.mxu0 0.0
    %3841 = vmatprep.subr.mxu0 0.0
    %3842 = vmatpush1.msra.mxu0 0.0
    %3843 = vmatprep.subr.mxu0 0.0
    %3844 = vmatpush1.msra.mxu0 0.0
    %3845 = vmatprep.subr.mxu0 0.0
    %3846 = vmatpush1.msra.mxu0 0.0
    %3847 = vmatprep.subr.mxu0 0.0
    %3848 = vmatpush1.msra.mxu0 0.0
    %3849 = vmatprep.subr.mxu0 0.0
    %3850 = vmatpush1.msra.mxu0 0.0
    %3851 = vmatprep.subr.mxu0 0.0
    %3852 = vmatpush1.msra.mxu0 0.0
    %3853 = vmatprep.subr.mxu0 0.0
    %3854 = vmatpush1.msra.mxu0 0.0
    %3855 = vmatprep.subr.mxu0 0.0
    %3856 = vmatpush1.msra.mxu0 0.0
    %3857 = vmatprep.subr.mxu0 0.0
    %3858 = vmatpush1.msra.mxu0 0.0
    %3859 = vmatprep.subr.mxu0 0.0
    %3860 = vmatpush1.msra.mxu0 0.0
    %3861 = vmatprep.mubr.f32.mxu0 0.0
    %3862 = vmatmul.mubr.f32.gmra.mrb[0].mxu0 %v158
    %v3863 = vpop.f32.mrb[0].mxu0
    %v3864 = vadd.f32 0.0, %v3863
    %v3865 = vpop.f32.mrb[0].mxu0
    %v3866 = vadd.f32 0.0, %v3865
    %3867 = vmatprep.mubr.f32.mxu0 0.0
    %3868 = vmatmul.mubr.f32.gmra.mrb[0].mxu0 %v161
    %v3869 = vpop.f32.mrb[0].mxu0
    %v3870 = vadd.f32 0.0, %v3869
    %v3871 = vpop.f32.mrb[0].mxu0
    %v3872 = vadd.f32 0.0, %v3871
    %3873 = vmatprep.mubr.f32.mxu0 0.0
    %3874 = vmatmul.mubr.f32.gmra.mrb[0].mxu0 %v164
    %v3875 = vpop.f32.mrb[0].mxu0
    %v3876 = vadd.f32 0.0, %v3875
    %v3877 = vpop.f32.mrb[0].mxu0
    %v3878 = vadd.f32 0.0, %v3877
    %3879 = vmatprep.mubr.f32.mxu0 0.0
    %3880 = vmatmul.mubr.f32.gmra.mrb[0].mxu0 %v167
    %v3881 = vpop.f32.mrb[0].mxu0
    %v3882 = vadd.f32 0.0, %v3881
    %v3883 = vpop.f32.mrb[0].mxu0
    %v3884 = vadd.f32 0.0, %v3883
    %3885 = vmatprep.mubr.f32.mxu0 0.0
    %3886 = vmatmul.mubr.f32.gmra.mrb[0].mxu0 %v170
    %v3887 = vpop.f32.mrb[0].mxu0
    %v3888 = vadd.f32 0.0, %v3887
    %v3889 = vpop.f32.mrb[0].mxu0
    %v3890 = vadd.f32 0.0, %v3889
    %3891 = vmatprep.mubr.f32.mxu0 0.0
    %3892 = vmatmul.mubr.f32.gmra.mrb[0].mxu0 %v173
    %v3893 = vpop.f32.mrb[0].mxu0
    %v3894 = vadd.f32 0.0, %v3893
    %v3895 = vpop.f32.mrb[0].mxu0
    %v3896 = vadd.f32 0.0, %v3895
    %3897 = vmatprep.mubr.f32.mxu0 0.0
    %3898 = vmatmul.mubr.f32.gmra.mrb[0].mxu0 %v176
    %v3899 = vpop.f32.mrb[0].mxu0
    %v3900 = vadd.f32 0.0, %v3899
    %v3901 = vpop.f32.mrb[0].mxu0
    %v3902 = vadd.f32 0.0, %v3901
    %3903 = vmatprep.mubr.f32.mxu0 0.0
    %3904 = vmatmul.mubr.f32.gmra.mrb[0].mxu0 %v179
    %v3905 = vpop.f32.mrb[0].mxu0
    %v3906 = vadd.f32 0.0, %v3905
    %v3907 = vpop.f32.mrb[0].mxu0
    %v3908 = vadd.f32 0.0, %v3907
    %3909 = vdwg.mxu0
    %3910 = vmatprep.subr.mxu0 %v143
    %3911 = vmatpush1.msra.mxu0 %v142
    %3912 = vmatprep.subr.mxu0 0.0
    %3913 = vmatpush1.msra.mxu0 0.0
    %3914 = vmatprep.subr.mxu0 0.0
    %3915 = vmatpush1.msra.mxu0 0.0
    %3916 = vmatprep.subr.mxu0 0.0
    %3917 = vmatpush1.msra.mxu0 0.0
    %3918 = vmatprep.subr.mxu0 0.0
    %3919 = vmatpush1.msra.mxu0 0.0
    %3920 = vmatprep.subr.mxu0 0.0
    %3921 = vmatpush1.msra.mxu0 0.0
    %3922 = vmatprep.subr.mxu0 0.0
    %3923 = vmatpush1.msra.mxu0 0.0
    %3924 = vmatprep.subr.mxu0 0.0
    %3925 = vmatpush1.msra.mxu0 0.0
    %3926 = vmatprep.subr.mxu0 0.0
    %3927 = vmatpush1.msra.mxu0 0.0
    %3928 = vmatprep.subr.mxu0 0.0
    %3929 = vmatpush1.msra.mxu0 0.0
    %3930 = vmatprep.subr.mxu0 0.0
    %3931 = vmatpush1.msra.mxu0 0.0
    %3932 = vmatprep.subr.mxu0 0.0
    %3933 = vmatpush1.msra.mxu0 0.0
    %3934 = vmatprep.subr.mxu0 0.0
    %3935 = vmatpush1.msra.mxu0 0.0
    %3936 = vmatprep.subr.mxu0 0.0
    %3937 = vmatpush1.msra.mxu0 0.0
    %3938 = vmatprep.subr.mxu0 0.0
    %3939 = vmatpush1.msra.mxu0 0.0
    %3940 = vmatprep.subr.mxu0 0.0
    %3941 = vmatpush1.msra.mxu0 0.0
    %3942 = vmatprep.subr.mxu0 0.0
    %3943 = vmatpush1.msra.mxu0 0.0
    %3944 = vmatprep.subr.mxu0 0.0
    %3945 = vmatpush1.msra.mxu0 0.0
    %3946 = vmatprep.subr.mxu0 0.0
    %3947 = vmatpush1.msra.mxu0 0.0
    %3948 = vmatprep.subr.mxu0 0.0
    %3949 = vmatpush1.msra.mxu0 0.0
    %3950 = vmatprep.subr.mxu0 0.0
    %3951 = vmatpush1.msra.mxu0 0.0
    %3952 = vmatprep.subr.mxu0 0.0
    %3953 = vmatpush1.msra.mxu0 0.0
    %3954 = vmatprep.subr.mxu0 0.0
    %3955 = vmatpush1.msra.mxu0 0.0
    %3956 = vmatprep.subr.mxu0 0.0
    %3957 = vmatpush1.msra.mxu0 0.0
    %3958 = vmatprep.subr.mxu0 0.0
    %3959 = vmatpush1.msra.mxu0 0.0
    %3960 = vmatprep.subr.mxu0 0.0
    %3961 = vmatpush1.msra.mxu0 0.0
    %3962 = vmatprep.subr.mxu0 0.0
    %3963 = vmatpush1.msra.mxu0 0.0
    %3964 = vmatprep.subr.mxu0 0.0
    %3965 = vmatpush1.msra.mxu0 0.0
    %3966 = vmatprep.subr.mxu0 0.0
    %3967 = vmatpush1.msra.mxu0 0.0
    %3968 = vmatprep.subr.mxu0 0.0
    %3969 = vmatpush1.msra.mxu0 0.0
    %3970 = vmatprep.subr.mxu0 0.0
    %3971 = vmatpush1.msra.mxu0 0.0
    %3972 = vmatprep.subr.mxu0 0.0
    %3973 = vmatpush1.msra.mxu0 0.0
    %3974 = vmatprep.mubr.f32.mxu0 0.0
    %3975 = vmatmul.mubr.f32.gmra.mrb[0].mxu0 %v158
    %v3976 = vpop.f32.mrb[0].mxu0
    %v3977 = vadd.f32 0.0, %v3976
    %v3978 = vpop.f32.mrb[0].mxu0
    %v3979 = vadd.f32 0.0, %v3978
    %3980 = vmatprep.mubr.f32.mxu0 0.0
    %3981 = vmatmul.mubr.f32.gmra.mrb[0].mxu0 %v161
    %v3982 = vpop.f32.mrb[0].mxu0
    %v3983 = vadd.f32 0.0, %v3982
    %v3984 = vpop.f32.mrb[0].mxu0
    %v3985 = vadd.f32 0.0, %v3984
    %3986 = vmatprep.mubr.f32.mxu0 0.0
    %3987 = vmatmul.mubr.f32.gmra.mrb[0].mxu0 %v164
    %v3988 = vpop.f32.mrb[0].mxu0
    %v3989 = vadd.f32 0.0, %v3988
    %v3990 = vpop.f32.mrb[0].mxu0
    %v3991 = vadd.f32 0.0, %v3990
    %3992 = vmatprep.mubr.f32.mxu0 0.0
    %3993 = vmatmul.mubr.f32.gmra.mrb[0].mxu0 %v167
    %v3994 = vpop.f32.mrb[0].mxu0
    %v3995 = vadd.f32 0.0, %v3994
    %v3996 = vpop.f32.mrb[0].mxu0
    %v3997 = vadd.f32 0.0, %v3996
    %3998 = vmatprep.mubr.f32.mxu0 0.0
    %3999 = vmatmul.mubr.f32.gmra.mrb[0].mxu0 %v170
    %v4000 = vpop.f32.mrb[0].mxu0
    %v4001 = vadd.f32 0.0, %v4000
    %v4002 = vpop.f32.mrb[0].mxu0
    %v4003 = vadd.f32 0.0, %v4002
    %4004 = vmatprep.mubr.f32.mxu0 0.0
    %4005 = vmatmul.mubr.f32.gmra.mrb[0].mxu0 %v173
    %v4006 = vpop.f32.mrb[0].mxu0
    %v4007 = vadd.f32 0.0, %v4006
    %v4008 = vpop.f32.mrb[0].mxu0
    %v4009 = vadd.f32 0.0, %v4008
    %4010 = vmatprep.mubr.f32.mxu0 0.0
    %4011 = vmatmul.mubr.f32.gmra.mrb[0].mxu0 %v176
    %v4012 = vpop.f32.mrb[0].mxu0
    %v4013 = vadd.f32 0.0, %v4012
    %v4014 = vpop.f32.mrb[0].mxu0
    %v4015 = vadd.f32 0.0, %v4014
    %4016 = vmatprep.mubr.f32.mxu0 0.0
    %4017 = vmatmul.mubr.f32.gmra.mrb[0].mxu0 %v179
    %v4018 = vpop.f32.mrb[0].mxu0
    %v4019 = vadd.f32 0.0, %v4018
    %v4020 = vpop.f32.mrb[0].mxu0
    %v4021 = vadd.f32 0.0, %v4020
    %4022 = vdwg.mxu0
    %4023 = vmatprep.subr.mxu0 %v145
    %4024 = vmatpush1.msra.mxu0 %v144
    %4025 = vmatprep.subr.mxu0 0.0
    %4026 = vmatpush1.msra.mxu0 0.0
    %4027 = vmatprep.subr.mxu0 0.0
    %4028 = vmatpush1.msra.mxu0 0.0
    %4029 = vmatprep.subr.mxu0 0.0
    %4030 = vmatpush1.msra.mxu0 0.0
    %4031 = vmatprep.subr.mxu0 0.0
    %4032 = vmatpush1.msra.mxu0 0.0
    %4033 = vmatprep.subr.mxu0 0.0
    %4034 = vmatpush1.msra.mxu0 0.0
    %4035 = vmatprep.subr.mxu0 0.0
    %4036 = vmatpush1.msra.mxu0 0.0
    %4037 = vmatprep.subr.mxu0 0.0
    %4038 = vmatpush1.msra.mxu0 0.0
    %4039 = vmatprep.subr.mxu0 0.0
    %4040 = vmatpush1.msra.mxu0 0.0
    %4041 = vmatprep.subr.mxu0 0.0
    %4042 = vmatpush1.msra.mxu0 0.0
    %4043 = vmatprep.subr.mxu0 0.0
    %4044 = vmatpush1.msra.mxu0 0.0
    %4045 = vmatprep.subr.mxu0 0.0
    %4046 = vmatpush1.msra.mxu0 0.0
    %4047 = vmatprep.subr.mxu0 0.0
    %4048 = vmatpush1.msra.mxu0 0.0
    %4049 = vmatprep.subr.mxu0 0.0
    %4050 = vmatpush1.msra.mxu0 0.0
    %4051 = vmatprep.subr.mxu0 0.0
    %4052 = vmatpush1.msra.mxu0 0.0
    %4053 = vmatprep.subr.mxu0 0.0
    %4054 = vmatpush1.msra.mxu0 0.0
    %4055 = vmatprep.subr.mxu0 0.0
    %4056 = vmatpush1.msra.mxu0 0.0
    %4057 = vmatprep.subr.mxu0 0.0
    %4058 = vmatpush1.msra.mxu0 0.0
    %4059 = vmatprep.subr.mxu0 0.0
    %4060 = vmatpush1.msra.mxu0 0.0
    %4061 = vmatprep.subr.mxu0 0.0
    %4062 = vmatpush1.msra.mxu0 0.0
    %4063 = vmatprep.subr.mxu0 0.0
    %4064 = vmatpush1.msra.mxu0 0.0
    %4065 = vmatprep.subr.mxu0 0.0
    %4066 = vmatpush1.msra.mxu0 0.0
    %4067 = vmatprep.subr.mxu0 0.0
    %4068 = vmatpush1.msra.mxu0 0.0
    %4069 = vmatprep.subr.mxu0 0.0
    %4070 = vmatpush1.msra.mxu0 0.0
    %4071 = vmatprep.subr.mxu0 0.0
    %4072 = vmatpush1.msra.mxu0 0.0
    %4073 = vmatprep.subr.mxu0 0.0
    %4074 = vmatpush1.msra.mxu0 0.0
    %4075 = vmatprep.subr.mxu0 0.0
    %4076 = vmatpush1.msra.mxu0 0.0
    %4077 = vmatprep.subr.mxu0 0.0
    %4078 = vmatpush1.msra.mxu0 0.0
    %4079 = vmatprep.subr.mxu0 0.0
    %4080 = vmatpush1.msra.mxu0 0.0
    %4081 = vmatprep.subr.mxu0 0.0
    %4082 = vmatpush1.msra.mxu0 0.0
    %4083 = vmatprep.subr.mxu0 0.0
    %4084 = vmatpush1.msra.mxu0 0.0
    %4085 = vmatprep.subr.mxu0 0.0
    %4086 = vmatpush1.msra.mxu0 0.0
    %4087 = vmatprep.mubr.f32.mxu0 0.0
    %4088 = vmatmul.mubr.f32.gmra.mrb[0].mxu0 %v158
    %v4089 = vpop.f32.mrb[0].mxu0
    %v4090 = vadd.f32 0.0, %v4089
    %v4091 = vpop.f32.mrb[0].mxu0
    %v4092 = vadd.f32 0.0, %v4091
    %4093 = vmatprep.mubr.f32.mxu0 0.0
    %4094 = vmatmul.mubr.f32.gmra.mrb[0].mxu0 %v161
    %v4095 = vpop.f32.mrb[0].mxu0
    %v4096 = vadd.f32 0.0, %v4095
    %v4097 = vpop.f32.mrb[0].mxu0
    %v4098 = vadd.f32 0.0, %v4097
    %4099 = vmatprep.mubr.f32.mxu0 0.0
    %4100 = vmatmul.mubr.f32.gmra.mrb[0].mxu0 %v164
    %v4101 = vpop.f32.mrb[0].mxu0
    %v4102 = vadd.f32 0.0, %v4101
    %v4103 = vpop.f32.mrb[0].mxu0
    %v4104 = vadd.f32 0.0, %v4103
    %4105 = vmatprep.mubr.f32.mxu0 0.0
    %4106 = vmatmul.mubr.f32.gmra.mrb[0].mxu0 %v167
    %v4107 = vpop.f32.mrb[0].mxu0
    %v4108 = vadd.f32 0.0, %v4107
    %v4109 = vpop.f32.mrb[0].mxu0
    %v4110 = vadd.f32 0.0, %v4109
    %4111 = vmatprep.mubr.f32.mxu0 0.0
    %4112 = vmatmul.mubr.f32.gmra.mrb[0].mxu0 %v170
    %v4113 = vpop.f32.mrb[0].mxu0
    %v4114 = vadd.f32 0.0, %v4113
    %v4115 = vpop.f32.mrb[0].mxu0
    %v4116 = vadd.f32 0.0, %v4115
    %4117 = vmatprep.mubr.f32.mxu0 0.0
    %4118 = vmatmul.mubr.f32.gmra.mrb[0].mxu0 %v173
    %v4119 = vpop.f32.mrb[0].mxu0
    %v4120 = vadd.f32 0.0, %v4119
    %v4121 = vpop.f32.mrb[0].mxu0
    %v4122 = vadd.f32 0.0, %v4121
    %4123 = vmatprep.mubr.f32.mxu0 0.0
    %4124 = vmatmul.mubr.f32.gmra.mrb[0].mxu0 %v176
    %v4125 = vpop.f32.mrb[0].mxu0
    %v4126 = vadd.f32 0.0, %v4125
    %v4127 = vpop.f32.mrb[0].mxu0
    %v4128 = vadd.f32 0.0, %v4127
    %4129 = vmatprep.mubr.f32.mxu0 0.0
    %4130 = vmatmul.mubr.f32.gmra.mrb[0].mxu0 %v179
    %v4131 = vpop.f32.mrb[0].mxu0
    %v4132 = vadd.f32 0.0, %v4131
    %v4133 = vpop.f32.mrb[0].mxu0
    %v4134 = vadd.f32 0.0, %v4133
    %4135 = vdwg.mxu0
    %4136 = vmatprep.subr.mxu0 %v147
    %4137 = vmatpush1.msra.mxu0 %v146
    %4138 = vmatprep.subr.mxu0 0.0
    %4139 = vmatpush1.msra.mxu0 0.0
    %4140 = vmatprep.subr.mxu0 0.0
    %4141 = vmatpush1.msra.mxu0 0.0
    %4142 = vmatprep.subr.mxu0 0.0
    %4143 = vmatpush1.msra.mxu0 0.0
    %4144 = vmatprep.subr.mxu0 0.0
    %4145 = vmatpush1.msra.mxu0 0.0
    %4146 = vmatprep.subr.mxu0 0.0
    %4147 = vmatpush1.msra.mxu0 0.0
    %4148 = vmatprep.subr.mxu0 0.0
    %4149 = vmatpush1.msra.mxu0 0.0
    %4150 = vmatprep.subr.mxu0 0.0
    %4151 = vmatpush1.msra.mxu0 0.0
    %4152 = vmatprep.subr.mxu0 0.0
    %4153 = vmatpush1.msra.mxu0 0.0
    %4154 = vmatprep.subr.mxu0 0.0
    %4155 = vmatpush1.msra.mxu0 0.0
    %4156 = vmatprep.subr.mxu0 0.0
    %4157 = vmatpush1.msra.mxu0 0.0
    %4158 = vmatprep.subr.mxu0 0.0
    %4159 = vmatpush1.msra.mxu0 0.0
    %4160 = vmatprep.subr.mxu0 0.0
    %4161 = vmatpush1.msra.mxu0 0.0
    %4162 = vmatprep.subr.mxu0 0.0
    %4163 = vmatpush1.msra.mxu0 0.0
    %4164 = vmatprep.subr.mxu0 0.0
    %4165 = vmatpush1.msra.mxu0 0.0
    %4166 = vmatprep.subr.mxu0 0.0
    %4167 = vmatpush1.msra.mxu0 0.0
    %4168 = vmatprep.subr.mxu0 0.0
    %4169 = vmatpush1.msra.mxu0 0.0
    %4170 = vmatprep.subr.mxu0 0.0
    %4171 = vmatpush1.msra.mxu0 0.0
    %4172 = vmatprep.subr.mxu0 0.0
    %4173 = vmatpush1.msra.mxu0 0.0
    %4174 = vmatprep.subr.mxu0 0.0
    %4175 = vmatpush1.msra.mxu0 0.0
    %4176 = vmatprep.subr.mxu0 0.0
    %4177 = vmatpush1.msra.mxu0 0.0
    %4178 = vmatprep.subr.mxu0 0.0
    %4179 = vmatpush1.msra.mxu0 0.0
    %4180 = vmatprep.subr.mxu0 0.0
    %4181 = vmatpush1.msra.mxu0 0.0
    %4182 = vmatprep.subr.mxu0 0.0
    %4183 = vmatpush1.msra.mxu0 0.0
    %4184 = vmatprep.subr.mxu0 0.0
    %4185 = vmatpush1.msra.mxu0 0.0
    %4186 = vmatprep.subr.mxu0 0.0
    %4187 = vmatpush1.msra.mxu0 0.0
    %4188 = vmatprep.subr.mxu0 0.0
    %4189 = vmatpush1.msra.mxu0 0.0
    %4190 = vmatprep.subr.mxu0 0.0
    %4191 = vmatpush1.msra.mxu0 0.0
    %4192 = vmatprep.subr.mxu0 0.0
    %4193 = vmatpush1.msra.mxu0 0.0
    %4194 = vmatprep.subr.mxu0 0.0
    %4195 = vmatpush1.msra.mxu0 0.0
    %4196 = vmatprep.subr.mxu0 0.0
    %4197 = vmatpush1.msra.mxu0 0.0
    %4198 = vmatprep.subr.mxu0 0.0
    %4199 = vmatpush1.msra.mxu0 0.0
    %4200 = vmatprep.mubr.f32.mxu0 0.0
    %4201 = vmatmul.mubr.f32.gmra.mrb[0].mxu0 %v158
    %v4202 = vpop.f32.mrb[0].mxu0
    %v4203 = vadd.f32 0.0, %v4202
    %v4204 = vpop.f32.mrb[0].mxu0
    %v4205 = vadd.f32 0.0, %v4204
    %4206 = vmatprep.mubr.f32.mxu0 0.0
    %4207 = vmatmul.mubr.f32.gmra.mrb[0].mxu0 %v161
    %v4208 = vpop.f32.mrb[0].mxu0
    %v4209 = vadd.f32 0.0, %v4208
    %v4210 = vpop.f32.mrb[0].mxu0
    %v4211 = vadd.f32 0.0, %v4210
    %4212 = vmatprep.mubr.f32.mxu0 0.0
    %4213 = vmatmul.mubr.f32.gmra.mrb[0].mxu0 %v164
    %v4214 = vpop.f32.mrb[0].mxu0
    %v4215 = vadd.f32 0.0, %v4214
    %v4216 = vpop.f32.mrb[0].mxu0
    %v4217 = vadd.f32 0.0, %v4216
    %4218 = vmatprep.mubr.f32.mxu0 0.0
    %4219 = vmatmul.mubr.f32.gmra.mrb[0].mxu0 %v167
    %v4220 = vpop.f32.mrb[0].mxu0
    %v4221 = vadd.f32 0.0, %v4220
    %v4222 = vpop.f32.mrb[0].mxu0
    %v4223 = vadd.f32 0.0, %v4222
    %4224 = vmatprep.mubr.f32.mxu0 0.0
    %4225 = vmatmul.mubr.f32.gmra.mrb[0].mxu0 %v170
    %v4226 = vpop.f32.mrb[0].mxu0
    %v4227 = vadd.f32 0.0, %v4226
    %v4228 = vpop.f32.mrb[0].mxu0
    %v4229 = vadd.f32 0.0, %v4228
    %4230 = vmatprep.mubr.f32.mxu0 0.0
    %4231 = vmatmul.mubr.f32.gmra.mrb[0].mxu0 %v173
    %v4232 = vpop.f32.mrb[0].mxu0
    %v4233 = vadd.f32 0.0, %v4232
    %v4234 = vpop.f32.mrb[0].mxu0
    %v4235 = vadd.f32 0.0, %v4234
    %4236 = vmatprep.mubr.f32.mxu0 0.0
    %4237 = vmatmul.mubr.f32.gmra.mrb[0].mxu0 %v176
    %v4238 = vpop.f32.mrb[0].mxu0
    %v4239 = vadd.f32 0.0, %v4238
    %v4240 = vpop.f32.mrb[0].mxu0
    %v4241 = vadd.f32 0.0, %v4240
    %4242 = vmatprep.mubr.f32.mxu0 0.0
    %4243 = vmatmul.mubr.f32.gmra.mrb[0].mxu0 %v179
    %v4244 = vpop.f32.mrb[0].mxu0
    %v4245 = vadd.f32 0.0, %v4244
    %v4246 = vpop.f32.mrb[0].mxu0
    %v4247 = vadd.f32 0.0, %v4246
    %4248 = vdwg.mxu0
    %4249 = vmatprep.subr.mxu0 %v149
    %4250 = vmatpush1.msra.mxu0 %v148
    %4251 = vmatprep.subr.mxu0 0.0
    %4252 = vmatpush1.msra.mxu0 0.0
    %4253 = vmatprep.subr.mxu0 0.0
    %4254 = vmatpush1.msra.mxu0 0.0
    %4255 = vmatprep.subr.mxu0 0.0
    %4256 = vmatpush1.msra.mxu0 0.0
    %4257 = vmatprep.subr.mxu0 0.0
    %4258 = vmatpush1.msra.mxu0 0.0
    %4259 = vmatprep.subr.mxu0 0.0
    %4260 = vmatpush1.msra.mxu0 0.0
    %4261 = vmatprep.subr.mxu0 0.0
    %4262 = vmatpush1.msra.mxu0 0.0
    %4263 = vmatprep.subr.mxu0 0.0
    %4264 = vmatpush1.msra.mxu0 0.0
    %4265 = vmatprep.subr.mxu0 0.0
    %4266 = vmatpush1.msra.mxu0 0.0
    %4267 = vmatprep.subr.mxu0 0.0
    %4268 = vmatpush1.msra.mxu0 0.0
    %4269 = vmatprep.subr.mxu0 0.0
    %4270 = vmatpush1.msra.mxu0 0.0
    %4271 = vmatprep.subr.mxu0 0.0
    %4272 = vmatpush1.msra.mxu0 0.0
    %4273 = vmatprep.subr.mxu0 0.0
    %4274 = vmatpush1.msra.mxu0 0.0
    %4275 = vmatprep.subr.mxu0 0.0
    %4276 = vmatpush1.msra.mxu0 0.0
    %4277 = vmatprep.subr.mxu0 0.0
    %4278 = vmatpush1.msra.mxu0 0.0
    %4279 = vmatprep.subr.mxu0 0.0
    %4280 = vmatpush1.msra.mxu0 0.0
    %4281 = vmatprep.subr.mxu0 0.0
    %4282 = vmatpush1.msra.mxu0 0.0
    %4283 = vmatprep.subr.mxu0 0.0
    %4284 = vmatpush1.msra.mxu0 0.0
    %4285 = vmatprep.subr.mxu0 0.0
    %4286 = vmatpush1.msra.mxu0 0.0
    %4287 = vmatprep.subr.mxu0 0.0
    %4288 = vmatpush1.msra.mxu0 0.0
    %4289 = vmatprep.subr.mxu0 0.0
    %4290 = vmatpush1.msra.mxu0 0.0
    %4291 = vmatprep.subr.mxu0 0.0
    %4292 = vmatpush1.msra.mxu0 0.0
    %4293 = vmatprep.subr.mxu0 0.0
    %4294 = vmatpush1.msra.mxu0 0.0
    %4295 = vmatprep.subr.mxu0 0.0
    %4296 = vmatpush1.msra.mxu0 0.0
    %4297 = vmatprep.subr.mxu0 0.0
    %4298 = vmatpush1.msra.mxu0 0.0
    %4299 = vmatprep.subr.mxu0 0.0
    %4300 = vmatpush1.msra.mxu0 0.0
    %4301 = vmatprep.subr.mxu0 0.0
    %4302 = vmatpush1.msra.mxu0 0.0
    %4303 = vmatprep.subr.mxu0 0.0
    %4304 = vmatpush1.msra.mxu0 0.0
    %4305 = vmatprep.subr.mxu0 0.0
    %4306 = vmatpush1.msra.mxu0 0.0
    %4307 = vmatprep.subr.mxu0 0.0
    %4308 = vmatpush1.msra.mxu0 0.0
    %4309 = vmatprep.subr.mxu0 0.0
    %4310 = vmatpush1.msra.mxu0 0.0
    %4311 = vmatprep.subr.mxu0 0.0
    %4312 = vmatpush1.msra.mxu0 0.0
    %4313 = vmatprep.mubr.f32.mxu0 0.0
    %4314 = vmatmul.mubr.f32.gmra.mrb[0].mxu0 %v158
    %v4315 = vpop.f32.mrb[0].mxu0
    %v4316 = vadd.f32 0.0, %v4315
    %v4317 = vpop.f32.mrb[0].mxu0
    %v4318 = vadd.f32 0.0, %v4317
    %4319 = vmatprep.mubr.f32.mxu0 0.0
    %4320 = vmatmul.mubr.f32.gmra.mrb[0].mxu0 %v161
    %v4321 = vpop.f32.mrb[0].mxu0
    %v4322 = vadd.f32 0.0, %v4321
    %v4323 = vpop.f32.mrb[0].mxu0
    %v4324 = vadd.f32 0.0, %v4323
    %4325 = vmatprep.mubr.f32.mxu0 0.0
    %4326 = vmatmul.mubr.f32.gmra.mrb[0].mxu0 %v164
    %v4327 = vpop.f32.mrb[0].mxu0
    %v4328 = vadd.f32 0.0, %v4327
    %v4329 = vpop.f32.mrb[0].mxu0
    %v4330 = vadd.f32 0.0, %v4329
    %4331 = vmatprep.mubr.f32.mxu0 0.0
    %4332 = vmatmul.mubr.f32.gmra.mrb[0].mxu0 %v167
    %v4333 = vpop.f32.mrb[0].mxu0
    %v4334 = vadd.f32 0.0, %v4333
    %v4335 = vpop.f32.mrb[0].mxu0
    %v4336 = vadd.f32 0.0, %v4335
    %4337 = vmatprep.mubr.f32.mxu0 0.0
    %4338 = vmatmul.mubr.f32.gmra.mrb[0].mxu0 %v170
    %v4339 = vpop.f32.mrb[0].mxu0
    %v4340 = vadd.f32 0.0, %v4339
    %v4341 = vpop.f32.mrb[0].mxu0
    %v4342 = vadd.f32 0.0, %v4341
    %4343 = vmatprep.mubr.f32.mxu0 0.0
    %4344 = vmatmul.mubr.f32.gmra.mrb[0].mxu0 %v173
    %v4345 = vpop.f32.mrb[0].mxu0
    %v4346 = vadd.f32 0.0, %v4345
    %v4347 = vpop.f32.mrb[0].mxu0
    %v4348 = vadd.f32 0.0, %v4347
    %4349 = vmatprep.mubr.f32.mxu0 0.0
    %4350 = vmatmul.mubr.f32.gmra.mrb[0].mxu0 %v176
    %v4351 = vpop.f32.mrb[0].mxu0
    %v4352 = vadd.f32 0.0, %v4351
    %v4353 = vpop.f32.mrb[0].mxu0
    %v4354 = vadd.f32 0.0, %v4353
    %4355 = vmatprep.mubr.f32.mxu0 0.0
    %4356 = vmatmul.mubr.f32.gmra.mrb[0].mxu0 %v179
    %v4357 = vpop.f32.mrb[0].mxu0
    %v4358 = vadd.f32 0.0, %v4357
    %v4359 = vpop.f32.mrb[0].mxu0
    %v4360 = vadd.f32 0.0, %v4359
    %4361 = vdwg.mxu0
    %4362 = vmatprep.subr.mxu0 %v151
    %4363 = vmatpush1.msra.mxu0 %v150
    %4364 = vmatprep.subr.mxu0 0.0
    %4365 = vmatpush1.msra.mxu0 0.0
    %4366 = vmatprep.subr.mxu0 0.0
    %4367 = vmatpush1.msra.mxu0 0.0
    %4368 = vmatprep.subr.mxu0 0.0
    %4369 = vmatpush1.msra.mxu0 0.0
    %4370 = vmatprep.subr.mxu0 0.0
    %4371 = vmatpush1.msra.mxu0 0.0
    %4372 = vmatprep.subr.mxu0 0.0
    %4373 = vmatpush1.msra.mxu0 0.0
    %4374 = vmatprep.subr.mxu0 0.0
    %4375 = vmatpush1.msra.mxu0 0.0
    %4376 = vmatprep.subr.mxu0 0.0
    %4377 = vmatpush1.msra.mxu0 0.0
    %4378 = vmatprep.subr.mxu0 0.0
    %4379 = vmatpush1.msra.mxu0 0.0
    %4380 = vmatprep.subr.mxu0 0.0
    %4381 = vmatpush1.msra.mxu0 0.0
    %4382 = vmatprep.subr.mxu0 0.0
    %4383 = vmatpush1.msra.mxu0 0.0
    %4384 = vmatprep.subr.mxu0 0.0
    %4385 = vmatpush1.msra.mxu0 0.0
    %4386 = vmatprep.subr.mxu0 0.0
    %4387 = vmatpush1.msra.mxu0 0.0
    %4388 = vmatprep.subr.mxu0 0.0
    %4389 = vmatpush1.msra.mxu0 0.0
    %4390 = vmatprep.subr.mxu0 0.0
    %4391 = vmatpush1.msra.mxu0 0.0
    %4392 = vmatprep.subr.mxu0 0.0
    %4393 = vmatpush1.msra.mxu0 0.0
    %4394 = vmatprep.subr.mxu0 0.0
    %4395 = vmatpush1.msra.mxu0 0.0
    %4396 = vmatprep.subr.mxu0 0.0
    %4397 = vmatpush1.msra.mxu0 0.0
    %4398 = vmatprep.subr.mxu0 0.0
    %4399 = vmatpush1.msra.mxu0 0.0
    %4400 = vmatprep.subr.mxu0 0.0
    %4401 = vmatpush1.msra.mxu0 0.0
    %4402 = vmatprep.subr.mxu0 0.0
    %4403 = vmatpush1.msra.mxu0 0.0
    %4404 = vmatprep.subr.mxu0 0.0
    %4405 = vmatpush1.msra.mxu0 0.0
    %4406 = vmatprep.subr.mxu0 0.0
    %4407 = vmatpush1.msra.mxu0 0.0
    %4408 = vmatprep.subr.mxu0 0.0
    %4409 = vmatpush1.msra.mxu0 0.0
    %4410 = vmatprep.subr.mxu0 0.0
    %4411 = vmatpush1.msra.mxu0 0.0
    %4412 = vmatprep.subr.mxu0 0.0
    %4413 = vmatpush1.msra.mxu0 0.0
    %4414 = vmatprep.subr.mxu0 0.0
    %4415 = vmatpush1.msra.mxu0 0.0
    %4416 = vmatprep.subr.mxu0 0.0
    %4417 = vmatpush1.msra.mxu0 0.0
    %4418 = vmatprep.subr.mxu0 0.0
    %4419 = vmatpush1.msra.mxu0 0.0
    %4420 = vmatprep.subr.mxu0 0.0
    %4421 = vmatpush1.msra.mxu0 0.0
    %4422 = vmatprep.subr.mxu0 0.0
    %4423 = vmatpush1.msra.mxu0 0.0
    %4424 = vmatprep.subr.mxu0 0.0
    %4425 = vmatpush1.msra.mxu0 0.0
    %4426 = vmatprep.mubr.f32.mxu0 0.0
    %4427 = vmatmul.mubr.f32.gmra.mrb[0].mxu0 %v158
    %v4428 = vpop.f32.mrb[0].mxu0
    %v4429 = vadd.f32 0.0, %v4428
    %v4430 = vpop.f32.mrb[0].mxu0
    %v4431 = vadd.f32 0.0, %v4430
    %4432 = vmatprep.mubr.f32.mxu0 0.0
    %4433 = vmatmul.mubr.f32.gmra.mrb[0].mxu0 %v161
    %v4434 = vpop.f32.mrb[0].mxu0
    %v4435 = vadd.f32 0.0, %v4434
    %v4436 = vpop.f32.mrb[0].mxu0
    %v4437 = vadd.f32 0.0, %v4436
    %4438 = vmatprep.mubr.f32.mxu0 0.0
    %4439 = vmatmul.mubr.f32.gmra.mrb[0].mxu0 %v164
    %v4440 = vpop.f32.mrb[0].mxu0
    %v4441 = vadd.f32 0.0, %v4440
    %v4442 = vpop.f32.mrb[0].mxu0
    %v4443 = vadd.f32 0.0, %v4442
    %4444 = vmatprep.mubr.f32.mxu0 0.0
    %4445 = vmatmul.mubr.f32.gmra.mrb[0].mxu0 %v167
    %v4446 = vpop.f32.mrb[0].mxu0
    %v4447 = vadd.f32 0.0, %v4446
    %v4448 = vpop.f32.mrb[0].mxu0
    %v4449 = vadd.f32 0.0, %v4448
    %4450 = vmatprep.mubr.f32.mxu0 0.0
    %4451 = vmatmul.mubr.f32.gmra.mrb[0].mxu0 %v170
    %v4452 = vpop.f32.mrb[0].mxu0
    %v4453 = vadd.f32 0.0, %v4452
    %v4454 = vpop.f32.mrb[0].mxu0
    %v4455 = vadd.f32 0.0, %v4454
    %4456 = vmatprep.mubr.f32.mxu0 0.0
    %4457 = vmatmul.mubr.f32.gmra.mrb[0].mxu0 %v173
    %v4458 = vpop.f32.mrb[0].mxu0
    %v4459 = vadd.f32 0.0, %v4458
    %v4460 = vpop.f32.mrb[0].mxu0
    %v4461 = vadd.f32 0.0, %v4460
    %4462 = vmatprep.mubr.f32.mxu0 0.0
    %4463 = vmatmul.mubr.f32.gmra.mrb[0].mxu0 %v176
    %v4464 = vpop.f32.mrb[0].mxu0
    %v4465 = vadd.f32 0.0, %v4464
    %v4466 = vpop.f32.mrb[0].mxu0
    %v4467 = vadd.f32 0.0, %v4466
    %4468 = vmatprep.mubr.f32.mxu0 0.0
    %4469 = vmatmul.mubr.f32.gmra.mrb[0].mxu0 %v179
    %v4470 = vpop.f32.mrb[0].mxu0
    %v4471 = vadd.f32 0.0, %v4470
    %v4472 = vpop.f32.mrb[0].mxu0
    %v4473 = vadd.f32 0.0, %v4472
    %4474 = vdwg.mxu0
    %4475 = vmatprep.subr.mxu0 %v153
    %4476 = vmatpush1.msra.mxu0 %v152
    %4477 = vmatprep.subr.mxu0 0.0
    %4478 = vmatpush1.msra.mxu0 0.0
    %4479 = vmatprep.subr.mxu0 0.0
    %4480 = vmatpush1.msra.mxu0 0.0
    %4481 = vmatprep.subr.mxu0 0.0
    %4482 = vmatpush1.msra.mxu0 0.0
    %4483 = vmatprep.subr.mxu0 0.0
    %4484 = vmatpush1.msra.mxu0 0.0
    %4485 = vmatprep.subr.mxu0 0.0
    %4486 = vmatpush1.msra.mxu0 0.0
    %4487 = vmatprep.subr.mxu0 0.0
    %4488 = vmatpush1.msra.mxu0 0.0
    %4489 = vmatprep.subr.mxu0 0.0
    %4490 = vmatpush1.msra.mxu0 0.0
    %4491 = vmatprep.subr.mxu0 0.0
    %4492 = vmatpush1.msra.mxu0 0.0
    %4493 = vmatprep.subr.mxu0 0.0
    %4494 = vmatpush1.msra.mxu0 0.0
    %4495 = vmatprep.subr.mxu0 0.0
    %4496 = vmatpush1.msra.mxu0 0.0
    %4497 = vmatprep.subr.mxu0 0.0
    %4498 = vmatpush1.msra.mxu0 0.0
    %4499 = vmatprep.subr.mxu0 0.0
    %4500 = vmatpush1.msra.mxu0 0.0
    %4501 = vmatprep.subr.mxu0 0.0
    %4502 = vmatpush1.msra.mxu0 0.0
    %4503 = vmatprep.subr.mxu0 0.0
    %4504 = vmatpush1.msra.mxu0 0.0
    %4505 = vmatprep.subr.mxu0 0.0
    %4506 = vmatpush1.msra.mxu0 0.0
    %4507 = vmatprep.subr.mxu0 0.0
    %4508 = vmatpush1.msra.mxu0 0.0
    %4509 = vmatprep.subr.mxu0 0.0
    %4510 = vmatpush1.msra.mxu0 0.0
    %4511 = vmatprep.subr.mxu0 0.0
    %4512 = vmatpush1.msra.mxu0 0.0
    %4513 = vmatprep.subr.mxu0 0.0
    %4514 = vmatpush1.msra.mxu0 0.0
    %4515 = vmatprep.subr.mxu0 0.0
    %4516 = vmatpush1.msra.mxu0 0.0
    %4517 = vmatprep.subr.mxu0 0.0
    %4518 = vmatpush1.msra.mxu0 0.0
    %4519 = vmatprep.subr.mxu0 0.0
    %4520 = vmatpush1.msra.mxu0 0.0
    %4521 = vmatprep.subr.mxu0 0.0
    %4522 = vmatpush1.msra.mxu0 0.0
    %4523 = vmatprep.subr.mxu0 0.0
    %4524 = vmatpush1.msra.mxu0 0.0
    %4525 = vmatprep.subr.mxu0 0.0
    %4526 = vmatpush1.msra.mxu0 0.0
    %4527 = vmatprep.subr.mxu0 0.0
    %4528 = vmatpush1.msra.mxu0 0.0
    %4529 = vmatprep.subr.mxu0 0.0
    %4530 = vmatpush1.msra.mxu0 0.0
    %4531 = vmatprep.subr.mxu0 0.0
    %4532 = vmatpush1.msra.mxu0 0.0
    %4533 = vmatprep.subr.mxu0 0.0
    %4534 = vmatpush1.msra.mxu0 0.0
    %4535 = vmatprep.subr.mxu0 0.0
    %4536 = vmatpush1.msra.mxu0 0.0
    %4537 = vmatprep.subr.mxu0 0.0
    %4538 = vmatpush1.msra.mxu0 0.0
    %4539 = vmatprep.mubr.f32.mxu0 0.0
    %4540 = vmatmul.mubr.f32.gmra.mrb[0].mxu0 %v158
    %v4541 = vpop.f32.mrb[0].mxu0
    %v4542 = vadd.f32 0.0, %v4541
    %v4543 = vpop.f32.mrb[0].mxu0
    %v4544 = vadd.f32 0.0, %v4543
    %4545 = vmatprep.mubr.f32.mxu0 0.0
    %4546 = vmatmul.mubr.f32.gmra.mrb[0].mxu0 %v161
    %v4547 = vpop.f32.mrb[0].mxu0
    %v4548 = vadd.f32 0.0, %v4547
    %v4549 = vpop.f32.mrb[0].mxu0
    %v4550 = vadd.f32 0.0, %v4549
    %4551 = vmatprep.mubr.f32.mxu0 0.0
    %4552 = vmatmul.mubr.f32.gmra.mrb[0].mxu0 %v164
    %v4553 = vpop.f32.mrb[0].mxu0
    %v4554 = vadd.f32 0.0, %v4553
    %v4555 = vpop.f32.mrb[0].mxu0
    %v4556 = vadd.f32 0.0, %v4555
    %4557 = vmatprep.mubr.f32.mxu0 0.0
    %4558 = vmatmul.mubr.f32.gmra.mrb[0].mxu0 %v167
    %v4559 = vpop.f32.mrb[0].mxu0
    %v4560 = vadd.f32 0.0, %v4559
    %v4561 = vpop.f32.mrb[0].mxu0
    %v4562 = vadd.f32 0.0, %v4561
    %4563 = vmatprep.mubr.f32.mxu0 0.0
    %4564 = vmatmul.mubr.f32.gmra.mrb[0].mxu0 %v170
    %v4565 = vpop.f32.mrb[0].mxu0
    %v4566 = vadd.f32 0.0, %v4565
    %v4567 = vpop.f32.mrb[0].mxu0
    %v4568 = vadd.f32 0.0, %v4567
    %4569 = vmatprep.mubr.f32.mxu0 0.0
    %4570 = vmatmul.mubr.f32.gmra.mrb[0].mxu0 %v173
    %v4571 = vpop.f32.mrb[0].mxu0
    %v4572 = vadd.f32 0.0, %v4571
    %v4573 = vpop.f32.mrb[0].mxu0
    %v4574 = vadd.f32 0.0, %v4573
    %4575 = vmatprep.mubr.f32.mxu0 0.0
    %4576 = vmatmul.mubr.f32.gmra.mrb[0].mxu0 %v176
    %v4577 = vpop.f32.mrb[0].mxu0
    %v4578 = vadd.f32 0.0, %v4577
    %v4579 = vpop.f32.mrb[0].mxu0
    %v4580 = vadd.f32 0.0, %v4579
    %4581 = vmatprep.mubr.f32.mxu0 0.0
    %4582 = vmatmul.mubr.f32.gmra.mrb[0].mxu0 %v179
    %v4583 = vpop.f32.mrb[0].mxu0
    %v4584 = vadd.f32 0.0, %v4583
    %v4585 = vpop.f32.mrb[0].mxu0
    %v4586 = vadd.f32 0.0, %v4585
    %4587 = vdwg.mxu0
    %4588 = vmatprep.subr.mxu0 %v155
    %4589 = vmatpush1.msra.mxu0 %v154
    %4590 = vmatprep.subr.mxu0 0.0
    %4591 = vmatpush1.msra.mxu0 0.0
    %4592 = vmatprep.subr.mxu0 0.0
    %4593 = vmatpush1.msra.mxu0 0.0
    %4594 = vmatprep.subr.mxu0 0.0
    %4595 = vmatpush1.msra.mxu0 0.0
    %4596 = vmatprep.subr.mxu0 0.0
    %4597 = vmatpush1.msra.mxu0 0.0
    %4598 = vmatprep.subr.mxu0 0.0
    %4599 = vmatpush1.msra.mxu0 0.0
    %4600 = vmatprep.subr.mxu0 0.0
    %4601 = vmatpush1.msra.mxu0 0.0
    %4602 = vmatprep.subr.mxu0 0.0
    %4603 = vmatpush1.msra.mxu0 0.0
    %4604 = vmatprep.subr.mxu0 0.0
    %4605 = vmatpush1.msra.mxu0 0.0
    %4606 = vmatprep.subr.mxu0 0.0
    %4607 = vmatpush1.msra.mxu0 0.0
    %4608 = vmatprep.subr.mxu0 0.0
    %4609 = vmatpush1.msra.mxu0 0.0
    %4610 = vmatprep.subr.mxu0 0.0
    %4611 = vmatpush1.msra.mxu0 0.0
    %4612 = vmatprep.subr.mxu0 0.0
    %4613 = vmatpush1.msra.mxu0 0.0
    %4614 = vmatprep.subr.mxu0 0.0
    %4615 = vmatpush1.msra.mxu0 0.0
    %4616 = vmatprep.subr.mxu0 0.0
    %4617 = vmatpush1.msra.mxu0 0.0
    %4618 = vmatprep.subr.mxu0 0.0
    %4619 = vmatpush1.msra.mxu0 0.0
    %4620 = vmatprep.subr.mxu0 0.0
    %4621 = vmatpush1.msra.mxu0 0.0
    %4622 = vmatprep.subr.mxu0 0.0
    %4623 = vmatpush1.msra.mxu0 0.0
    %4624 = vmatprep.subr.mxu0 0.0
    %4625 = vmatpush1.msra.mxu0 0.0
    %4626 = vmatprep.subr.mxu0 0.0
    %4627 = vmatpush1.msra.mxu0 0.0
    %4628 = vmatprep.subr.mxu0 0.0
    %4629 = vmatpush1.msra.mxu0 0.0
    %4630 = vmatprep.subr.mxu0 0.0
    %4631 = vmatpush1.msra.mxu0 0.0
    %4632 = vmatprep.subr.mxu0 0.0
    %4633 = vmatpush1.msra.mxu0 0.0
    %4634 = vmatprep.subr.mxu0 0.0
    %4635 = vmatpush1.msra.mxu0 0.0
    %4636 = vmatprep.subr.mxu0 0.0
    %4637 = vmatpush1.msra.mxu0 0.0
    %4638 = vmatprep.subr.mxu0 0.0
    %4639 = vmatpush1.msra.mxu0 0.0
    %4640 = vmatprep.subr.mxu0 0.0
    %4641 = vmatpush1.msra.mxu0 0.0
    %4642 = vmatprep.subr.mxu0 0.0
    %4643 = vmatpush1.msra.mxu0 0.0
    %4644 = vmatprep.subr.mxu0 0.0
    %4645 = vmatpush1.msra.mxu0 0.0
    %4646 = vmatprep.subr.mxu0 0.0
    %4647 = vmatpush1.msra.mxu0 0.0
    %4648 = vmatprep.subr.mxu0 0.0
    %4649 = vmatpush1.msra.mxu0 0.0
    %4650 = vmatprep.subr.mxu0 0.0
    %4651 = vmatpush1.msra.mxu0 0.0
    %4652 = vmatprep.mubr.f32.mxu0 0.0
    %4653 = vmatmul.mubr.f32.gmra.mrb[0].mxu0 %v158
    %v4654 = vpop.f32.mrb[0].mxu0
    %v4655 = vadd.f32 0.0, %v4654
    %v4656 = vpop.f32.mrb[0].mxu0
    %v4657 = vadd.f32 0.0, %v4656
    %4658 = vmatprep.mubr.f32.mxu0 0.0
    %4659 = vmatmul.mubr.f32.gmra.mrb[0].mxu0 %v161
    %v4660 = vpop.f32.mrb[0].mxu0
    %v4661 = vadd.f32 0.0, %v4660
    %v4662 = vpop.f32.mrb[0].mxu0
    %v4663 = vadd.f32 0.0, %v4662
    %4664 = vmatprep.mubr.f32.mxu0 0.0
    %4665 = vmatmul.mubr.f32.gmra.mrb[0].mxu0 %v164
    %v4666 = vpop.f32.mrb[0].mxu0
    %v4667 = vadd.f32 0.0, %v4666
    %v4668 = vpop.f32.mrb[0].mxu0
    %v4669 = vadd.f32 0.0, %v4668
    %4670 = vmatprep.mubr.f32.mxu0 0.0
    %4671 = vmatmul.mubr.f32.gmra.mrb[0].mxu0 %v167
    %v4672 = vpop.f32.mrb[0].mxu0
    %v4673 = vadd.f32 0.0, %v4672
    %v4674 = vpop.f32.mrb[0].mxu0
    %v4675 = vadd.f32 0.0, %v4674
    %4676 = vmatprep.mubr.f32.mxu0 0.0
    %4677 = vmatmul.mubr.f32.gmra.mrb[0].mxu0 %v170
    %v4678 = vpop.f32.mrb[0].mxu0
    %v4679 = vadd.f32 0.0, %v4678
    %v4680 = vpop.f32.mrb[0].mxu0
    %v4681 = vadd.f32 0.0, %v4680
    %4682 = vmatprep.mubr.f32.mxu0 0.0
    %4683 = vmatmul.mubr.f32.gmra.mrb[0].mxu0 %v173
    %v4684 = vpop.f32.mrb[0].mxu0
    %v4685 = vadd.f32 0.0, %v4684
    %v4686 = vpop.f32.mrb[0].mxu0
    %v4687 = vadd.f32 0.0, %v4686
    %4688 = vmatprep.mubr.f32.mxu0 0.0
    %4689 = vmatmul.mubr.f32.gmra.mrb[0].mxu0 %v176
    %v4690 = vpop.f32.mrb[0].mxu0
    %v4691 = vadd.f32 0.0, %v4690
    %v4692 = vpop.f32.mrb[0].mxu0
    %v4693 = vadd.f32 0.0, %v4692
    %4694 = vmatprep.mubr.f32.mxu0 0.0
    %4695 = vmatmul.mubr.f32.gmra.mrb[0].mxu0 %v179
    %v4696 = vpop.f32.mrb[0].mxu0
    %v4697 = vadd.f32 0.0, %v4696
    %v4698 = vpop.f32.mrb[0].mxu0
    %v4699 = vadd.f32 0.0, %v4698
    %4700 = vdwg.mxu0
    %v4701 = vld [vmem:[#allocation2] sm:$0xff]
    %v4702 = vld [vmem:[#allocation2 + $0x8] sm:$0xff]
    %v4703 = vld [vmem:[#allocation2 + $0x10] sm:$0xff]
    %v4704 = vld [vmem:[#allocation2 + $0x18] sm:$0xff]
    %v4705 = vmax.f32 %v248, %v474
    %v4706 = vmax.f32 %v250, %v476
    %v4707 = vmax.f32 %v361, %v587
    %v4708 = vmax.f32 %v363, %v589
    %v4709 = vmax.f32 %v254, %v480
    %v4710 = vmax.f32 %v256, %v482
    %v4711 = vmax.f32 %v367, %v593
    %v4712 = vmax.f32 %v369, %v595
    %v4713 = vmax.f32 %v260, %v486
    %v4714 = vmax.f32 %v262, %v488
    %v4715 = vmax.f32 %v373, %v599
    %v4716 = vmax.f32 %v375, %v601
    %v4717 = vmax.f32 %v266, %v492
    %v4718 = vmax.f32 %v268, %v494
    %v4719 = vmax.f32 %v379, %v605
    %v4720 = vmax.f32 %v381, %v607
    %v4721 = vmax.f32 %v272, %v498
    %v4722 = vmax.f32 %v274, %v500
    %v4723 = vmax.f32 %v385, %v611
    %v4724 = vmax.f32 %v387, %v613
    %v4725 = vmax.f32 %v278, %v504
    %v4726 = vmax.f32 %v280, %v506
    %v4727 = vmax.f32 %v391, %v617
    %v4728 = vmax.f32 %v393, %v619
    %v4729 = vmax.f32 %v284, %v510
    %v4730 = vmax.f32 %v286, %v512
    %v4731 = vmax.f32 %v397, %v623
    %v4732 = vmax.f32 %v399, %v625
    %v4733 = vmax.f32 %v290, %v516
    %v4734 = vmax.f32 %v292, %v518
    %v4735 = vmax.f32 %v403, %v629
    %v4736 = vmax.f32 %v405, %v631
    %v4737 = vld [vmem:[#allocation2 + $0x20] sm:$0xff]
    %v4738 = vld [vmem:[#allocation2 + $0x28] sm:$0xff]
    %v4739 = vld [vmem:[#allocation2 + $0x30] sm:$0xff]
    %v4740 = vld [vmem:[#allocation2 + $0x38] sm:$0xff]
    %v4741 = vadd.f32 %v4701, %v4737
    %v4742 = vadd.f32 %v4702, %v4738
    %v4743 = vadd.f32 %v4703, %v4739
    %v4744 = vadd.f32 %v4704, %v4740
    %v4745 = vmax.f32 %v4705, %v700
    %v4746 = vmax.f32 %v4706, %v702
    %v4747 = vmax.f32 %v4707, %v813
    %v4748 = vmax.f32 %v4708, %v815
    %v4749 = vmax.f32 %v4709, %v706
    %v4750 = vmax.f32 %v4710, %v708
    %v4751 = vmax.f32 %v4711, %v819
    %v4752 = vmax.f32 %v4712, %v821
    %v4753 = vmax.f32 %v4713, %v712
    %v4754 = vmax.f32 %v4714, %v714
    %v4755 = vmax.f32 %v4715, %v825
    %v4756 = vmax.f32 %v4716, %v827
    %v4757 = vmax.f32 %v4717, %v718
    %v4758 = vmax.f32 %v4718, %v720
    %v4759 = vmax.f32 %v4719, %v831
    %v4760 = vmax.f32 %v4720, %v833
    %v4761 = vmax.f32 %v4721, %v724
    %v4762 = vmax.f32 %v4722, %v726
    %v4763 = vmax.f32 %v4723, %v837
    %v4764 = vmax.f32 %v4724, %v839
    %v4765 = vmax.f32 %v4725, %v730
    %v4766 = vmax.f32 %v4726, %v732
    %v4767 = vmax.f32 %v4727, %v843
    %v4768 = vmax.f32 %v4728, %v845
    %v4769 = vmax.f32 %v4729, %v736
    %v4770 = vmax.f32 %v4730, %v738
    %v4771 = vmax.f32 %v4731, %v849
    %v4772 = vmax.f32 %v4732, %v851
    %v4773 = vmax.f32 %v4733, %v742
    %v4774 = vmax.f32 %v4734, %v744
    %v4775 = vmax.f32 %v4735, %v855
    %v4776 = vmax.f32 %v4736, %v857
    %v4777 = vld [vmem:[#allocation2 + $0x40] sm:$0xff]
    %v4778 = vld [vmem:[#allocation2 + $0x48] sm:$0xff]
    %v4779 = vld [vmem:[#allocation2 + $0x50] sm:$0xff]
    %v4780 = vld [vmem:[#allocation2 + $0x58] sm:$0xff]
    %v4781 = vadd.f32 %v4741, %v4777
    %v4782 = vadd.f32 %v4742, %v4778
    %v4783 = vadd.f32 %v4743, %v4779
    %v4784 = vadd.f32 %v4744, %v4780
    %v4785 = vmax.f32 %v4745, %v926
    %v4786 = vmax.f32 %v4746, %v928
    %v4787 = vmax.f32 %v4747, %v1039
    %v4788 = vmax.f32 %v4748, %v1041
    %v4789 = vmax.f32 %v4749, %v932
    %v4790 = vmax.f32 %v4750, %v934
    %v4791 = vmax.f32 %v4751, %v1045
    %v4792 = vmax.f32 %v4752, %v1047
    %v4793 = vmax.f32 %v4753, %v938
    %v4794 = vmax.f32 %v4754, %v940
    %v4795 = vmax.f32 %v4755, %v1051
    %v4796 = vmax.f32 %v4756, %v1053
    %v4797 = vmax.f32 %v4757, %v944
    %v4798 = vmax.f32 %v4758, %v946
    %v4799 = vmax.f32 %v4759, %v1057
    %v4800 = vmax.f32 %v4760, %v1059
    %v4801 = vmax.f32 %v4761, %v950
    %v4802 = vmax.f32 %v4762, %v952
    %v4803 = vmax.f32 %v4763, %v1063
    %v4804 = vmax.f32 %v4764, %v1065
    %v4805 = vmax.f32 %v4765, %v956
    %v4806 = vmax.f32 %v4766, %v958
    %v4807 = vmax.f32 %v4767, %v1069
    %v4808 = vmax.f32 %v4768, %v1071
    %v4809 = vmax.f32 %v4769, %v962
    %v4810 = vmax.f32 %v4770, %v964
    %v4811 = vmax.f32 %v4771, %v1075
    %v4812 = vmax.f32 %v4772, %v1077
    %v4813 = vmax.f32 %v4773, %v968
    %v4814 = vmax.f32 %v4774, %v970
    %v4815 = vmax.f32 %v4775, %v1081
    %v4816 = vmax.f32 %v4776, %v1083
    %v4817 = vld [vmem:[#allocation2 + $0x60] sm:$0xff]
    %v4818 = vld [vmem:[#allocation2 + $0x68] sm:$0xff]
    %v4819 = vld [vmem:[#allocation2 + $0x70] sm:$0xff]
    %v4820 = vld [vmem:[#allocation2 + $0x78] sm:$0xff]
    %v4821 = vadd.f32 %v4781, %v4817
    %v4822 = vadd.f32 %v4782, %v4818
    %v4823 = vadd.f32 %v4783, %v4819
    %v4824 = vadd.f32 %v4784, %v4820
    %v4825 = vmax.f32 %v4785, %v1152
    %v4826 = vmax.f32 %v4786, %v1154
    %v4827 = vmax.f32 %v4787, %v1265
    %v4828 = vmax.f32 %v4788, %v1267
    %v4829 = vmax.f32 %v4789, %v1158
    %v4830 = vmax.f32 %v4790, %v1160
    %v4831 = vmax.f32 %v4791, %v1271
    %v4832 = vmax.f32 %v4792, %v1273
    %v4833 = vmax.f32 %v4793, %v1164
    %v4834 = vmax.f32 %v4794, %v1166
    %v4835 = vmax.f32 %v4795, %v1277
    %v4836 = vmax.f32 %v4796, %v1279
    %v4837 = vmax.f32 %v4797, %v1170
    %v4838 = vmax.f32 %v4798, %v1172
    %v4839 = vmax.f32 %v4799, %v1283
    %v4840 = vmax.f32 %v4800, %v1285
    %v4841 = vmax.f32 %v4801, %v1176
    %v4842 = vmax.f32 %v4802, %v1178
    %v4843 = vmax.f32 %v4803, %v1289
    %v4844 = vmax.f32 %v4804, %v1291
    %v4845 = vmax.f32 %v4805, %v1182
    %v4846 = vmax.f32 %v4806, %v1184
    %v4847 = vmax.f32 %v4807, %v1295
    %v4848 = vmax.f32 %v4808, %v1297
    %v4849 = vmax.f32 %v4809, %v1188
    %v4850 = vmax.f32 %v4810, %v1190
    %v4851 = vmax.f32 %v4811, %v1301
    %v4852 = vmax.f32 %v4812, %v1303
    %v4853 = vmax.f32 %v4813, %v1194
    %v4854 = vmax.f32 %v4814, %v1196
    %v4855 = vmax.f32 %v4815, %v1307
    %v4856 = vmax.f32 %v4816, %v1309
    %v4857 = vld [vmem:[#allocation2 + $0x80] sm:$0xff]
    %v4858 = vld [vmem:[#allocation2 + $0x88] sm:$0xff]
    %v4859 = vld [vmem:[#allocation2 + $0x90] sm:$0xff]
    %v4860 = vld [vmem:[#allocation2 + $0x98] sm:$0xff]
    %v4861 = vadd.f32 %v4821, %v4857
    %v4862 = vadd.f32 %v4822, %v4858
    %v4863 = vadd.f32 %v4823, %v4859
    %v4864 = vadd.f32 %v4824, %v4860
    %v4865 = vmax.f32 %v4825, %v1378
    %v4866 = vmax.f32 %v4826, %v1380
    %v4867 = vmax.f32 %v4827, %v1491
    %v4868 = vmax.f32 %v4828, %v1493
    %v4869 = vmax.f32 %v4829, %v1384
    %v4870 = vmax.f32 %v4830, %v1386
    %v4871 = vmax.f32 %v4831, %v1497
    %v4872 = vmax.f32 %v4832, %v1499
    %v4873 = vmax.f32 %v4833, %v1390
    %v4874 = vmax.f32 %v4834, %v1392
    %v4875 = vmax.f32 %v4835, %v1503
    %v4876 = vmax.f32 %v4836, %v1505
    %v4877 = vmax.f32 %v4837, %v1396
    %v4878 = vmax.f32 %v4838, %v1398
    %v4879 = vmax.f32 %v4839, %v1509
    %v4880 = vmax.f32 %v4840, %v1511
    %v4881 = vmax.f32 %v4841, %v1402
    %v4882 = vmax.f32 %v4842, %v1404
    %v4883 = vmax.f32 %v4843, %v1515
    %v4884 = vmax.f32 %v4844, %v1517
    %v4885 = vmax.f32 %v4845, %v1408
    %v4886 = vmax.f32 %v4846, %v1410
    %v4887 = vmax.f32 %v4847, %v1521
    %v4888 = vmax.f32 %v4848, %v1523
    %v4889 = vmax.f32 %v4849, %v1414
    %v4890 = vmax.f32 %v4850, %v1416
    %v4891 = vmax.f32 %v4851, %v1527
    %v4892 = vmax.f32 %v4852, %v1529
    %v4893 = vmax.f32 %v4853, %v1420
    %v4894 = vmax.f32 %v4854, %v1422
    %v4895 = vmax.f32 %v4855, %v1533
    %v4896 = vmax.f32 %v4856, %v1535
    %v4897 = vld [vmem:[#allocation2 + $0xa0] sm:$0xff]
    %v4898 = vld [vmem:[#allocation2 + $0xa8] sm:$0xff]
    %v4899 = vld [vmem:[#allocation2 + $0xb0] sm:$0xff]
    %v4900 = vld [vmem:[#allocation2 + $0xb8] sm:$0xff]
    %v4901 = vadd.f32 %v4861, %v4897
    %v4902 = vadd.f32 %v4862, %v4898
    %v4903 = vadd.f32 %v4863, %v4899
    %v4904 = vadd.f32 %v4864, %v4900
    %v4905 = vmax.f32 %v4865, %v1604
    %v4906 = vmax.f32 %v4866, %v1606
    %v4907 = vmax.f32 %v4867, %v1717
    %v4908 = vmax.f32 %v4868, %v1719
    %v4909 = vmax.f32 %v4869, %v1610
    %v4910 = vmax.f32 %v4870, %v1612
    %v4911 = vmax.f32 %v4871, %v1723
    %v4912 = vmax.f32 %v4872, %v1725
    %v4913 = vmax.f32 %v4873, %v1616
    %v4914 = vmax.f32 %v4874, %v1618
    %v4915 = vmax.f32 %v4875, %v1729
    %v4916 = vmax.f32 %v4876, %v1731
    %v4917 = vmax.f32 %v4877, %v1622
    %v4918 = vmax.f32 %v4878, %v1624
    %v4919 = vmax.f32 %v4879, %v1735
    %v4920 = vmax.f32 %v4880, %v1737
    %v4921 = vmax.f32 %v4881, %v1628
    %v4922 = vmax.f32 %v4882, %v1630
    %v4923 = vmax.f32 %v4883, %v1741
    %v4924 = vmax.f32 %v4884, %v1743
    %v4925 = vmax.f32 %v4885, %v1634
    %v4926 = vmax.f32 %v4886, %v1636
    %v4927 = vmax.f32 %v4887, %v1747
    %v4928 = vmax.f32 %v4888, %v1749
    %v4929 = vmax.f32 %v4889, %v1640
    %v4930 = vmax.f32 %v4890, %v1642
    %v4931 = vmax.f32 %v4891, %v1753
    %v4932 = vmax.f32 %v4892, %v1755
    %v4933 = vmax.f32 %v4893, %v1646
    %v4934 = vmax.f32 %v4894, %v1648
    %v4935 = vmax.f32 %v4895, %v1759
    %v4936 = vmax.f32 %v4896, %v1761
    %v4937 = vld [vmem:[#allocation2 + $0xc0] sm:$0xff]
    %v4938 = vld [vmem:[#allocation2 + $0xc8] sm:$0xff]
    %v4939 = vld [vmem:[#allocation2 + $0xd0] sm:$0xff]
    %v4940 = vld [vmem:[#allocation2 + $0xd8] sm:$0xff]
    %v4941 = vadd.f32 %v4901, %v4937
    %v4942 = vadd.f32 %v4902, %v4938
    %v4943 = vadd.f32 %v4903, %v4939
    %v4944 = vadd.f32 %v4904, %v4940
    %v4945 = vmax.f32 %v4905, %v1830
    %v4946 = vmax.f32 %v4906, %v1832
    %v4947 = vmax.f32 %v4907, %v1943
    %v4948 = vmax.f32 %v4908, %v1945
    %v4949 = vmax.f32 %v4909, %v1836
    %v4950 = vmax.f32 %v4910, %v1838
    %v4951 = vmax.f32 %v4911, %v1949
    %v4952 = vmax.f32 %v4912, %v1951
    %v4953 = vmax.f32 %v4913, %v1842
    %v4954 = vmax.f32 %v4914, %v1844
    %v4955 = vmax.f32 %v4915, %v1955
    %v4956 = vmax.f32 %v4916, %v1957
    %v4957 = vmax.f32 %v4917, %v1848
    %v4958 = vmax.f32 %v4918, %v1850
    %v4959 = vmax.f32 %v4919, %v1961
    %v4960 = vmax.f32 %v4920, %v1963
    %v4961 = vmax.f32 %v4921, %v1854
    %v4962 = vmax.f32 %v4922, %v1856
    %v4963 = vmax.f32 %v4923, %v1967
    %v4964 = vmax.f32 %v4924, %v1969
    %v4965 = vmax.f32 %v4925, %v1860
    %v4966 = vmax.f32 %v4926, %v1862
    %v4967 = vmax.f32 %v4927, %v1973
    %v4968 = vmax.f32 %v4928, %v1975
    %v4969 = vmax.f32 %v4929, %v1866
    %v4970 = vmax.f32 %v4930, %v1868
    %v4971 = vmax.f32 %v4931, %v1979
    %v4972 = vmax.f32 %v4932, %v1981
    %v4973 = vmax.f32 %v4933, %v1872
    %v4974 = vmax.f32 %v4934, %v1874
    %v4975 = vmax.f32 %v4935, %v1985
    %v4976 = vmax.f32 %v4936, %v1987
    %v4977 = vld [vmem:[#allocation2 + $0xe0] sm:$0xff]
    %v4978 = vld [vmem:[#allocation2 + $0xe8] sm:$0xff]
    %v4979 = vld [vmem:[#allocation2 + $0xf0] sm:$0xff]
    %v4980 = vld [vmem:[#allocation2 + $0xf8] sm:$0xff]
    %v4981 = vadd.f32 %v4941, %v4977
    %v4982 = vadd.f32 %v4942, %v4978
    %v4983 = vadd.f32 %v4943, %v4979
    %v4984 = vadd.f32 %v4944, %v4980
    %v4985 = vmax.f32 %v4945, %v2056
    %v4986 = vmax.f32 %v4946, %v2058
    %v4987 = vmax.f32 %v4947, %v2169
    %v4988 = vmax.f32 %v4948, %v2171
    %v4989 = vmax.f32 %v4949, %v2062
    %v4990 = vmax.f32 %v4950, %v2064
    %v4991 = vmax.f32 %v4951, %v2175
    %v4992 = vmax.f32 %v4952, %v2177
    %v4993 = vmax.f32 %v4953, %v2068
    %v4994 = vmax.f32 %v4954, %v2070
    %v4995 = vmax.f32 %v4955, %v2181
    %v4996 = vmax.f32 %v4956, %v2183
    %v4997 = vmax.f32 %v4957, %v2074
    %v4998 = vmax.f32 %v4958, %v2076
    %v4999 = vmax.f32 %v4959, %v2187
    %v5000 = vmax.f32 %v4960, %v2189
    %v5001 = vmax.f32 %v4961, %v2080
    %v5002 = vmax.f32 %v4962, %v2082
    %v5003 = vmax.f32 %v4963, %v2193
    %v5004 = vmax.f32 %v4964, %v2195
    %v5005 = vmax.f32 %v4965, %v2086
    %v5006 = vmax.f32 %v4966, %v2088
    %v5007 = vmax.f32 %v4967, %v2199
    %v5008 = vmax.f32 %v4968, %v2201
    %v5009 = vmax.f32 %v4969, %v2092
    %v5010 = vmax.f32 %v4970, %v2094
    %v5011 = vmax.f32 %v4971, %v2205
    %v5012 = vmax.f32 %v4972, %v2207
    %v5013 = vmax.f32 %v4973, %v2098
    %v5014 = vmax.f32 %v4974, %v2100
    %v5015 = vmax.f32 %v4975, %v2211
    %v5016 = vmax.f32 %v4976, %v2213
    %v5017 = vld [vmem:[#allocation2 + $0x100] sm:$0xff]
    %v5018 = vld [vmem:[#allocation2 + $0x108] sm:$0xff]
    %v5019 = vld [vmem:[#allocation2 + $0x110] sm:$0xff]
    %v5020 = vld [vmem:[#allocation2 + $0x118] sm:$0xff]
    %v5021 = vadd.f32 %v4981, %v5017
    %v5022 = vadd.f32 %v4982, %v5018
    %v5023 = vadd.f32 %v4983, %v5019
    %v5024 = vadd.f32 %v4984, %v5020
    %v5025 = vmax.f32 %v4985, %v2282
    %v5026 = vmax.f32 %v4986, %v2284
    %v5027 = vmax.f32 %v4987, %v2395
    %v5028 = vmax.f32 %v4988, %v2397
    %v5029 = vmax.f32 %v4989, %v2288
    %v5030 = vmax.f32 %v4990, %v2290
    %v5031 = vmax.f32 %v4991, %v2401
    %v5032 = vmax.f32 %v4992, %v2403
    %v5033 = vmax.f32 %v4993, %v2294
    %v5034 = vmax.f32 %v4994, %v2296
    %v5035 = vmax.f32 %v4995, %v2407
    %v5036 = vmax.f32 %v4996, %v2409
    %v5037 = vmax.f32 %v4997, %v2300
    %v5038 = vmax.f32 %v4998, %v2302
    %v5039 = vmax.f32 %v4999, %v2413
    %v5040 = vmax.f32 %v5000, %v2415
    %v5041 = vmax.f32 %v5001, %v2306
    %v5042 = vmax.f32 %v5002, %v2308
    %v5043 = vmax.f32 %v5003, %v2419
    %v5044 = vmax.f32 %v5004, %v2421
    %v5045 = vmax.f32 %v5005, %v2312
    %v5046 = vmax.f32 %v5006, %v2314
    %v5047 = vmax.f32 %v5007, %v2425
    %v5048 = vmax.f32 %v5008, %v2427
    %v5049 = vmax.f32 %v5009, %v2318
    %v5050 = vmax.f32 %v5010, %v2320
    %v5051 = vmax.f32 %v5011, %v2431
    %v5052 = vmax.f32 %v5012, %v2433
    %v5053 = vmax.f32 %v5013, %v2324
    %v5054 = vmax.f32 %v5014, %v2326
    %v5055 = vmax.f32 %v5015, %v2437
    %v5056 = vmax.f32 %v5016, %v2439
    %v5057 = vld [vmem:[#allocation2 + $0x120] sm:$0xff]
    %v5058 = vld [vmem:[#allocation2 + $0x128] sm:$0xff]
    %v5059 = vld [vmem:[#allocation2 + $0x130] sm:$0xff]
    %v5060 = vld [vmem:[#allocation2 + $0x138] sm:$0xff]
    %v5061 = vadd.f32 %v5021, %v5057
    %v5062 = vadd.f32 %v5022, %v5058
    %v5063 = vadd.f32 %v5023, %v5059
    %v5064 = vadd.f32 %v5024, %v5060
    %v5065 = vmax.f32 %v5025, %v2508
    %v5066 = vmax.f32 %v5026, %v2510
    %v5067 = vmax.f32 %v5027, %v2621
    %v5068 = vmax.f32 %v5028, %v2623
    %v5069 = vmax.f32 %v5029, %v2514
    %v5070 = vmax.f32 %v5030, %v2516
    %v5071 = vmax.f32 %v5031, %v2627
    %v5072 = vmax.f32 %v5032, %v2629
    %v5073 = vmax.f32 %v5033, %v2520
    %v5074 = vmax.f32 %v5034, %v2522
    %v5075 = vmax.f32 %v5035, %v2633
    %v5076 = vmax.f32 %v5036, %v2635
    %v5077 = vmax.f32 %v5037, %v2526
    %v5078 = vmax.f32 %v5038, %v2528
    %v5079 = vmax.f32 %v5039, %v2639
    %v5080 = vmax.f32 %v5040, %v2641
    %v5081 = vmax.f32 %v5041, %v2532
    %v5082 = vmax.f32 %v5042, %v2534
    %v5083 = vmax.f32 %v5043, %v2645
    %v5084 = vmax.f32 %v5044, %v2647
    %v5085 = vmax.f32 %v5045, %v2538
    %v5086 = vmax.f32 %v5046, %v2540
    %v5087 = vmax.f32 %v5047, %v2651
    %v5088 = vmax.f32 %v5048, %v2653
    %v5089 = vmax.f32 %v5049, %v2544
    %v5090 = vmax.f32 %v5050, %v2546
    %v5091 = vmax.f32 %v5051, %v2657
    %v5092 = vmax.f32 %v5052, %v2659
    %v5093 = vmax.f32 %v5053, %v2550
    %v5094 = vmax.f32 %v5054, %v2552
    %v5095 = vmax.f32 %v5055, %v2663
    %v5096 = vmax.f32 %v5056, %v2665
    %v5097 = vld [vmem:[#allocation2 + $0x140] sm:$0xff]
    %v5098 = vld [vmem:[#allocation2 + $0x148] sm:$0xff]
    %v5099 = vld [vmem:[#allocation2 + $0x150] sm:$0xff]
    %v5100 = vld [vmem:[#allocation2 + $0x158] sm:$0xff]
    %v5101 = vadd.f32 %v5061, %v5097
    %v5102 = vadd.f32 %v5062, %v5098
    %v5103 = vadd.f32 %v5063, %v5099
    %v5104 = vadd.f32 %v5064, %v5100
    %v5105 = vmax.f32 %v5065, %v2734
    %v5106 = vmax.f32 %v5066, %v2736
    %v5107 = vmax.f32 %v5067, %v2847
    %v5108 = vmax.f32 %v5068, %v2849
    %v5109 = vmax.f32 %v5069, %v2740
    %v5110 = vmax.f32 %v5070, %v2742
    %v5111 = vmax.f32 %v5071, %v2853
    %v5112 = vmax.f32 %v5072, %v2855
    %v5113 = vmax.f32 %v5073, %v2746
    %v5114 = vmax.f32 %v5074, %v2748
    %v5115 = vmax.f32 %v5075, %v2859
    %v5116 = vmax.f32 %v5076, %v2861
    %v5117 = vmax.f32 %v5077, %v2752
    %v5118 = vmax.f32 %v5078, %v2754
    %v5119 = vmax.f32 %v5079, %v2865
    %v5120 = vmax.f32 %v5080, %v2867
    %v5121 = vmax.f32 %v5081, %v2758
    %v5122 = vmax.f32 %v5082, %v2760
    %v5123 = vmax.f32 %v5083, %v2871
    %v5124 = vmax.f32 %v5084, %v2873
    %v5125 = vmax.f32 %v5085, %v2764
    %v5126 = vmax.f32 %v5086, %v2766
    %v5127 = vmax.f32 %v5087, %v2877
    %v5128 = vmax.f32 %v5088, %v2879
    %v5129 = vmax.f32 %v5089, %v2770
    %v5130 = vmax.f32 %v5090, %v2772
    %v5131 = vmax.f32 %v5091, %v2883
    %v5132 = vmax.f32 %v5092, %v2885
    %v5133 = vmax.f32 %v5093, %v2776
    %v5134 = vmax.f32 %v5094, %v2778
    %v5135 = vmax.f32 %v5095, %v2889
    %v5136 = vmax.f32 %v5096, %v2891
    %v5137 = vld [vmem:[#allocation2 + $0x160] sm:$0xff]
    %v5138 = vld [vmem:[#allocation2 + $0x168] sm:$0xff]
    %v5139 = vld [vmem:[#allocation2 + $0x170] sm:$0xff]
    %v5140 = vld [vmem:[#allocation2 + $0x178] sm:$0xff]
    %v5141 = vadd.f32 %v5101, %v5137
    %v5142 = vadd.f32 %v5102, %v5138
    %v5143 = vadd.f32 %v5103, %v5139
    %v5144 = vadd.f32 %v5104, %v5140
    %v5145 = vmax.f32 %v5105, %v2960
    %v5146 = vmax.f32 %v5106, %v2962
    %v5147 = vmax.f32 %v5107, %v3073
    %v5148 = vmax.f32 %v5108, %v3075
    %v5149 = vmax.f32 %v5109, %v2966
    %v5150 = vmax.f32 %v5110, %v2968
    %v5151 = vmax.f32 %v5111, %v3079
    %v5152 = vmax.f32 %v5112, %v3081
    %v5153 = vmax.f32 %v5113, %v2972
    %v5154 = vmax.f32 %v5114, %v2974
    %v5155 = vmax.f32 %v5115, %v3085
    %v5156 = vmax.f32 %v5116, %v3087
    %v5157 = vmax.f32 %v5117, %v2978
    %v5158 = vmax.f32 %v5118, %v2980
    %v5159 = vmax.f32 %v5119, %v3091
    %v5160 = vmax.f32 %v5120, %v3093
    %v5161 = vmax.f32 %v5121, %v2984
    %v5162 = vmax.f32 %v5122, %v2986
    %v5163 = vmax.f32 %v5123, %v3097
    %v5164 = vmax.f32 %v5124, %v3099
    %v5165 = vmax.f32 %v5125, %v2990
    %v5166 = vmax.f32 %v5126, %v2992
    %v5167 = vmax.f32 %v5127, %v3103
    %v5168 = vmax.f32 %v5128, %v3105
    %v5169 = vmax.f32 %v5129, %v2996
    %v5170 = vmax.f32 %v5130, %v2998
    %v5171 = vmax.f32 %v5131, %v3109
    %v5172 = vmax.f32 %v5132, %v3111
    %v5173 = vmax.f32 %v5133, %v3002
    %v5174 = vmax.f32 %v5134, %v3004
    %v5175 = vmax.f32 %v5135, %v3115
    %v5176 = vmax.f32 %v5136, %v3117
    %v5177 = vld [vmem:[#allocation2 + $0x180] sm:$0xff]
    %v5178 = vld [vmem:[#allocation2 + $0x188] sm:$0xff]
    %v5179 = vld [vmem:[#allocation2 + $0x190] sm:$0xff]
    %v5180 = vld [vmem:[#allocation2 + $0x198] sm:$0xff]
    %v5181 = vadd.f32 %v5141, %v5177
    %v5182 = vadd.f32 %v5142, %v5178
    %v5183 = vadd.f32 %v5143, %v5179
    %v5184 = vadd.f32 %v5144, %v5180
    %v5185 = vmax.f32 %v5145, %v3186
    %v5186 = vmax.f32 %v5146, %v3188
    %v5187 = vmax.f32 %v5147, %v3299
    %v5188 = vmax.f32 %v5148, %v3301
    %v5189 = vmax.f32 %v5149, %v3192
    %v5190 = vmax.f32 %v5150, %v3194
    %v5191 = vmax.f32 %v5151, %v3305
    %v5192 = vmax.f32 %v5152, %v3307
    %v5193 = vmax.f32 %v5153, %v3198
    %v5194 = vmax.f32 %v5154, %v3200
    %v5195 = vmax.f32 %v5155, %v3311
    %v5196 = vmax.f32 %v5156, %v3313
    %v5197 = vmax.f32 %v5157, %v3204
    %v5198 = vmax.f32 %v5158, %v3206
    %v5199 = vmax.f32 %v5159, %v3317
    %v5200 = vmax.f32 %v5160, %v3319
    %v5201 = vmax.f32 %v5161, %v3210
    %v5202 = vmax.f32 %v5162, %v3212
    %v5203 = vmax.f32 %v5163, %v3323
    %v5204 = vmax.f32 %v5164, %v3325
    %v5205 = vmax.f32 %v5165, %v3216
    %v5206 = vmax.f32 %v5166, %v3218
    %v5207 = vmax.f32 %v5167, %v3329
    %v5208 = vmax.f32 %v5168, %v3331
    %v5209 = vmax.f32 %v5169, %v3222
    %v5210 = vmax.f32 %v5170, %v3224
    %v5211 = vmax.f32 %v5171, %v3335
    %v5212 = vmax.f32 %v5172, %v3337
    %v5213 = vmax.f32 %v5173, %v3228
    %v5214 = vmax.f32 %v5174, %v3230
    %v5215 = vmax.f32 %v5175, %v3341
    %v5216 = vmax.f32 %v5176, %v3343
    %v5217 = vld [vmem:[#allocation2 + $0x1a0] sm:$0xff]
    %v5218 = vld [vmem:[#allocation2 + $0x1a8] sm:$0xff]
    %v5219 = vld [vmem:[#allocation2 + $0x1b0] sm:$0xff]
    %v5220 = vld [vmem:[#allocation2 + $0x1b8] sm:$0xff]
    %v5221 = vadd.f32 %v5181, %v5217
    %v5222 = vadd.f32 %v5182, %v5218
    %v5223 = vadd.f32 %v5183, %v5219
    %v5224 = vadd.f32 %v5184, %v5220
    %v5225 = vmax.f32 %v5185, %v3412
    %v5226 = vmax.f32 %v5186, %v3414
    %v5227 = vmax.f32 %v5187, %v3525
    %v5228 = vmax.f32 %v5188, %v3527
    %v5229 = vmax.f32 %v5189, %v3418
    %v5230 = vmax.f32 %v5190, %v3420
    %v5231 = vmax.f32 %v5191, %v3531
    %v5232 = vmax.f32 %v5192, %v3533
    %v5233 = vmax.f32 %v5193, %v3424
    %v5234 = vmax.f32 %v5194, %v3426
    %v5235 = vmax.f32 %v5195, %v3537
    %v5236 = vmax.f32 %v5196, %v3539
    %v5237 = vmax.f32 %v5197, %v3430
    %v5238 = vmax.f32 %v5198, %v3432
    %v5239 = vmax.f32 %v5199, %v3543
    %v5240 = vmax.f32 %v5200, %v3545
    %v5241 = vmax.f32 %v5201, %v3436
    %v5242 = vmax.f32 %v5202, %v3438
    %v5243 = vmax.f32 %v5203, %v3549
    %v5244 = vmax.f32 %v5204, %v3551
    %v5245 = vmax.f32 %v5205, %v3442
    %v5246 = vmax.f32 %v5206, %v3444
    %v5247 = vmax.f32 %v5207, %v3555
    %v5248 = vmax.f32 %v5208, %v3557
    %v5249 = vmax.f32 %v5209, %v3448
    %v5250 = vmax.f32 %v5210, %v3450
    %v5251 = vmax.f32 %v5211, %v3561
    %v5252 = vmax.f32 %v5212, %v3563
    %v5253 = vmax.f32 %v5213, %v3454
    %v5254 = vmax.f32 %v5214, %v3456
    %v5255 = vmax.f32 %v5215, %v3567
    %v5256 = vmax.f32 %v5216, %v3569
    %v5257 = vld [vmem:[#allocation2 + $0x1c0] sm:$0xff]
    %v5258 = vld [vmem:[#allocation2 + $0x1c8] sm:$0xff]
    %v5259 = vld [vmem:[#allocation2 + $0x1d0] sm:$0xff]
    %v5260 = vld [vmem:[#allocation2 + $0x1d8] sm:$0xff]
    %v5261 = vadd.f32 %v5221, %v5257
    %v5262 = vadd.f32 %v5222, %v5258
    %v5263 = vadd.f32 %v5223, %v5259
    %v5264 = vadd.f32 %v5224, %v5260
    %v5265 = vmax.f32 %v5225, %v3638
    %v5266 = vmax.f32 %v5226, %v3640
    %v5267 = vmax.f32 %v5227, %v3751
    %v5268 = vmax.f32 %v5228, %v3753
    %v5269 = vmax.f32 %v5229, %v3644
    %v5270 = vmax.f32 %v5230, %v3646
    %v5271 = vmax.f32 %v5231, %v3757
    %v5272 = vmax.f32 %v5232, %v3759
    %v5273 = vmax.f32 %v5233, %v3650
    %v5274 = vmax.f32 %v5234, %v3652
    %v5275 = vmax.f32 %v5235, %v3763
    %v5276 = vmax.f32 %v5236, %v3765
    %v5277 = vmax.f32 %v5237, %v3656
    %v5278 = vmax.f32 %v5238, %v3658
    %v5279 = vmax.f32 %v5239, %v3769
    %v5280 = vmax.f32 %v5240, %v3771
    %v5281 = vmax.f32 %v5241, %v3662
    %v5282 = vmax.f32 %v5242, %v3664
    %v5283 = vmax.f32 %v5243, %v3775
    %v5284 = vmax.f32 %v5244, %v3777
    %v5285 = vmax.f32 %v5245, %v3668
    %v5286 = vmax.f32 %v5246, %v3670
    %v5287 = vmax.f32 %v5247, %v3781
    %v5288 = vmax.f32 %v5248, %v3783
    %v5289 = vmax.f32 %v5249, %v3674
    %v5290 = vmax.f32 %v5250, %v3676
    %v5291 = vmax.f32 %v5251, %v3787
    %v5292 = vmax.f32 %v5252, %v3789
    %v5293 = vmax.f32 %v5253, %v3680
    %v5294 = vmax.f32 %v5254, %v3682
    %v5295 = vmax.f32 %v5255, %v3793
    %v5296 = vmax.f32 %v5256, %v3795
    %v5297 = vld [vmem:[#allocation2 + $0x1e0] sm:$0xff]
    %v5298 = vld [vmem:[#allocation2 + $0x1e8] sm:$0xff]
    %v5299 = vld [vmem:[#allocation2 + $0x1f0] sm:$0xff]
    %v5300 = vld [vmem:[#allocation2 + $0x1f8] sm:$0xff]
    %v5301 = vadd.f32 %v5261, %v5297
    %v5302 = vadd.f32 %v5262, %v5298
    %v5303 = vadd.f32 %v5263, %v5299
    %v5304 = vadd.f32 %v5264, %v5300
    %v5305 = vmax.f32 %v5265, %v3864
    %v5306 = vmax.f32 %v5266, %v3866
    %v5307 = vmax.f32 %v5267, %v3977
    %v5308 = vmax.f32 %v5268, %v3979
    %v5309 = vmax.f32 %v5269, %v3870
    %v5310 = vmax.f32 %v5270, %v3872
    %v5311 = vmax.f32 %v5271, %v3983
    %v5312 = vmax.f32 %v5272, %v3985
    %v5313 = vmax.f32 %v5273, %v3876
    %v5314 = vmax.f32 %v5274, %v3878
    %v5315 = vmax.f32 %v5275, %v3989
    %v5316 = vmax.f32 %v5276, %v3991
    %v5317 = vmax.f32 %v5277, %v3882
    %v5318 = vmax.f32 %v5278, %v3884
    %v5319 = vmax.f32 %v5279, %v3995
    %v5320 = vmax.f32 %v5280, %v3997
    %v5321 = vmax.f32 %v5281, %v3888
    %v5322 = vmax.f32 %v5282, %v3890
    %v5323 = vmax.f32 %v5283, %v4001
    %v5324 = vmax.f32 %v5284, %v4003
    %v5325 = vmax.f32 %v5285, %v3894
    %v5326 = vmax.f32 %v5286, %v3896
    %v5327 = vmax.f32 %v5287, %v4007
    %v5328 = vmax.f32 %v5288, %v4009
    %v5329 = vmax.f32 %v5289, %v3900
    %v5330 = vmax.f32 %v5290, %v3902
    %v5331 = vmax.f32 %v5291, %v4013
    %v5332 = vmax.f32 %v5292, %v4015
    %v5333 = vmax.f32 %v5293, %v3906
    %v5334 = vmax.f32 %v5294, %v3908
    %v5335 = vmax.f32 %v5295, %v4019
    %v5336 = vmax.f32 %v5296, %v4021
    %v5337 = vld [vmem:[#allocation2 + $0x200] sm:$0xff]
    %v5338 = vld [vmem:[#allocation2 + $0x208] sm:$0xff]
    %v5339 = vld [vmem:[#allocation2 + $0x210] sm:$0xff]
    %v5340 = vld [vmem:[#allocation2 + $0x218] sm:$0xff]
    %v5341 = vadd.f32 %v5301, %v5337
    %v5342 = vadd.f32 %v5302, %v5338
    %v5343 = vadd.f32 %v5303, %v5339
    %v5344 = vadd.f32 %v5304, %v5340
    %v5345 = vmax.f32 %v5305, %v4090
    %v5346 = vmax.f32 %v5306, %v4092
    %v5347 = vmax.f32 %v5307, %v4203
    %v5348 = vmax.f32 %v5308, %v4205
    %v5349 = vmax.f32 %v5309, %v4096
    %v5350 = vmax.f32 %v5310, %v4098
    %v5351 = vmax.f32 %v5311, %v4209
    %v5352 = vmax.f32 %v5312, %v4211
    %v5353 = vmax.f32 %v5313, %v4102
    %v5354 = vmax.f32 %v5314, %v4104
    %v5355 = vmax.f32 %v5315, %v4215
    %v5356 = vmax.f32 %v5316, %v4217
    %v5357 = vmax.f32 %v5317, %v4108
    %v5358 = vmax.f32 %v5318, %v4110
    %v5359 = vmax.f32 %v5319, %v4221
    %v5360 = vmax.f32 %v5320, %v4223
    %v5361 = vmax.f32 %v5321, %v4114
    %v5362 = vmax.f32 %v5322, %v4116
    %v5363 = vmax.f32 %v5323, %v4227
    %v5364 = vmax.f32 %v5324, %v4229
    %v5365 = vmax.f32 %v5325, %v4120
    %v5366 = vmax.f32 %v5326, %v4122
    %v5367 = vmax.f32 %v5327, %v4233
    %v5368 = vmax.f32 %v5328, %v4235
    %v5369 = vmax.f32 %v5329, %v4126
    %v5370 = vmax.f32 %v5330, %v4128
    %v5371 = vmax.f32 %v5331, %v4239
    %v5372 = vmax.f32 %v5332, %v4241
    %v5373 = vmax.f32 %v5333, %v4132
    %v5374 = vmax.f32 %v5334, %v4134
    %v5375 = vmax.f32 %v5335, %v4245
    %v5376 = vmax.f32 %v5336, %v4247
    %v5377 = vld [vmem:[#allocation2 + $0x220] sm:$0xff]
    %v5378 = vld [vmem:[#allocation2 + $0x228] sm:$0xff]
    %v5379 = vld [vmem:[#allocation2 + $0x230] sm:$0xff]
    %v5380 = vld [vmem:[#allocation2 + $0x238] sm:$0xff]
    %v5381 = vadd.f32 %v5341, %v5377
    %v5382 = vadd.f32 %v5342, %v5378
    %v5383 = vadd.f32 %v5343, %v5379
    %v5384 = vadd.f32 %v5344, %v5380
    %v5385 = vmax.f32 %v5345, %v4316
    %v5386 = vmax.f32 %v5346, %v4318
    %v5387 = vmax.f32 %v5347, %v4429
    %v5388 = vmax.f32 %v5348, %v4431
    %v5389 = vmax.f32 %v5349, %v4322
    %v5390 = vmax.f32 %v5350, %v4324
    %v5391 = vmax.f32 %v5351, %v4435
    %v5392 = vmax.f32 %v5352, %v4437
    %v5393 = vmax.f32 %v5353, %v4328
    %v5394 = vmax.f32 %v5354, %v4330
    %v5395 = vmax.f32 %v5355, %v4441
    %v5396 = vmax.f32 %v5356, %v4443
    %v5397 = vmax.f32 %v5357, %v4334
    %v5398 = vmax.f32 %v5358, %v4336
    %v5399 = vmax.f32 %v5359, %v4447
    %v5400 = vmax.f32 %v5360, %v4449
    %v5401 = vmax.f32 %v5361, %v4340
    %v5402 = vmax.f32 %v5362, %v4342
    %v5403 = vmax.f32 %v5363, %v4453
    %v5404 = vmax.f32 %v5364, %v4455
    %v5405 = vmax.f32 %v5365, %v4346
    %v5406 = vmax.f32 %v5366, %v4348
    %v5407 = vmax.f32 %v5367, %v4459
    %v5408 = vmax.f32 %v5368, %v4461
    %v5409 = vmax.f32 %v5369, %v4352
    %v5410 = vmax.f32 %v5370, %v4354
    %v5411 = vmax.f32 %v5371, %v4465
    %v5412 = vmax.f32 %v5372, %v4467
    %v5413 = vmax.f32 %v5373, %v4358
    %v5414 = vmax.f32 %v5374, %v4360
    %v5415 = vmax.f32 %v5375, %v4471
    %v5416 = vmax.f32 %v5376, %v4473
    %v5417 = vld [vmem:[#allocation2 + $0x240] sm:$0xff]
    %v5418 = vld [vmem:[#allocation2 + $0x248] sm:$0xff]
    %v5419 = vld [vmem:[#allocation2 + $0x250] sm:$0xff]
    %v5420 = vld [vmem:[#allocation2 + $0x258] sm:$0xff]
    %v5421 = vadd.f32 %v5381, %v5417
    %v5422 = vadd.f32 %v5382, %v5418
    %v5423 = vadd.f32 %v5383, %v5419
    %v5424 = vadd.f32 %v5384, %v5420
    %v5425 = vmax.f32 %v5385, %v4542
    %v5426 = vmax.f32 %v5386, %v4544
    %v5427 = vmax.f32 %v5387, %v4655
    %v5428 = vmax.f32 %v5388, %v4657
    %v5429 = vmax.f32 %v5389, %v4548
    %v5430 = vmax.f32 %v5390, %v4550
    %v5431 = vmax.f32 %v5391, %v4661
    %v5432 = vmax.f32 %v5392, %v4663
    %v5433 = vmax.f32 %v5393, %v4554
    %v5434 = vmax.f32 %v5394, %v4556
    %v5435 = vmax.f32 %v5395, %v4667
    %v5436 = vmax.f32 %v5396, %v4669
    %v5437 = vmax.f32 %v5397, %v4560
    %v5438 = vmax.f32 %v5398, %v4562
    %v5439 = vmax.f32 %v5399, %v4673
    %v5440 = vmax.f32 %v5400, %v4675
    %v5441 = vmax.f32 %v5401, %v4566
    %v5442 = vmax.f32 %v5402, %v4568
    %v5443 = vmax.f32 %v5403, %v4679
    %v5444 = vmax.f32 %v5404, %v4681
    %v5445 = vmax.f32 %v5405, %v4572
    %v5446 = vmax.f32 %v5406, %v4574
    %v5447 = vmax.f32 %v5407, %v4685
    %v5448 = vmax.f32 %v5408, %v4687
    %v5449 = vmax.f32 %v5409, %v4578
    %v5450 = vmax.f32 %v5410, %v4580
    %v5451 = vmax.f32 %v5411, %v4691
    %v5452 = vmax.f32 %v5412, %v4693
    %v5453 = vmax.f32 %v5413, %v4584
    %v5454 = vmax.f32 %v5414, %v4586
    %v5455 = vmax.f32 %v5415, %v4697
    %v5456 = vmax.f32 %v5416, %v4699
    %v5457 = vadd.f32 %v5421, %v152
    %v5458 = vadd.f32 %v5422, %v153
    %v5459 = vadd.f32 %v5423, %v154
    %v5460 = vadd.f32 %v5424, %v155
    %v5461 = vld [vmem:[#allocation5] sm:$0xff]
    %v5462 = vld [vmem:[#allocation5 + $0x8] sm:$0xff]
    %v5463 = vld [vmem:[#allocation5 + $0x10] sm:$0xff]
    %v5464 = vld [vmem:[#allocation5 + $0x18] sm:$0xff]
    %v5465 = vmax.f32 %v5461, 1.0
    %v5466 = vmax.f32 %v5462, 1.0
    %v5467 = vmax.f32 %v5463, 1.0
    %v5468 = vmax.f32 %v5464, 1.0
    %v5469 = vrcp.pop %v5465
    %v5470 = vrcp.pop %v5466
    %v5471 = vrcp.pop %v5467
    %v5472 = vrcp.pop %v5468
    %v5473 = vlaneseq
    %v5474 = vshrl.u32 %v5473, 7
    %v5475 = vsub.s32 3, %v5474
    %v5476 = vrot.slane %v5469, %v5475
    %v5477 = vlaneseq
    %v5478 = vshrl.u32 %v5477, 7
    %v5479 = vsub.s32 3, %v5478
    %v5480 = vrot.slane %v5470, %v5479
    %v5481 = vlaneseq
    %v5482 = vshrl.u32 %v5481, 7
    %v5483 = vsub.s32 3, %v5482
    %v5484 = vrot.slane %v5471, %v5483
    %v5485 = vlaneseq
    %v5486 = vshrl.u32 %v5485, 7
    %v5487 = vsub.s32 3, %v5486
    %v5488 = vrot.slane %v5472, %v5487
    %v5489 = vmul.f32 %v5457, %v5476
    %v5490 = vmul.f32 %v5458, %v5480
    %v5491 = vmul.f32 %v5459, %v5484
    %v5492 = vmul.f32 %v5460, %v5488
    %vm5493 = vcmask 130048
    %v5495 = vsel %vm5493, %v60, 0
    %v5498 = vsel %vm5493, %v61, 0
    %v5501 = vsel %vm5493, %v62, 0
    %v5504 = vsel %vm5493, %v63, 0
    %v5507 = vsel %vm5493, %v64, 0
    %v5510 = vsel %vm5493, %v65, 0
    %v5513 = vsel %vm5493, %v66, 0
    %v5516 = vsel %vm5493, %v67, 0
    %5518 = vmatprep.subr.mxu0 %v5462
    %5519 = vmatpush1.msra.mxu0 %v5461
    %5520 = vmatprep.subr.mxu0 %v5490
    %5521 = vmatpush1.msra.mxu0 %v5489
    %5522 = vmatprep.subr.mxu0 0.0
    %5523 = vmatpush1.msra.mxu0 0.0
    %5524 = vmatprep.subr.mxu0 0.0
    %5525 = vmatpush1.msra.mxu0 0.0
    %5526 = vmatprep.subr.mxu0 0.0
    %5527 = vmatpush1.msra.mxu0 0.0
    %5528 = vmatprep.subr.mxu0 0.0
    %5529 = vmatpush1.msra.mxu0 0.0
    %5530 = vmatprep.subr.mxu0 0.0
    %5531 = vmatpush1.msra.mxu0 0.0
    %5532 = vmatprep.subr.mxu0 0.0
    %5533 = vmatpush1.msra.mxu0 0.0
    %5534 = vmatprep.subr.mxu0 0.0
    %5535 = vmatpush1.msra.mxu0 0.0
    %5536 = vmatprep.subr.mxu0 0.0
    %5537 = vmatpush1.msra.mxu0 0.0
    %5538 = vmatprep.subr.mxu0 0.0
    %5539 = vmatpush1.msra.mxu0 0.0
    %5540 = vmatprep.subr.mxu0 0.0
    %5541 = vmatpush1.msra.mxu0 0.0
    %5542 = vmatprep.subr.mxu0 0.0
    %5543 = vmatpush1.msra.mxu0 0.0
    %5544 = vmatprep.subr.mxu0 0.0
    %5545 = vmatpush1.msra.mxu0 0.0
    %5546 = vmatprep.subr.mxu0 0.0
    %5547 = vmatpush1.msra.mxu0 0.0
    %5548 = vmatprep.subr.mxu0 0.0
    %5549 = vmatpush1.msra.mxu0 0.0
    %5550 = vmatprep.subr.mxu0 0.0
    %5551 = vmatpush1.msra.mxu0 0.0
    %5552 = vmatprep.subr.mxu0 0.0
    %5553 = vmatpush1.msra.mxu0 0.0
    %5554 = vmatprep.subr.mxu0 0.0
    %5555 = vmatpush1.msra.mxu0 0.0
    %5556 = vmatprep.subr.mxu0 0.0
    %5557 = vmatpush1.msra.mxu0 0.0
    %5558 = vmatprep.subr.mxu0 0.0
    %5559 = vmatpush1.msra.mxu0 0.0
    %5560 = vmatprep.subr.mxu0 0.0
    %5561 = vmatpush1.msra.mxu0 0.0
    %5562 = vmatprep.subr.mxu0 0.0
    %5563 = vmatpush1.msra.mxu0 0.0
    %5564 = vmatprep.subr.mxu0 0.0
    %5565 = vmatpush1.msra.mxu0 0.0
    %5566 = vmatprep.subr.mxu0 0.0
    %5567 = vmatpush1.msra.mxu0 0.0
    %5568 = vmatprep.subr.mxu0 0.0
    %5569 = vmatpush1.msra.mxu0 0.0
    %5570 = vmatprep.subr.mxu0 0.0
    %5571 = vmatpush1.msra.mxu0 0.0
    %5572 = vmatprep.subr.mxu0 0.0
    %5573 = vmatpush1.msra.mxu0 0.0
    %5574 = vmatprep.subr.mxu0 0.0
    %5575 = vmatpush1.msra.mxu0 0.0
    %5576 = vmatprep.subr.mxu0 0.0
    %5577 = vmatpush1.msra.mxu0 0.0
    %5578 = vmatprep.subr.mxu0 0.0
    %5579 = vmatpush1.msra.mxu0 0.0
    %5580 = vmatprep.subr.mxu0 0.0
    %5581 = vmatpush1.msra.mxu0 0.0
    %5582 = vmatprep.mubr.f32.mxu0 0.0
    %5583 = vmatmul.mubr.f32.gmra.mrb[0].mxu0 %v5495
    %v5584 = vpop.f32.mrb[0].mxu0
    %v5585 = vadd.f32 0.0, %v5584
    %v5586 = vpop.f32.mrb[0].mxu0
    %v5587 = vadd.f32 0.0, %v5586
    %5588 = vmatprep.mubr.f32.mxu0 0.0
    %5589 = vmatmul.mubr.f32.gmra.mrb[0].mxu0 %v5498
    %v5590 = vpop.f32.mrb[0].mxu0
    %v5591 = vadd.f32 0.0, %v5590
    %v5592 = vpop.f32.mrb[0].mxu0
    %v5593 = vadd.f32 0.0, %v5592
    %5594 = vmatprep.mubr.f32.mxu0 0.0
    %5595 = vmatmul.mubr.f32.gmra.mrb[0].mxu0 %v5501
    %v5596 = vpop.f32.mrb[0].mxu0
    %v5597 = vadd.f32 0.0, %v5596
    %v5598 = vpop.f32.mrb[0].mxu0
    %v5599 = vadd.f32 0.0, %v5598
    %5600 = vmatprep.mubr.f32.mxu0 0.0
    %5601 = vmatmul.mubr.f32.gmra.mrb[0].mxu0 %v5504
    %v5602 = vpop.f32.mrb[0].mxu0
    %v5603 = vadd.f32 0.0, %v5602
    %v5604 = vpop.f32.mrb[0].mxu0
    %v5605 = vadd.f32 0.0, %v5604
    %5606 = vmatprep.mubr.f32.mxu0 0.0
    %5607 = vmatmul.mubr.f32.gmra.mrb[0].mxu0 %v5507
    %v5608 = vpop.f32.mrb[0].mxu0
    %v5609 = vadd.f32 0.0, %v5608
    %v5610 = vpop.f32.mrb[0].mxu0
    %v5611 = vadd.f32 0.0, %v5610
    %5612 = vmatprep.mubr.f32.mxu0 0.0
    %5613 = vmatmul.mubr.f32.gmra.mrb[0].mxu0 %v5510
    %v5614 = vpop.f32.mrb[0].mxu0
    %v5615 = vadd.f32 0.0, %v5614
    %v5616 = vpop.f32.mrb[0].mxu0
    %v5617 = vadd.f32 0.0, %v5616
    %5618 = vmatprep.mubr.f32.mxu0 0.0
    %5619 = vmatmul.mubr.f32.gmra.mrb[0].mxu0 %v5513
    %v5620 = vpop.f32.mrb[0].mxu0
    %v5621 = vadd.f32 0.0, %v5620
    %v5622 = vpop.f32.mrb[0].mxu0
    %v5623 = vadd.f32 0.0, %v5622
    %5624 = vmatprep.mubr.f32.mxu0 0.0
    %5625 = vmatmul.mubr.f32.gmra.mrb[0].mxu0 %v5516
    %v5626 = vpop.f32.mrb[0].mxu0
    %v5627 = vadd.f32 0.0, %v5626
    %v5628 = vpop.f32.mrb[0].mxu0
    %v5629 = vadd.f32 0.0, %v5628
    %5630 = vdwg.mxu0
    %5631 = vmatprep.subr.mxu0 %v5464
    %5632 = vmatpush1.msra.mxu0 %v5463
    %5633 = vmatprep.subr.mxu0 %v5492
    %5634 = vmatpush1.msra.mxu0 %v5491
    %5635 = vmatprep.subr.mxu0 0.0
    %5636 = vmatpush1.msra.mxu0 0.0
    %5637 = vmatprep.subr.mxu0 0.0
    %5638 = vmatpush1.msra.mxu0 0.0
    %5639 = vmatprep.subr.mxu0 0.0
    %5640 = vmatpush1.msra.mxu0 0.0
    %5641 = vmatprep.subr.mxu0 0.0
    %5642 = vmatpush1.msra.mxu0 0.0
    %5643 = vmatprep.subr.mxu0 0.0
    %5644 = vmatpush1.msra.mxu0 0.0
    %5645 = vmatprep.subr.mxu0 0.0
    %5646 = vmatpush1.msra.mxu0 0.0
    %5647 = vmatprep.subr.mxu0 0.0
    %5648 = vmatpush1.msra.mxu0 0.0
    %5649 = vmatprep.subr.mxu0 0.0
    %5650 = vmatpush1.msra.mxu0 0.0
    %5651 = vmatprep.subr.mxu0 0.0
    %5652 = vmatpush1.msra.mxu0 0.0
    %5653 = vmatprep.subr.mxu0 0.0
    %5654 = vmatpush1.msra.mxu0 0.0
    %5655 = vmatprep.subr.mxu0 0.0
    %5656 = vmatpush1.msra.mxu0 0.0
    %5657 = vmatprep.subr.mxu0 0.0
    %5658 = vmatpush1.msra.mxu0 0.0
    %5659 = vmatprep.subr.mxu0 0.0
    %5660 = vmatpush1.msra.mxu0 0.0
    %5661 = vmatprep.subr.mxu0 0.0
    %5662 = vmatpush1.msra.mxu0 0.0
    %5663 = vmatprep.subr.mxu0 0.0
    %5664 = vmatpush1.msra.mxu0 0.0
    %5665 = vmatprep.subr.mxu0 0.0
    %5666 = vmatpush1.msra.mxu0 0.0
    %5667 = vmatprep.subr.mxu0 0.0
    %5668 = vmatpush1.msra.mxu0 0.0
    %5669 = vmatprep.subr.mxu0 0.0
    %5670 = vmatpush1.msra.mxu0 0.0
    %5671 = vmatprep.subr.mxu0 0.0
    %5672 = vmatpush1.msra.mxu0 0.0
    %5673 = vmatprep.subr.mxu0 0.0
    %5674 = vmatpush1.msra.mxu0 0.0
    %5675 = vmatprep.subr.mxu0 0.0
    %5676 = vmatpush1.msra.mxu0 0.0
    %5677 = vmatprep.subr.mxu0 0.0
    %5678 = vmatpush1.msra.mxu0 0.0
    %5679 = vmatprep.subr.mxu0 0.0
    %5680 = vmatpush1.msra.mxu0 0.0
    %5681 = vmatprep.subr.mxu0 0.0
    %5682 = vmatpush1.msra.mxu0 0.0
    %5683 = vmatprep.subr.mxu0 0.0
    %5684 = vmatpush1.msra.mxu0 0.0
    %5685 = vmatprep.subr.mxu0 0.0
    %5686 = vmatpush1.msra.mxu0 0.0
    %5687 = vmatprep.subr.mxu0 0.0
    %5688 = vmatpush1.msra.mxu0 0.0
    %5689 = vmatprep.subr.mxu0 0.0
    %5690 = vmatpush1.msra.mxu0 0.0
    %5691 = vmatprep.subr.mxu0 0.0
    %5692 = vmatpush1.msra.mxu0 0.0
    %5693 = vmatprep.subr.mxu0 0.0
    %5694 = vmatpush1.msra.mxu0 0.0
    %5695 = vmatprep.mubr.f32.mxu0 0.0
    %5696 = vmatmul.mubr.f32.gmra.mrb[0].mxu0 %v5495
    %v5697 = vpop.f32.mrb[0].mxu0
    %v5698 = vadd.f32 0.0, %v5697
    %v5699 = vpop.f32.mrb[0].mxu0
    %v5700 = vadd.f32 0.0, %v5699
    %5701 = vmatprep.mubr.f32.mxu0 0.0
    %5702 = vmatmul.mubr.f32.gmra.mrb[0].mxu0 %v5498
    %v5703 = vpop.f32.mrb[0].mxu0
    %v5704 = vadd.f32 0.0, %v5703
    %v5705 = vpop.f32.mrb[0].mxu0
    %v5706 = vadd.f32 0.0, %v5705
    %5707 = vmatprep.mubr.f32.mxu0 0.0
    %5708 = vmatmul.mubr.f32.gmra.mrb[0].mxu0 %v5501
    %v5709 = vpop.f32.mrb[0].mxu0
    %v5710 = vadd.f32 0.0, %v5709
    %v5711 = vpop.f32.mrb[0].mxu0
    %v5712 = vadd.f32 0.0, %v5711
    %5713 = vmatprep.mubr.f32.mxu0 0.0
    %5714 = vmatmul.mubr.f32.gmra.mrb[0].mxu0 %v5504
    %v5715 = vpop.f32.mrb[0].mxu0
    %v5716 = vadd.f32 0.0, %v5715
    %v5717 = vpop.f32.mrb[0].mxu0
    %v5718 = vadd.f32 0.0, %v5717
    %5719 = vmatprep.mubr.f32.mxu0 0.0
    %5720 = vmatmul.mubr.f32.gmra.mrb[0].mxu0 %v5507
    %v5721 = vpop.f32.mrb[0].mxu0
    %v5722 = vadd.f32 0.0, %v5721
    %v5723 = vpop.f32.mrb[0].mxu0
    %v5724 = vadd.f32 0.0, %v5723
    %5725 = vmatprep.mubr.f32.mxu0 0.0
    %5726 = vmatmul.mubr.f32.gmra.mrb[0].mxu0 %v5510
    %v5727 = vpop.f32.mrb[0].mxu0
    %v5728 = vadd.f32 0.0, %v5727
    %v5729 = vpop.f32.mrb[0].mxu0
    %v5730 = vadd.f32 0.0, %v5729
    %5731 = vmatprep.mubr.f32.mxu0 0.0
    %5732 = vmatmul.mubr.f32.gmra.mrb[0].mxu0 %v5513
    %v5733 = vpop.f32.mrb[0].mxu0
    %v5734 = vadd.f32 0.0, %v5733
    %v5735 = vpop.f32.mrb[0].mxu0
    %v5736 = vadd.f32 0.0, %v5735
    %5737 = vmatprep.mubr.f32.mxu0 0.0
    %5738 = vmatmul.mubr.f32.gmra.mrb[0].mxu0 %v5516
    %v5739 = vpop.f32.mrb[0].mxu0
    %v5740 = vadd.f32 0.0, %v5739
    %v5741 = vpop.f32.mrb[0].mxu0
    %v5742 = vadd.f32 0.0, %v5741
    %5743 = vdwg.mxu0
    %v5744 = vadd.f32 %v5425, %v5585
    %v5745 = vadd.f32 %v5426, %v5587
    %v5746 = vadd.f32 %v5427, %v5698
    %v5747 = vadd.f32 %v5428, %v5700
    %v5748 = vadd.f32 %v5429, %v5591
    %v5749 = vadd.f32 %v5430, %v5593
    %v5750 = vadd.f32 %v5431, %v5704
    %v5751 = vadd.f32 %v5432, %v5706
    %v5752 = vadd.f32 %v5433, %v5597
    %v5753 = vadd.f32 %v5434, %v5599
    %v5754 = vadd.f32 %v5435, %v5710
    %v5755 = vadd.f32 %v5436, %v5712
    %v5756 = vadd.f32 %v5437, %v5603
    %v5757 = vadd.f32 %v5438, %v5605
    %v5758 = vadd.f32 %v5439, %v5716
    %v5759 = vadd.f32 %v5440, %v5718
    %v5760 = vadd.f32 %v5441, %v5609
    %v5761 = vadd.f32 %v5442, %v5611
    %v5762 = vadd.f32 %v5443, %v5722
    %v5763 = vadd.f32 %v5444, %v5724
    %v5764 = vadd.f32 %v5445, %v5615
    %v5765 = vadd.f32 %v5446, %v5617
    %v5766 = vadd.f32 %v5447, %v5728
    %v5767 = vadd.f32 %v5448, %v5730
    %v5768 = vadd.f32 %v5449, %v5621
    %v5769 = vadd.f32 %v5450, %v5623
    %v5770 = vadd.f32 %v5451, %v5734
    %v5771 = vadd.f32 %v5452, %v5736
    %v5772 = vadd.f32 %v5453, %v5627
    %v5773 = vadd.f32 %v5454, %v5629
    %v5774 = vadd.f32 %v5455, %v5740
    %v5775 = vadd.f32 %v5456, %v5742
    %vm5776 = vcmp.lt.f32.partialorder %v5461, 20.0
    %vm5777 = vcmp.lt.f32.partialorder %v5462, 20.0
    %vm5778 = vcmp.lt.f32.partialorder %v5463, 20.0
    %vm5779 = vcmp.lt.f32.partialorder %v5464, 20.0
    %5781 = vset.pattern.permute.xlu0 0
    %5782 = vperm.xlu0 %5781, %v68
    %v5783 = vpop.permute.xlu0 %5782
    %5786 = vset.pattern.permute.xlu0 0
    %5787 = vperm.xlu0 %5786, %v69
    %v5788 = vpop.permute.xlu0 %5787
    %5791 = vset.pattern.permute.xlu0 0
    %5792 = vperm.xlu0 %5791, %v70
    %v5793 = vpop.permute.xlu0 %5792
    %5796 = vset.pattern.permute.xlu0 0
    %5797 = vperm.xlu0 %5796, %v71
    %v5798 = vpop.permute.xlu0 %5797
    %5801 = vset.pattern.permute.xlu0 0
    %5802 = vperm.xlu0 %5801, %v72
    %v5803 = vpop.permute.xlu0 %5802
    %5806 = vset.pattern.permute.xlu0 0
    %5807 = vperm.xlu0 %5806, %v73
    %v5808 = vpop.permute.xlu0 %5807
    %5811 = vset.pattern.permute.xlu0 0
    %5812 = vperm.xlu0 %5811, %v74
    %v5813 = vpop.permute.xlu0 %5812
    %5816 = vset.pattern.permute.xlu0 0
    %5817 = vperm.xlu0 %5816, %v75
    %v5818 = vpop.permute.xlu0 %5817
    %v5820 = vmax.f32 %v5744, %v5783
    %v5821 = vmax.f32 %v5745, %v5783
    %v5822 = vmax.f32 %v5746, %v5783
    %v5823 = vmax.f32 %v5747, %v5783
    %v5824 = vmax.f32 %v5748, %v5788
    %v5825 = vmax.f32 %v5749, %v5788
    %v5826 = vmax.f32 %v5750, %v5788
    %v5827 = vmax.f32 %v5751, %v5788
    %v5828 = vmax.f32 %v5752, %v5793
    %v5829 = vmax.f32 %v5753, %v5793
    %v5830 = vmax.f32 %v5754, %v5793
    %v5831 = vmax.f32 %v5755, %v5793
    %v5832 = vmax.f32 %v5756, %v5798
    %v5833 = vmax.f32 %v5757, %v5798
    %v5834 = vmax.f32 %v5758, %v5798
    %v5835 = vmax.f32 %v5759, %v5798
    %v5836 = vmax.f32 %v5760, %v5803
    %v5837 = vmax.f32 %v5761, %v5803
    %v5838 = vmax.f32 %v5762, %v5803
    %v5839 = vmax.f32 %v5763, %v5803
    %v5840 = vmax.f32 %v5764, %v5808
    %v5841 = vmax.f32 %v5765, %v5808
    %v5842 = vmax.f32 %v5766, %v5808
    %v5843 = vmax.f32 %v5767, %v5808
    %v5844 = vmax.f32 %v5768, %v5813
    %v5845 = vmax.f32 %v5769, %v5813
    %v5846 = vmax.f32 %v5770, %v5813
    %v5847 = vmax.f32 %v5771, %v5813
    %v5848 = vmax.f32 %v5772, %v5818
    %v5849 = vmax.f32 %v5773, %v5818
    %v5850 = vmax.f32 %v5774, %v5818
    %v5851 = vmax.f32 %v5775, %v5818
    %v5852 = vsel %vm5776, 1, 0
    %v5853 = vsel %vm5777, 1, 0
    %v5854 = vsel %vm5778, 1, 0
    %v5855 = vsel %vm5779, 1, 0
    %v5856 = vlaneseq
    %v5857 = vshrl.u32 %v5856, 7
    %v5858 = vsub.s32 3, %v5857
    %v5859 = vrot.slane %v5852, %v5858
    %v5860 = vlaneseq
    %v5861 = vshrl.u32 %v5860, 7
    %v5862 = vsub.s32 3, %v5861
    %v5863 = vrot.slane %v5853, %v5862
    %v5864 = vlaneseq
    %v5865 = vshrl.u32 %v5864, 7
    %v5866 = vsub.s32 3, %v5865
    %v5867 = vrot.slane %v5854, %v5866
    %v5868 = vlaneseq
    %v5869 = vshrl.u32 %v5868, 7
    %v5870 = vsub.s32 3, %v5869
    %v5871 = vrot.slane %v5855, %v5870
    %vm5872 = vcmp.eq.s32.totalorder %v5859, 1
    %vm5873 = vcmp.eq.s32.totalorder %v5863, 1
    %vm5874 = vcmp.eq.s32.totalorder %v5867, 1
    %vm5875 = vcmp.eq.s32.totalorder %v5871, 1
    %v5876 = vsel %vm5872, %v5820, %v5744
    %v5877 = vsel %vm5873, %v5821, %v5745
    %v5878 = vsel %vm5874, %v5822, %v5746
    %v5879 = vsel %vm5875, %v5823, %v5747
    %v5880 = vsel %vm5872, %v5824, %v5748
    %v5881 = vsel %vm5873, %v5825, %v5749
    %v5882 = vsel %vm5874, %v5826, %v5750
    %v5883 = vsel %vm5875, %v5827, %v5751
    %v5884 = vsel %vm5872, %v5828, %v5752
    %v5885 = vsel %vm5873, %v5829, %v5753
    %v5886 = vsel %vm5874, %v5830, %v5754
    %v5887 = vsel %vm5875, %v5831, %v5755
    %v5888 = vsel %vm5872, %v5832, %v5756
    %v5889 = vsel %vm5873, %v5833, %v5757
    %v5890 = vsel %vm5874, %v5834, %v5758
    %v5891 = vsel %vm5875, %v5835, %v5759
    %v5892 = vsel %vm5872, %v5836, %v5760
    %v5893 = vsel %vm5873, %v5837, %v5761
    %v5894 = vsel %vm5874, %v5838, %v5762
    %v5895 = vsel %vm5875, %v5839, %v5763
    %v5896 = vsel %vm5872, %v5840, %v5764
    %v5897 = vsel %vm5873, %v5841, %v5765
    %v5898 = vsel %vm5874, %v5842, %v5766
    %v5899 = vsel %vm5875, %v5843, %v5767
    %v5900 = vsel %vm5872, %v5844, %v5768
    %v5901 = vsel %vm5873, %v5845, %v5769
    %v5902 = vsel %vm5874, %v5846, %v5770
    %v5903 = vsel %vm5875, %v5847, %v5771
    %v5904 = vsel %vm5872, %v5848, %v5772
    %v5905 = vsel %vm5873, %v5849, %v5773
    %v5906 = vsel %vm5874, %v5850, %v5774
    %v5907 = vsel %vm5875, %v5851, %v5775
    %v5908 = vmax.f32 %v5876, 0.0
    %v5909 = vmax.f32 %v5877, 0.0
    %v5910 = vmax.f32 %v5878, 0.0
    %v5911 = vmax.f32 %v5879, 0.0
    %v5912 = vmax.f32 %v5880, 0.0
    %v5913 = vmax.f32 %v5881, 0.0
    %v5914 = vmax.f32 %v5882, 0.0
    %v5915 = vmax.f32 %v5883, 0.0
    %v5916 = vmax.f32 %v5884, 0.0
    %v5917 = vmax.f32 %v5885, 0.0
    %v5918 = vmax.f32 %v5886, 0.0
    %v5919 = vmax.f32 %v5887, 0.0
    %v5920 = vmax.f32 %v5888, 0.0
    %v5921 = vmax.f32 %v5889, 0.0
    %v5922 = vmax.f32 %v5890, 0.0
    %v5923 = vmax.f32 %v5891, 0.0
    %v5924 = vmax.f32 %v5892, 0.0
    %v5925 = vmax.f32 %v5893, 0.0
    %v5926 = vmax.f32 %v5894, 0.0
    %v5927 = vmax.f32 %v5895, 0.0
    %v5928 = vmax.f32 %v5896, 0.0
    %v5929 = vmax.f32 %v5897, 0.0
    %v5930 = vmax.f32 %v5898, 0.0
    %v5931 = vmax.f32 %v5899, 0.0
    %v5932 = vmax.f32 %v5900, 0.0
    %v5933 = vmax.f32 %v5901, 0.0
    %v5934 = vmax.f32 %v5902, 0.0
    %v5935 = vmax.f32 %v5903, 0.0
    %v5936 = vmax.f32 %v5904, 0.0
    %v5937 = vmax.f32 %v5905, 0.0
    %v5938 = vmax.f32 %v5906, 0.0
    %v5939 = vmax.f32 %v5907, 0.0
    %5940 = vst [vmem:[#allocation8] sm:$0xff] %v5908
    %5941 = vst [vmem:[#allocation8 + $0x8] sm:$0xff] %v5909
    %5942 = vst [vmem:[#allocation8 + $0x10] sm:$0xff] %v5910
    %5943 = vst [vmem:[#allocation8 + $0x18] sm:$0xff] %v5911
    %5944 = vst [vmem:[#allocation8 + $0x20] sm:$0xff] %v5912
    %5945 = vst [vmem:[#allocation8 + $0x28] sm:$0xff] %v5913
    %5946 = vst [vmem:[#allocation8 + $0x30] sm:$0xff] %v5914
    %5947 = vst [vmem:[#allocation8 + $0x38] sm:$0xff] %v5915
    %5948 = vst [vmem:[#allocation8 + $0x40] sm:$0xff] %v5916
    %5949 = vst [vmem:[#allocation8 + $0x48] sm:$0xff] %v5917
    %5950 = vst [vmem:[#allocation8 + $0x50] sm:$0xff] %v5918
    %5951 = vst [vmem:[#allocation8 + $0x58] sm:$0xff] %v5919
    %5952 = vst [vmem:[#allocation8 + $0x60] sm:$0xff] %v5920
    %5953 = vst [vmem:[#allocation8 + $0x68] sm:$0xff] %v5921
    %5954 = vst [vmem:[#allocation8 + $0x70] sm:$0xff] %v5922
    %5955 = vst [vmem:[#allocation8 + $0x78] sm:$0xff] %v5923
    %5956 = vst [vmem:[#allocation8 + $0x80] sm:$0xff] %v5924
    %5957 = vst [vmem:[#allocation8 + $0x88] sm:$0xff] %v5925
    %5958 = vst [vmem:[#allocation8 + $0x90] sm:$0xff] %v5926
    %5959 = vst [vmem:[#allocation8 + $0x98] sm:$0xff] %v5927
    %5960 = vst [vmem:[#allocation8 + $0xa0] sm:$0xff] %v5928
    %5961 = vst [vmem:[#allocation8 + $0xa8] sm:$0xff] %v5929
    %5962 = vst [vmem:[#allocation8 + $0xb0] sm:$0xff] %v5930
    %5963 = vst [vmem:[#allocation8 + $0xb8] sm:$0xff] %v5931
    %5964 = vst [vmem:[#allocation8 + $0xc0] sm:$0xff] %v5932
    %5965 = vst [vmem:[#allocation8 + $0xc8] sm:$0xff] %v5933
    %5966 = vst [vmem:[#allocation8 + $0xd0] sm:$0xff] %v5934
    %5967 = vst [vmem:[#allocation8 + $0xd8] sm:$0xff] %v5935
    %5968 = vst [vmem:[#allocation8 + $0xe0] sm:$0xff] %v5936
    %5969 = vst [vmem:[#allocation8 + $0xe8] sm:$0xff] %v5937
    %5970 = vst [vmem:[#allocation8 + $0xf0] sm:$0xff] %v5938
    %5971 = vst [vmem:[#allocation8 + $0xf8] sm:$0xff] %v5939
    // Predicated region
    $region26: #{pfn_pallas.1} parent=1 // pred_check
      _
    $region27: #{pfn_pallas.1} parent=1 // pred_check_branch
      %5973 = sbr.rel (0) target = $region29
    $region28: #{pfn_pallas.1} parent=1 // pred_region
      %s5975 = ssub.s32 4096, 4096
      %5976 = vsyncadd [#allocation4], %s5975
      %s5977 = sshll.u32 [#allocation8], 4
      %s5978 = int_to_ptr.vmem [resolvable:$true] %s5977
      %5983 = dma.vmem_to_hbm [thread:$0]  %s5978, 4096, %s3, [#allocation4], 512, 512, 32
    $region29: #{pfn_pallas.1} parent=1 // pred_fallthru
      _
    // Predicated region
    $region30: #{pfn_pallas.1} parent=1 // pred_check
      _
    $region31: #{pfn_pallas.1} parent=1 // pred_check_branch
      %5985 = sbr.rel (0) target = $region33
    $region32: #{pfn_pallas.1} parent=1 // pred_region
      %5986 = dma.done [#allocation4], 4096
    $region33: #{pfn_pallas.1} parent=1 // pred_fallthru
      _
    %5987 = vsyncpa [#allocation3], 1
    %5988 = vsyncpa [#allocation6], 1
    %5989 = vsyncpa [#allocation4], 1

</llo_original>
